<compile_context>
chip_gen: v7x
topology: tpu7x:2x2x1
jax: 0.10.0
libtpu: 0.0.40
codegen_flags: <defaults>
</compile_context>

<pallas_src>
import functools

import jax
import jax.numpy as jnp
from jax.experimental import pallas as pl
from jax.experimental.pallas import tpu as pltpu


def linear_kernel(x_ref, w_ref, b_ref, o_ref):
    # x_ref: (M, K) f32    w_ref: (K, TN) bf16
    # b_ref: (1, TN) f32   o_ref: (M, TN) f32
    x_bf16 = x_ref[...].astype(jnp.bfloat16)          # VPU cast, hidden under DMA
    acc = jnp.dot(x_bf16, w_ref[...], preferred_element_type=jnp.float32)
    o_ref[...] = acc + b_ref[...]


def prepare_linear_params(weight, bias):
    """One-time parameter prep (do this OUTSIDE the per-call hot path).

    weight: (N, K) f32 in PyTorch nn.Linear layout -> bf16 (K, N).
    bias:   (N,) -> (1, N) f32.
    """
    w_kn = jnp.asarray(weight).T.astype(jnp.bfloat16)
    b2d = jnp.asarray(bias, jnp.float32).reshape(1, -1)
    return w_kn, b2d


@functools.partial(jax.jit, static_argnames=("tile_n",))
def pallas_linear(x, w_kn, b2d, tile_n=256):
    """x: (..., K) f32; w_kn: (K, N) bf16 (pre-cast); b2d: (1, N) f32."""
    *lead, K = x.shape
    Kw, N = w_kn.shape
    assert K == Kw
    M = 1
    for d in lead:
        M *= d

    tn = min(tile_n, N)
    assert N % tn == 0 and tn % 128 == 0 and K % 128 == 0

    x2d = x.reshape(M, K)          # contiguous reshape: no copy, stays f32

    cost = pl.CostEstimate(
        flops=2 * M * K * N,
        transcendentals=0,
        bytes_accessed=M * K * 4 + K * N * 2 + N * 4 + M * N * 4,
    )

    out = pl.pallas_call(
        linear_kernel,
        out_shape=jax.ShapeDtypeStruct((M, N), jnp.float32),
        grid_spec=pltpu.PrefetchScalarGridSpec(
            num_scalar_prefetch=0,
            grid=(N // tn,),
            in_specs=[
                # Full-dim activation block; constant index -> DMA'd once.
                pl.BlockSpec((M, K), lambda j: (0, 0)),
                # Weight tiled over N, standard (K, N) orientation.
                pl.BlockSpec((K, tn), lambda j: (0, j)),
                # Bias tile over N.
                pl.BlockSpec((1, tn), lambda j: (0, j)),
            ],
            out_specs=pl.BlockSpec((M, tn), lambda j: (0, j)),
        ),
        compiler_params=pltpu.CompilerParams(
            dimension_semantics=("parallel",),   # megacore-shards N on v7x
        ),
        cost_estimate=cost,
    )(x2d, w_kn, b2d)

    return out.reshape(*lead, N)


if __name__ == "__main__":
    key = jax.random.PRNGKey(0)
    kx, kw, kb = jax.random.split(key, 3)

    in_features, out_features = 2048, 512

    # Deterministic synthetic parameters (same shapes as nn.Linear(2048, 512)).
    weight = jax.random.normal(kw, (out_features, in_features), jnp.float32) * 0.02
    bias = jax.random.normal(kb, (out_features,), jnp.float32) * 0.02

    # Input consistent with the module's forward: [1, 14, 14, 2048].
    x = jax.random.normal(kx, (1, 14, 14, in_features), jnp.float32)

    # One-time weight/bias prep (cached bf16 (K, N) weight) -- not per call.
    w_kn, b2d = prepare_linear_params(weight, bias)
    jax.block_until_ready((w_kn, b2d))

    y = pallas_linear(x, w_kn, b2d)
    jax.block_until_ready(y)

    # Reference check against plain fp32 JAX (bf16 weight/activation -> looser tol).
    y_ref = jnp.einsum("bhwk,nk->bhwn", x, weight) + bias
    assert y.shape == (1, 14, 14, out_features)
    assert jnp.allclose(y, y_ref, atol=2e-2, rtol=2e-2)

    print("KERNEL_OK")
</pallas_src>

<mosaic_0001>
module attributes {stable_mosaic.version = 11 : i64} {
  func.func @linear_kernel(%arg0: i32, %arg1: memref<196x2048xf32, #tpu.memory_space<vmem>>, %arg2: memref<2048x256xbf16, #tpu.memory_space<vmem>>, %arg3: memref<1x256xf32, #tpu.memory_space<vmem>>, %arg4: memref<196x256xf32, #tpu.memory_space<vmem>>) attributes {dimension_semantics = [#tpu.dimension_semantics<parallel>], iteration_bounds = array<i64: 2>, scalar_prefetch = 0 : i64, scratch_operands = 0 : i64, tpu.core_type = #tpu.core_type<tc>, window_params = [{pipeline_mode = #tpu.pipeline_mode<synchronous>, transform_indices = @transform_0, window_bounds = array<i64: 196, 2048>}, {transform_indices = @transform_1, window_bounds = array<i64: 2048, 256>}, {transform_indices = @transform_2, window_bounds = array<i64: 1, 256>}, {transform_indices = @transform_3, window_bounds = array<i64: 196, 256>}]} {
    %c0 = arith.constant 0 : index
    %c0_0 = arith.constant 0 : index
    %0 = vector.load %arg1[%c0, %c0_0] : memref<196x2048xf32, #tpu.memory_space<vmem>>, vector<196x2048xf32>
    %1 = arith.truncf %0 : vector<196x2048xf32> to vector<196x2048xbf16>
    %c0_1 = arith.constant 0 : index
    %c0_2 = arith.constant 0 : index
    %2 = vector.load %arg2[%c0_1, %c0_2] : memref<2048x256xbf16, #tpu.memory_space<vmem>>, vector<2048x256xbf16>
    %cst = arith.constant dense<0.000000e+00> : vector<196x256xf32>
    %3 = tpu.matmul %1, %2, %cst {dimension_numbers = #tpu.dot_dimension_numbers<[1], [0], [0], [1], [0, 0, 1, 1], [], []>} : vector<196x2048xbf16>, vector<2048x256xbf16>, vector<196x256xf32> -> vector<196x256xf32>
    %c0_3 = arith.constant 0 : index
    %c0_4 = arith.constant 0 : index
    %4 = vector.load %arg3[%c0_3, %c0_4] : memref<1x256xf32, #tpu.memory_space<vmem>>, vector<1x256xf32>
    %5 = vector.broadcast %4 : vector<1x256xf32> to vector<196x256xf32>
    %6 = arith.addf %3, %5 : vector<196x256xf32>
    %c0_5 = arith.constant 0 : index
    %c0_6 = arith.constant 0 : index
    %7 = vector.load %arg4[%c0_5, %c0_6] : memref<196x256xf32, #tpu.memory_space<vmem>>, vector<196x256xf32>
    tpu.vector_store %arg4[%c0_5, %c0_6], %6 {strides = array<i32>} : memref<196x256xf32, #tpu.memory_space<vmem>>, vector<196x256xf32>,
    return
  }
  func.func @transform_0(%arg0: i32) -> (i32, i32) {
    %c0_i32 = arith.constant 0 : i32
    %c0_i32_0 = arith.constant 0 : i32
    %c0_i32_1 = arith.constant 0 : i32
    return %c0_i32, %c0_i32_0 : i32, i32
  }
  func.func @transform_1(%arg0: i32) -> (i32, i32) {
    %c0_i32 = arith.constant 0 : i32
    %c0_i32_0 = arith.constant 0 : i32
    return %c0_i32, %arg0 : i32, i32
  }
  func.func @transform_2(%arg0: i32) -> (i32, i32) {
    %c0_i32 = arith.constant 0 : i32
    %c0_i32_0 = arith.constant 0 : i32
    return %c0_i32, %arg0 : i32, i32
  }
  func.func @transform_3(%arg0: i32) -> (i32, i32) {
    %c0_i32 = arith.constant 0 : i32
    %c0_i32_0 = arith.constant 0 : i32
    return %c0_i32, %arg0 : i32, i32
  }
}

</mosaic_0001>

<llo_original>
// kernel: pallas_linear.1
$region0: #{pallas_linear.1}
  #allocation0 [shape = 'u32[]', space=smem, size = 0x4, offset = 0x4, fixed_abs, tag = 'smem constant byte address 0x4 - core index']
  #allocation1 [shape = 'u32[144,128]{1,0:T(1,128)}', space=vmem, size = 0x12000, scoped, tag = 'internal scratch']
  %s0 = inlined_call_operand.vmem [shape: f32[196,2048], index: 0, kind: input, shape index: {}]
  %s1 = inlined_call_operand.vmem [shape: bf16[2048,512], index: 1, kind: input, shape index: {}]
  %s2 = inlined_call_operand.vmem [shape: f32[1,512], index: 2, kind: input, shape index: {}]
  %s3 = inlined_call_operand.vmem [shape: f32[196,512], index: 3, kind: output, shape index: {}]
  %s4 = sld [smem:[#allocation0]]
  $region102: #{pallas_linear.1} parent=0
    _
  %s6 = ssub.s32 1, %s4
  %s7 = scalar_select 0, %s6, %s4
  $region1: #{pallas_linear.1} parent=0
    #allocation2 [shape = 'u8[2097152]{0}', space=vmem, size = 0x200000, scoped, tag = 'input window, operand 1']
    #allocation3 [shape = 'u8[409600]{0}', space=vmem, size = 0x64000, scoped, tag = 'output window, operand 0']
    loop: start=0, step=1, limit=4
    $region2: #{pallas_linear.1} parent=1 // loop_pre_header
      _
    $region3: #{pallas_linear.1} parent=1 // loop_header
      %s9 = sphi 0, %s13
      %p10 = scmp.ge.s32.totalorder %s9, 4
      %s17 = sphi 0, %s17
      %s19 = sphi 0, %s17
      %s20 = sphi 0, %s19
      %s34 = sphi 0, %s20
      %s40 = sphi 0, %s42
      %s43 = sphi 0, %s40
      %s44 = sphi 0, %s43
      %s60 = sphi 0, %s44
      %s66 = sphi 0, %s68
      %s69 = sphi 0, %s66
      %s70 = sphi 0, %s69
      %s86 = sphi 0, %s70
      %s92 = sphi 0, %s94
      %s95 = sphi 0, %s92
      %s96 = sphi 0, %s95
      %s112 = sphi 0, %s96
    $region4: #{pallas_linear.1} parent=1 // loop_header_branch
      %12 = sbr.rel (%p10) target = $region8
    $region5: #{pallas_linear.1} parent=1 // loop_body
      %s14 = ssub.s32 %s9, 1
      %s15 = ssub.s32 %s9, 2
      %s16 = sadd.s32 %s9, 1
      %s18 = sadd.s32 %s17, 1
      %p21 = scmp.eq.s32.totalorder %s9, 1
      %p22 = scmp.ne.s32.totalorder %s17, %s19
      %p23 = scmp.eq.s32.totalorder %s9, 0
      %p24 = por %p22, %p23
      %p25 = scmp.ne.s32.totalorder %s17, %s19
      %p26 = scmp.eq.s32.totalorder %s14, 1
      %p27 = por %p25, %p26
      %p28 = scmp.ne.s32.totalorder %s19, %s20
      %p29 = scmp.eq.s32.totalorder %s14, 0
      %p30 = por %p28, %p29
      %p31 = scmp.ne.s32.totalorder %s19, %s20
      %p32 = scmp.eq.s32.totalorder %s15, 1
      %p33 = por %p31, %p32
      %p35 = scmp.ne.s32.totalorder %s20, %s34
      %p36 = scmp.eq.s32.totalorder %s15, 0
      %p37 = por %p35, %p36
      %s38 = ssub.s32 %s9, %s16
      %p39 = scmp.eq.s32.totalorder %s38, 0
      %s41 = sadd.s32 %s40, 1
      %s42 = scalar_select %p39, %s40, %s41
      %p45 = pneg %p39
      %p46 = scmp.eq.s32.totalorder %s9, 1
      %p47 = por %p45, %p46
      %p48 = scmp.ne.s32.totalorder %s40, %s43
      %p49 = scmp.eq.s32.totalorder %s9, 0
      %p50 = por %p48, %p49
      %p51 = scmp.ne.s32.totalorder %s40, %s43
      %p52 = scmp.eq.s32.totalorder %s14, 1
      %p53 = por %p51, %p52
      %p54 = scmp.ne.s32.totalorder %s43, %s44
      %p55 = scmp.eq.s32.totalorder %s14, 0
      %p56 = por %p54, %p55
      %p57 = scmp.ne.s32.totalorder %s43, %s44
      %p58 = scmp.eq.s32.totalorder %s15, 1
      %p59 = por %p57, %p58
      %p61 = scmp.ne.s32.totalorder %s44, %s60
      %p62 = scmp.eq.s32.totalorder %s15, 0
      %p63 = por %p61, %p62
      %s64 = ssub.s32 %s9, %s16
      %p65 = scmp.eq.s32.totalorder %s64, 0
      %s67 = sadd.s32 %s66, 1
      %s68 = scalar_select %p65, %s66, %s67
      %p71 = pneg %p65
      %p72 = scmp.eq.s32.totalorder %s9, 1
      %p73 = por %p71, %p72
      %p74 = scmp.ne.s32.totalorder %s66, %s69
      %p75 = scmp.eq.s32.totalorder %s9, 0
      %p76 = por %p74, %p75
      %p77 = scmp.ne.s32.totalorder %s66, %s69
      %p78 = scmp.eq.s32.totalorder %s14, 1
      %p79 = por %p77, %p78
      %p80 = scmp.ne.s32.totalorder %s69, %s70
      %p81 = scmp.eq.s32.totalorder %s14, 0
      %p82 = por %p80, %p81
      %p83 = scmp.ne.s32.totalorder %s69, %s70
      %p84 = scmp.eq.s32.totalorder %s15, 1
      %p85 = por %p83, %p84
      %p87 = scmp.ne.s32.totalorder %s70, %s86
      %p88 = scmp.eq.s32.totalorder %s15, 0
      %p89 = por %p87, %p88
      %s90 = ssub.s32 %s9, %s16
      %p91 = scmp.eq.s32.totalorder %s90, 0
      %s93 = sadd.s32 %s92, 1
      %s94 = scalar_select %p91, %s92, %s93
      %p97 = pneg %p91
      %p98 = scmp.eq.s32.totalorder %s9, 1
      %p99 = por %p97, %p98
      %p100 = scmp.ne.s32.totalorder %s92, %s95
      %p101 = scmp.eq.s32.totalorder %s9, 0
      %p102 = por %p100, %p101
      %p103 = scmp.ne.s32.totalorder %s92, %s95
      %p104 = scmp.eq.s32.totalorder %s14, 1
      %p105 = por %p103, %p104
      %p106 = scmp.ne.s32.totalorder %s95, %s96
      %p107 = scmp.eq.s32.totalorder %s14, 0
      %p108 = por %p106, %p107
      %p109 = scmp.ne.s32.totalorder %s95, %s96
      %p110 = scmp.eq.s32.totalorder %s15, 1
      %p111 = por %p109, %p110
      %p113 = scmp.ne.s32.totalorder %s96, %s112
      %p114 = scmp.eq.s32.totalorder %s15, 0
      %p115 = por %p113, %p114
      %p116 = scmp.le.s32.totalorder 1, %s9
      %p117 = scmp.lt.s32.totalorder %s9, 3
      %p118 = pnand %p116, %p117
      %p119 = pneg %p118
      // Predicated region
      $region9: #{pallas_linear.1} parent=5 // pred_check
        _
      $region10: #{pallas_linear.1} parent=5 // pred_check_branch
        %121 = sbr.rel (%p118) target = $region12
      $region11: #{pallas_linear.1} parent=5 // pred_region
        %s122 = ssub.s32 %s9, 1
        // Predicated region
        $region13: #{pallas_linear.1} parent=11 // pred_check
          %p123 = pneg %p30
        $region14: #{pallas_linear.1} parent=11 // pred_check_branch
          %125 = sbr.rel (%p123) target = $region16
        $region15: #{pallas_linear.1} parent=11 // pred_region
          _
        $region16: #{pallas_linear.1} parent=11 // pred_fallthru
          _
      $region12: #{pallas_linear.1} parent=5 // pred_fallthru
        _
      %p126 = scmp.lt.s32.totalorder %s9, 2
      // Predicated region
      $region17: #{pallas_linear.1} parent=5 // pred_check
        %p127 = pneg %p126
      $region18: #{pallas_linear.1} parent=5 // pred_check_branch
        %129 = sbr.rel (%p127) target = $region20
      $region19: #{pallas_linear.1} parent=5 // pred_region
        // Predicated region
        $region21: #{pallas_linear.1} parent=19 // pred_check
          %p130 = pneg %p50
        $region22: #{pallas_linear.1} parent=19 // pred_check_branch
          %132 = sbr.rel (%p130) target = $region24
        $region23: #{pallas_linear.1} parent=19 // pred_region
          %s133 = sand.u32 %s40, 1
          %s134 = sand.u32 %s40, 1
          %s135 = smul.addr %s134, 2048
          %s136 = scalar_lea.vmem [#allocation2], %s135
          %s137 = smul.u32 2, %s9
          %s138 = smul.addr %s137, 4
          %s139 = scalar_lea.vmem %s1, %s138
          // Predicated region
          $region25: #{pallas_linear.1} parent=23 // pred_check
            _
          $region26: #{pallas_linear.1} parent=23 // pred_check_branch
            %141 = sbr.rel (0) target = $region28
          $region27: #{pallas_linear.1} parent=23 // pred_region
            // Predicated region
            $region29: #{pallas_linear.1} parent=27 // pred_check
              _
            $region30: #{pallas_linear.1} parent=27 // pred_check_branch
              %143 = sbr.rel (0) target = $region32
            $region31: #{pallas_linear.1} parent=27 // pred_region
              // Predicated region
              $region44: #{pallas_linear.1} parent=31 // pred_check
                _
              $region45: #{pallas_linear.1} parent=31 // pred_check_branch
                %668 = sbr.rel (0) target = $region47
              $region46: #{pallas_linear.1} parent=31 // pred_region
                loop: start=0, step=1, limit=1
                $region48: #{pallas_linear.1} parent=46 // loop_pre_header
                  _
                $region49: #{pallas_linear.1} parent=46 // loop_header
                  %s670 = sphi 0, %s674
                  %p671 = scmp.ge.s32.totalorder %s670, 1
                  %s675 = sphi %s139, %s139
                  %s676 = sphi %s136, %s136
                $region50: #{pallas_linear.1} parent=46 // loop_header_branch
                  %673 = sbr.rel (%p671) target = $region54
                $region51: #{pallas_linear.1} parent=46 // loop_body
                  %v677 = vld [vmem:[%s675] sm:$0xff]
                  %678 = vst [vmem:[%s676] sm:$0xff] %v677
                  %v679 = vld [vmem:[%s675 + $0x10] sm:$0xff]
                  %680 = vst [vmem:[%s676 + $0x8] sm:$0xff] %v679
                  %v681 = vld [vmem:[%s675 + $0x20] sm:$0xff]
                  %682 = vst [vmem:[%s676 + $0x10] sm:$0xff] %v681
                  %v683 = vld [vmem:[%s675 + $0x30] sm:$0xff]
                  %684 = vst [vmem:[%s676 + $0x18] sm:$0xff] %v683
                  %v685 = vld [vmem:[%s675 + $0x40] sm:$0xff]
                  %686 = vst [vmem:[%s676 + $0x20] sm:$0xff] %v685
                  %v687 = vld [vmem:[%s675 + $0x50] sm:$0xff]
                  %688 = vst [vmem:[%s676 + $0x28] sm:$0xff] %v687
                  %v689 = vld [vmem:[%s675 + $0x60] sm:$0xff]
                  %690 = vst [vmem:[%s676 + $0x30] sm:$0xff] %v689
                  %v691 = vld [vmem:[%s675 + $0x70] sm:$0xff]
                  %692 = vst [vmem:[%s676 + $0x38] sm:$0xff] %v691
                  %v693 = vld [vmem:[%s675 + $0x80] sm:$0xff]
                  %694 = vst [vmem:[%s676 + $0x40] sm:$0xff] %v693
                  %v695 = vld [vmem:[%s675 + $0x90] sm:$0xff]
                  %696 = vst [vmem:[%s676 + $0x48] sm:$0xff] %v695
                  %v697 = vld [vmem:[%s675 + $0xa0] sm:$0xff]
                  %698 = vst [vmem:[%s676 + $0x50] sm:$0xff] %v697
                  %v699 = vld [vmem:[%s675 + $0xb0] sm:$0xff]
                  %700 = vst [vmem:[%s676 + $0x58] sm:$0xff] %v699
                  %v701 = vld [vmem:[%s675 + $0xc0] sm:$0xff]
                  %702 = vst [vmem:[%s676 + $0x60] sm:$0xff] %v701
                  %v703 = vld [vmem:[%s675 + $0xd0] sm:$0xff]
                  %704 = vst [vmem:[%s676 + $0x68] sm:$0xff] %v703
                  %v705 = vld [vmem:[%s675 + $0xe0] sm:$0xff]
                  %706 = vst [vmem:[%s676 + $0x70] sm:$0xff] %v705
                  %v707 = vld [vmem:[%s675 + $0xf0] sm:$0xff]
                  %708 = vst [vmem:[%s676 + $0x78] sm:$0xff] %v707
                  %v709 = vld [vmem:[%s675 + $0x100] sm:$0xff]
                  %710 = vst [vmem:[%s676 + $0x80] sm:$0xff] %v709
                  %v711 = vld [vmem:[%s675 + $0x110] sm:$0xff]
                  %712 = vst [vmem:[%s676 + $0x88] sm:$0xff] %v711
                  %v713 = vld [vmem:[%s675 + $0x120] sm:$0xff]
                  %714 = vst [vmem:[%s676 + $0x90] sm:$0xff] %v713
                  %v715 = vld [vmem:[%s675 + $0x130] sm:$0xff]
                  %716 = vst [vmem:[%s676 + $0x98] sm:$0xff] %v715
                  %v717 = vld [vmem:[%s675 + $0x140] sm:$0xff]
                  %718 = vst [vmem:[%s676 + $0xa0] sm:$0xff] %v717
                  %v719 = vld [vmem:[%s675 + $0x150] sm:$0xff]
                  %720 = vst [vmem:[%s676 + $0xa8] sm:$0xff] %v719
                  %v721 = vld [vmem:[%s675 + $0x160] sm:$0xff]
                  %722 = vst [vmem:[%s676 + $0xb0] sm:$0xff] %v721
                  %v723 = vld [vmem:[%s675 + $0x170] sm:$0xff]
                  %724 = vst [vmem:[%s676 + $0xb8] sm:$0xff] %v723
                  %v725 = vld [vmem:[%s675 + $0x180] sm:$0xff]
                  %726 = vst [vmem:[%s676 + $0xc0] sm:$0xff] %v725
                  %v727 = vld [vmem:[%s675 + $0x190] sm:$0xff]
                  %728 = vst [vmem:[%s676 + $0xc8] sm:$0xff] %v727
                  %v729 = vld [vmem:[%s675 + $0x1a0] sm:$0xff]
                  %730 = vst [vmem:[%s676 + $0xd0] sm:$0xff] %v729
                  %v731 = vld [vmem:[%s675 + $0x1b0] sm:$0xff]
                  %732 = vst [vmem:[%s676 + $0xd8] sm:$0xff] %v731
                  %v733 = vld [vmem:[%s675 + $0x1c0] sm:$0xff]
                  %734 = vst [vmem:[%s676 + $0xe0] sm:$0xff] %v733
                  %v735 = vld [vmem:[%s675 + $0x1d0] sm:$0xff]
                  %736 = vst [vmem:[%s676 + $0xe8] sm:$0xff] %v735
                  %v737 = vld [vmem:[%s675 + $0x1e0] sm:$0xff]
                  %738 = vst [vmem:[%s676 + $0xf0] sm:$0xff] %v737
                  %v739 = vld [vmem:[%s675 + $0x1f0] sm:$0xff]
                  %740 = vst [vmem:[%s676 + $0xf8] sm:$0xff] %v739
                  %v741 = vld [vmem:[%s675 + $0x200] sm:$0xff]
                  %742 = vst [vmem:[%s676 + $0x100] sm:$0xff] %v741
                  %v743 = vld [vmem:[%s675 + $0x210] sm:$0xff]
                  %744 = vst [vmem:[%s676 + $0x108] sm:$0xff] %v743
                  %v745 = vld [vmem:[%s675 + $0x220] sm:$0xff]
                  %746 = vst [vmem:[%s676 + $0x110] sm:$0xff] %v745
                  %v747 = vld [vmem:[%s675 + $0x230] sm:$0xff]
                  %748 = vst [vmem:[%s676 + $0x118] sm:$0xff] %v747
                  %v749 = vld [vmem:[%s675 + $0x240] sm:$0xff]
                  %750 = vst [vmem:[%s676 + $0x120] sm:$0xff] %v749
                  %v751 = vld [vmem:[%s675 + $0x250] sm:$0xff]
                  %752 = vst [vmem:[%s676 + $0x128] sm:$0xff] %v751
                  %v753 = vld [vmem:[%s675 + $0x260] sm:$0xff]
                  %754 = vst [vmem:[%s676 + $0x130] sm:$0xff] %v753
                  %v755 = vld [vmem:[%s675 + $0x270] sm:$0xff]
                  %756 = vst [vmem:[%s676 + $0x138] sm:$0xff] %v755
                  %v757 = vld [vmem:[%s675 + $0x280] sm:$0xff]
                  %758 = vst [vmem:[%s676 + $0x140] sm:$0xff] %v757
                  %v759 = vld [vmem:[%s675 + $0x290] sm:$0xff]
                  %760 = vst [vmem:[%s676 + $0x148] sm:$0xff] %v759
                  %v761 = vld [vmem:[%s675 + $0x2a0] sm:$0xff]
                  %762 = vst [vmem:[%s676 + $0x150] sm:$0xff] %v761
                  %v763 = vld [vmem:[%s675 + $0x2b0] sm:$0xff]
                  %764 = vst [vmem:[%s676 + $0x158] sm:$0xff] %v763
                  %v765 = vld [vmem:[%s675 + $0x2c0] sm:$0xff]
                  %766 = vst [vmem:[%s676 + $0x160] sm:$0xff] %v765
                  %v767 = vld [vmem:[%s675 + $0x2d0] sm:$0xff]
                  %768 = vst [vmem:[%s676 + $0x168] sm:$0xff] %v767
                  %v769 = vld [vmem:[%s675 + $0x2e0] sm:$0xff]
                  %770 = vst [vmem:[%s676 + $0x170] sm:$0xff] %v769
                  %v771 = vld [vmem:[%s675 + $0x2f0] sm:$0xff]
                  %772 = vst [vmem:[%s676 + $0x178] sm:$0xff] %v771
                  %v773 = vld [vmem:[%s675 + $0x300] sm:$0xff]
                  %774 = vst [vmem:[%s676 + $0x180] sm:$0xff] %v773
                  %v775 = vld [vmem:[%s675 + $0x310] sm:$0xff]
                  %776 = vst [vmem:[%s676 + $0x188] sm:$0xff] %v775
                  %v777 = vld [vmem:[%s675 + $0x320] sm:$0xff]
                  %778 = vst [vmem:[%s676 + $0x190] sm:$0xff] %v777
                  %v779 = vld [vmem:[%s675 + $0x330] sm:$0xff]
                  %780 = vst [vmem:[%s676 + $0x198] sm:$0xff] %v779
                  %v781 = vld [vmem:[%s675 + $0x340] sm:$0xff]
                  %782 = vst [vmem:[%s676 + $0x1a0] sm:$0xff] %v781
                  %v783 = vld [vmem:[%s675 + $0x350] sm:$0xff]
                  %784 = vst [vmem:[%s676 + $0x1a8] sm:$0xff] %v783
                  %v785 = vld [vmem:[%s675 + $0x360] sm:$0xff]
                  %786 = vst [vmem:[%s676 + $0x1b0] sm:$0xff] %v785
                  %v787 = vld [vmem:[%s675 + $0x370] sm:$0xff]
                  %788 = vst [vmem:[%s676 + $0x1b8] sm:$0xff] %v787
                  %v789 = vld [vmem:[%s675 + $0x380] sm:$0xff]
                  %790 = vst [vmem:[%s676 + $0x1c0] sm:$0xff] %v789
                  %v791 = vld [vmem:[%s675 + $0x390] sm:$0xff]
                  %792 = vst [vmem:[%s676 + $0x1c8] sm:$0xff] %v791
                  %v793 = vld [vmem:[%s675 + $0x3a0] sm:$0xff]
                  %794 = vst [vmem:[%s676 + $0x1d0] sm:$0xff] %v793
                  %v795 = vld [vmem:[%s675 + $0x3b0] sm:$0xff]
                  %796 = vst [vmem:[%s676 + $0x1d8] sm:$0xff] %v795
                  %v797 = vld [vmem:[%s675 + $0x3c0] sm:$0xff]
                  %798 = vst [vmem:[%s676 + $0x1e0] sm:$0xff] %v797
                  %v799 = vld [vmem:[%s675 + $0x3d0] sm:$0xff]
                  %800 = vst [vmem:[%s676 + $0x1e8] sm:$0xff] %v799
                  %v801 = vld [vmem:[%s675 + $0x3e0] sm:$0xff]
                  %802 = vst [vmem:[%s676 + $0x1f0] sm:$0xff] %v801
                  %v803 = vld [vmem:[%s675 + $0x3f0] sm:$0xff]
                  %804 = vst [vmem:[%s676 + $0x1f8] sm:$0xff] %v803
                  %v805 = vld [vmem:[%s675 + $0x400] sm:$0xff]
                  %806 = vst [vmem:[%s676 + $0x200] sm:$0xff] %v805
                  %v807 = vld [vmem:[%s675 + $0x410] sm:$0xff]
                  %808 = vst [vmem:[%s676 + $0x208] sm:$0xff] %v807
                  %v809 = vld [vmem:[%s675 + $0x420] sm:$0xff]
                  %810 = vst [vmem:[%s676 + $0x210] sm:$0xff] %v809
                  %v811 = vld [vmem:[%s675 + $0x430] sm:$0xff]
                  %812 = vst [vmem:[%s676 + $0x218] sm:$0xff] %v811
                  %v813 = vld [vmem:[%s675 + $0x440] sm:$0xff]
                  %814 = vst [vmem:[%s676 + $0x220] sm:$0xff] %v813
                  %v815 = vld [vmem:[%s675 + $0x450] sm:$0xff]
                  %816 = vst [vmem:[%s676 + $0x228] sm:$0xff] %v815
                  %v817 = vld [vmem:[%s675 + $0x460] sm:$0xff]
                  %818 = vst [vmem:[%s676 + $0x230] sm:$0xff] %v817
                  %v819 = vld [vmem:[%s675 + $0x470] sm:$0xff]
                  %820 = vst [vmem:[%s676 + $0x238] sm:$0xff] %v819
                  %v821 = vld [vmem:[%s675 + $0x480] sm:$0xff]
                  %822 = vst [vmem:[%s676 + $0x240] sm:$0xff] %v821
                  %v823 = vld [vmem:[%s675 + $0x490] sm:$0xff]
                  %824 = vst [vmem:[%s676 + $0x248] sm:$0xff] %v823
                  %v825 = vld [vmem:[%s675 + $0x4a0] sm:$0xff]
                  %826 = vst [vmem:[%s676 + $0x250] sm:$0xff] %v825
                  %v827 = vld [vmem:[%s675 + $0x4b0] sm:$0xff]
                  %828 = vst [vmem:[%s676 + $0x258] sm:$0xff] %v827
                  %v829 = vld [vmem:[%s675 + $0x4c0] sm:$0xff]
                  %830 = vst [vmem:[%s676 + $0x260] sm:$0xff] %v829
                  %v831 = vld [vmem:[%s675 + $0x4d0] sm:$0xff]
                  %832 = vst [vmem:[%s676 + $0x268] sm:$0xff] %v831
                  %v833 = vld [vmem:[%s675 + $0x4e0] sm:$0xff]
                  %834 = vst [vmem:[%s676 + $0x270] sm:$0xff] %v833
                  %v835 = vld [vmem:[%s675 + $0x4f0] sm:$0xff]
                  %836 = vst [vmem:[%s676 + $0x278] sm:$0xff] %v835
                  %v837 = vld [vmem:[%s675 + $0x500] sm:$0xff]
                  %838 = vst [vmem:[%s676 + $0x280] sm:$0xff] %v837
                  %v839 = vld [vmem:[%s675 + $0x510] sm:$0xff]
                  %840 = vst [vmem:[%s676 + $0x288] sm:$0xff] %v839
                  %v841 = vld [vmem:[%s675 + $0x520] sm:$0xff]
                  %842 = vst [vmem:[%s676 + $0x290] sm:$0xff] %v841
                  %v843 = vld [vmem:[%s675 + $0x530] sm:$0xff]
                  %844 = vst [vmem:[%s676 + $0x298] sm:$0xff] %v843
                  %v845 = vld [vmem:[%s675 + $0x540] sm:$0xff]
                  %846 = vst [vmem:[%s676 + $0x2a0] sm:$0xff] %v845
                  %v847 = vld [vmem:[%s675 + $0x550] sm:$0xff]
                  %848 = vst [vmem:[%s676 + $0x2a8] sm:$0xff] %v847
                  %v849 = vld [vmem:[%s675 + $0x560] sm:$0xff]
                  %850 = vst [vmem:[%s676 + $0x2b0] sm:$0xff] %v849
                  %v851 = vld [vmem:[%s675 + $0x570] sm:$0xff]
                  %852 = vst [vmem:[%s676 + $0x2b8] sm:$0xff] %v851
                  %v853 = vld [vmem:[%s675 + $0x580] sm:$0xff]
                  %854 = vst [vmem:[%s676 + $0x2c0] sm:$0xff] %v853
                  %v855 = vld [vmem:[%s675 + $0x590] sm:$0xff]
                  %856 = vst [vmem:[%s676 + $0x2c8] sm:$0xff] %v855
                  %v857 = vld [vmem:[%s675 + $0x5a0] sm:$0xff]
                  %858 = vst [vmem:[%s676 + $0x2d0] sm:$0xff] %v857
                  %v859 = vld [vmem:[%s675 + $0x5b0] sm:$0xff]
                  %860 = vst [vmem:[%s676 + $0x2d8] sm:$0xff] %v859
                  %v861 = vld [vmem:[%s675 + $0x5c0] sm:$0xff]
                  %862 = vst [vmem:[%s676 + $0x2e0] sm:$0xff] %v861
                  %v863 = vld [vmem:[%s675 + $0x5d0] sm:$0xff]
                  %864 = vst [vmem:[%s676 + $0x2e8] sm:$0xff] %v863
                  %v865 = vld [vmem:[%s675 + $0x5e0] sm:$0xff]
                  %866 = vst [vmem:[%s676 + $0x2f0] sm:$0xff] %v865
                  %v867 = vld [vmem:[%s675 + $0x5f0] sm:$0xff]
                  %868 = vst [vmem:[%s676 + $0x2f8] sm:$0xff] %v867
                  %v869 = vld [vmem:[%s675 + $0x600] sm:$0xff]
                  %870 = vst [vmem:[%s676 + $0x300] sm:$0xff] %v869
                  %v871 = vld [vmem:[%s675 + $0x610] sm:$0xff]
                  %872 = vst [vmem:[%s676 + $0x308] sm:$0xff] %v871
                  %v873 = vld [vmem:[%s675 + $0x620] sm:$0xff]
                  %874 = vst [vmem:[%s676 + $0x310] sm:$0xff] %v873
                  %v875 = vld [vmem:[%s675 + $0x630] sm:$0xff]
                  %876 = vst [vmem:[%s676 + $0x318] sm:$0xff] %v875
                  %v877 = vld [vmem:[%s675 + $0x640] sm:$0xff]
                  %878 = vst [vmem:[%s676 + $0x320] sm:$0xff] %v877
                  %v879 = vld [vmem:[%s675 + $0x650] sm:$0xff]
                  %880 = vst [vmem:[%s676 + $0x328] sm:$0xff] %v879
                  %v881 = vld [vmem:[%s675 + $0x660] sm:$0xff]
                  %882 = vst [vmem:[%s676 + $0x330] sm:$0xff] %v881
                  %v883 = vld [vmem:[%s675 + $0x670] sm:$0xff]
                  %884 = vst [vmem:[%s676 + $0x338] sm:$0xff] %v883
                  %v885 = vld [vmem:[%s675 + $0x680] sm:$0xff]
                  %886 = vst [vmem:[%s676 + $0x340] sm:$0xff] %v885
                  %v887 = vld [vmem:[%s675 + $0x690] sm:$0xff]
                  %888 = vst [vmem:[%s676 + $0x348] sm:$0xff] %v887
                  %v889 = vld [vmem:[%s675 + $0x6a0] sm:$0xff]
                  %890 = vst [vmem:[%s676 + $0x350] sm:$0xff] %v889
                  %v891 = vld [vmem:[%s675 + $0x6b0] sm:$0xff]
                  %892 = vst [vmem:[%s676 + $0x358] sm:$0xff] %v891
                  %v893 = vld [vmem:[%s675 + $0x6c0] sm:$0xff]
                  %894 = vst [vmem:[%s676 + $0x360] sm:$0xff] %v893
                  %v895 = vld [vmem:[%s675 + $0x6d0] sm:$0xff]
                  %896 = vst [vmem:[%s676 + $0x368] sm:$0xff] %v895
                  %v897 = vld [vmem:[%s675 + $0x6e0] sm:$0xff]
                  %898 = vst [vmem:[%s676 + $0x370] sm:$0xff] %v897
                  %v899 = vld [vmem:[%s675 + $0x6f0] sm:$0xff]
                  %900 = vst [vmem:[%s676 + $0x378] sm:$0xff] %v899
                  %v901 = vld [vmem:[%s675 + $0x700] sm:$0xff]
                  %902 = vst [vmem:[%s676 + $0x380] sm:$0xff] %v901
                  %v903 = vld [vmem:[%s675 + $0x710] sm:$0xff]
                  %904 = vst [vmem:[%s676 + $0x388] sm:$0xff] %v903
                  %v905 = vld [vmem:[%s675 + $0x720] sm:$0xff]
                  %906 = vst [vmem:[%s676 + $0x390] sm:$0xff] %v905
                  %v907 = vld [vmem:[%s675 + $0x730] sm:$0xff]
                  %908 = vst [vmem:[%s676 + $0x398] sm:$0xff] %v907
                  %v909 = vld [vmem:[%s675 + $0x740] sm:$0xff]
                  %910 = vst [vmem:[%s676 + $0x3a0] sm:$0xff] %v909
                  %v911 = vld [vmem:[%s675 + $0x750] sm:$0xff]
                  %912 = vst [vmem:[%s676 + $0x3a8] sm:$0xff] %v911
                  %v913 = vld [vmem:[%s675 + $0x760] sm:$0xff]
                  %914 = vst [vmem:[%s676 + $0x3b0] sm:$0xff] %v913
                  %v915 = vld [vmem:[%s675 + $0x770] sm:$0xff]
                  %916 = vst [vmem:[%s676 + $0x3b8] sm:$0xff] %v915
                  %v917 = vld [vmem:[%s675 + $0x780] sm:$0xff]
                  %918 = vst [vmem:[%s676 + $0x3c0] sm:$0xff] %v917
                  %v919 = vld [vmem:[%s675 + $0x790] sm:$0xff]
                  %920 = vst [vmem:[%s676 + $0x3c8] sm:$0xff] %v919
                  %v921 = vld [vmem:[%s675 + $0x7a0] sm:$0xff]
                  %922 = vst [vmem:[%s676 + $0x3d0] sm:$0xff] %v921
                  %v923 = vld [vmem:[%s675 + $0x7b0] sm:$0xff]
                  %924 = vst [vmem:[%s676 + $0x3d8] sm:$0xff] %v923
                  %v925 = vld [vmem:[%s675 + $0x7c0] sm:$0xff]
                  %926 = vst [vmem:[%s676 + $0x3e0] sm:$0xff] %v925
                  %v927 = vld [vmem:[%s675 + $0x7d0] sm:$0xff]
                  %928 = vst [vmem:[%s676 + $0x3e8] sm:$0xff] %v927
                  %v929 = vld [vmem:[%s675 + $0x7e0] sm:$0xff]
                  %930 = vst [vmem:[%s676 + $0x3f0] sm:$0xff] %v929
                  %v931 = vld [vmem:[%s675 + $0x7f0] sm:$0xff]
                  %932 = vst [vmem:[%s676 + $0x3f8] sm:$0xff] %v931
                  %v933 = vld [vmem:[%s675 + $0x800] sm:$0xff]
                  %934 = vst [vmem:[%s676 + $0x400] sm:$0xff] %v933
                  %v935 = vld [vmem:[%s675 + $0x810] sm:$0xff]
                  %936 = vst [vmem:[%s676 + $0x408] sm:$0xff] %v935
                  %v937 = vld [vmem:[%s675 + $0x820] sm:$0xff]
                  %938 = vst [vmem:[%s676 + $0x410] sm:$0xff] %v937
                  %v939 = vld [vmem:[%s675 + $0x830] sm:$0xff]
                  %940 = vst [vmem:[%s676 + $0x418] sm:$0xff] %v939
                  %v941 = vld [vmem:[%s675 + $0x840] sm:$0xff]
                  %942 = vst [vmem:[%s676 + $0x420] sm:$0xff] %v941
                  %v943 = vld [vmem:[%s675 + $0x850] sm:$0xff]
                  %944 = vst [vmem:[%s676 + $0x428] sm:$0xff] %v943
                  %v945 = vld [vmem:[%s675 + $0x860] sm:$0xff]
                  %946 = vst [vmem:[%s676 + $0x430] sm:$0xff] %v945
                  %v947 = vld [vmem:[%s675 + $0x870] sm:$0xff]
                  %948 = vst [vmem:[%s676 + $0x438] sm:$0xff] %v947
                  %v949 = vld [vmem:[%s675 + $0x880] sm:$0xff]
                  %950 = vst [vmem:[%s676 + $0x440] sm:$0xff] %v949
                  %v951 = vld [vmem:[%s675 + $0x890] sm:$0xff]
                  %952 = vst [vmem:[%s676 + $0x448] sm:$0xff] %v951
                  %v953 = vld [vmem:[%s675 + $0x8a0] sm:$0xff]
                  %954 = vst [vmem:[%s676 + $0x450] sm:$0xff] %v953
                  %v955 = vld [vmem:[%s675 + $0x8b0] sm:$0xff]
                  %956 = vst [vmem:[%s676 + $0x458] sm:$0xff] %v955
                  %v957 = vld [vmem:[%s675 + $0x8c0] sm:$0xff]
                  %958 = vst [vmem:[%s676 + $0x460] sm:$0xff] %v957
                  %v959 = vld [vmem:[%s675 + $0x8d0] sm:$0xff]
                  %960 = vst [vmem:[%s676 + $0x468] sm:$0xff] %v959
                  %v961 = vld [vmem:[%s675 + $0x8e0] sm:$0xff]
                  %962 = vst [vmem:[%s676 + $0x470] sm:$0xff] %v961
                  %v963 = vld [vmem:[%s675 + $0x8f0] sm:$0xff]
                  %964 = vst [vmem:[%s676 + $0x478] sm:$0xff] %v963
                  %v965 = vld [vmem:[%s675 + $0x900] sm:$0xff]
                  %966 = vst [vmem:[%s676 + $0x480] sm:$0xff] %v965
                  %v967 = vld [vmem:[%s675 + $0x910] sm:$0xff]
                  %968 = vst [vmem:[%s676 + $0x488] sm:$0xff] %v967
                  %v969 = vld [vmem:[%s675 + $0x920] sm:$0xff]
                  %970 = vst [vmem:[%s676 + $0x490] sm:$0xff] %v969
                  %v971 = vld [vmem:[%s675 + $0x930] sm:$0xff]
                  %972 = vst [vmem:[%s676 + $0x498] sm:$0xff] %v971
                  %v973 = vld [vmem:[%s675 + $0x940] sm:$0xff]
                  %974 = vst [vmem:[%s676 + $0x4a0] sm:$0xff] %v973
                  %v975 = vld [vmem:[%s675 + $0x950] sm:$0xff]
                  %976 = vst [vmem:[%s676 + $0x4a8] sm:$0xff] %v975
                  %v977 = vld [vmem:[%s675 + $0x960] sm:$0xff]
                  %978 = vst [vmem:[%s676 + $0x4b0] sm:$0xff] %v977
                  %v979 = vld [vmem:[%s675 + $0x970] sm:$0xff]
                  %980 = vst [vmem:[%s676 + $0x4b8] sm:$0xff] %v979
                  %v981 = vld [vmem:[%s675 + $0x980] sm:$0xff]
                  %982 = vst [vmem:[%s676 + $0x4c0] sm:$0xff] %v981
                  %v983 = vld [vmem:[%s675 + $0x990] sm:$0xff]
                  %984 = vst [vmem:[%s676 + $0x4c8] sm:$0xff] %v983
                  %v985 = vld [vmem:[%s675 + $0x9a0] sm:$0xff]
                  %986 = vst [vmem:[%s676 + $0x4d0] sm:$0xff] %v985
                  %v987 = vld [vmem:[%s675 + $0x9b0] sm:$0xff]
                  %988 = vst [vmem:[%s676 + $0x4d8] sm:$0xff] %v987
                  %v989 = vld [vmem:[%s675 + $0x9c0] sm:$0xff]
                  %990 = vst [vmem:[%s676 + $0x4e0] sm:$0xff] %v989
                  %v991 = vld [vmem:[%s675 + $0x9d0] sm:$0xff]
                  %992 = vst [vmem:[%s676 + $0x4e8] sm:$0xff] %v991
                  %v993 = vld [vmem:[%s675 + $0x9e0] sm:$0xff]
                  %994 = vst [vmem:[%s676 + $0x4f0] sm:$0xff] %v993
                  %v995 = vld [vmem:[%s675 + $0x9f0] sm:$0xff]
                  %996 = vst [vmem:[%s676 + $0x4f8] sm:$0xff] %v995
                  %v997 = vld [vmem:[%s675 + $0xa00] sm:$0xff]
                  %998 = vst [vmem:[%s676 + $0x500] sm:$0xff] %v997
                  %v999 = vld [vmem:[%s675 + $0xa10] sm:$0xff]
                  %1000 = vst [vmem:[%s676 + $0x508] sm:$0xff] %v999
                  %v1001 = vld [vmem:[%s675 + $0xa20] sm:$0xff]
                  %1002 = vst [vmem:[%s676 + $0x510] sm:$0xff] %v1001
                  %v1003 = vld [vmem:[%s675 + $0xa30] sm:$0xff]
                  %1004 = vst [vmem:[%s676 + $0x518] sm:$0xff] %v1003
                  %v1005 = vld [vmem:[%s675 + $0xa40] sm:$0xff]
                  %1006 = vst [vmem:[%s676 + $0x520] sm:$0xff] %v1005
                  %v1007 = vld [vmem:[%s675 + $0xa50] sm:$0xff]
                  %1008 = vst [vmem:[%s676 + $0x528] sm:$0xff] %v1007
                  %v1009 = vld [vmem:[%s675 + $0xa60] sm:$0xff]
                  %1010 = vst [vmem:[%s676 + $0x530] sm:$0xff] %v1009
                  %v1011 = vld [vmem:[%s675 + $0xa70] sm:$0xff]
                  %1012 = vst [vmem:[%s676 + $0x538] sm:$0xff] %v1011
                  %v1013 = vld [vmem:[%s675 + $0xa80] sm:$0xff]
                  %1014 = vst [vmem:[%s676 + $0x540] sm:$0xff] %v1013
                  %v1015 = vld [vmem:[%s675 + $0xa90] sm:$0xff]
                  %1016 = vst [vmem:[%s676 + $0x548] sm:$0xff] %v1015
                  %v1017 = vld [vmem:[%s675 + $0xaa0] sm:$0xff]
                  %1018 = vst [vmem:[%s676 + $0x550] sm:$0xff] %v1017
                  %v1019 = vld [vmem:[%s675 + $0xab0] sm:$0xff]
                  %1020 = vst [vmem:[%s676 + $0x558] sm:$0xff] %v1019
                  %v1021 = vld [vmem:[%s675 + $0xac0] sm:$0xff]
                  %1022 = vst [vmem:[%s676 + $0x560] sm:$0xff] %v1021
                  %v1023 = vld [vmem:[%s675 + $0xad0] sm:$0xff]
                  %1024 = vst [vmem:[%s676 + $0x568] sm:$0xff] %v1023
                  %v1025 = vld [vmem:[%s675 + $0xae0] sm:$0xff]
                  %1026 = vst [vmem:[%s676 + $0x570] sm:$0xff] %v1025
                  %v1027 = vld [vmem:[%s675 + $0xaf0] sm:$0xff]
                  %1028 = vst [vmem:[%s676 + $0x578] sm:$0xff] %v1027
                  %v1029 = vld [vmem:[%s675 + $0xb00] sm:$0xff]
                  %1030 = vst [vmem:[%s676 + $0x580] sm:$0xff] %v1029
                  %v1031 = vld [vmem:[%s675 + $0xb10] sm:$0xff]
                  %1032 = vst [vmem:[%s676 + $0x588] sm:$0xff] %v1031
                  %v1033 = vld [vmem:[%s675 + $0xb20] sm:$0xff]
                  %1034 = vst [vmem:[%s676 + $0x590] sm:$0xff] %v1033
                  %v1035 = vld [vmem:[%s675 + $0xb30] sm:$0xff]
                  %1036 = vst [vmem:[%s676 + $0x598] sm:$0xff] %v1035
                  %v1037 = vld [vmem:[%s675 + $0xb40] sm:$0xff]
                  %1038 = vst [vmem:[%s676 + $0x5a0] sm:$0xff] %v1037
                  %v1039 = vld [vmem:[%s675 + $0xb50] sm:$0xff]
                  %1040 = vst [vmem:[%s676 + $0x5a8] sm:$0xff] %v1039
                  %v1041 = vld [vmem:[%s675 + $0xb60] sm:$0xff]
                  %1042 = vst [vmem:[%s676 + $0x5b0] sm:$0xff] %v1041
                  %v1043 = vld [vmem:[%s675 + $0xb70] sm:$0xff]
                  %1044 = vst [vmem:[%s676 + $0x5b8] sm:$0xff] %v1043
                  %v1045 = vld [vmem:[%s675 + $0xb80] sm:$0xff]
                  %1046 = vst [vmem:[%s676 + $0x5c0] sm:$0xff] %v1045
                  %v1047 = vld [vmem:[%s675 + $0xb90] sm:$0xff]
                  %1048 = vst [vmem:[%s676 + $0x5c8] sm:$0xff] %v1047
                  %v1049 = vld [vmem:[%s675 + $0xba0] sm:$0xff]
                  %1050 = vst [vmem:[%s676 + $0x5d0] sm:$0xff] %v1049
                  %v1051 = vld [vmem:[%s675 + $0xbb0] sm:$0xff]
                  %1052 = vst [vmem:[%s676 + $0x5d8] sm:$0xff] %v1051
                  %v1053 = vld [vmem:[%s675 + $0xbc0] sm:$0xff]
                  %1054 = vst [vmem:[%s676 + $0x5e0] sm:$0xff] %v1053
                  %v1055 = vld [vmem:[%s675 + $0xbd0] sm:$0xff]
                  %1056 = vst [vmem:[%s676 + $0x5e8] sm:$0xff] %v1055
                  %v1057 = vld [vmem:[%s675 + $0xbe0] sm:$0xff]
                  %1058 = vst [vmem:[%s676 + $0x5f0] sm:$0xff] %v1057
                  %v1059 = vld [vmem:[%s675 + $0xbf0] sm:$0xff]
                  %1060 = vst [vmem:[%s676 + $0x5f8] sm:$0xff] %v1059
                  %v1061 = vld [vmem:[%s675 + $0xc00] sm:$0xff]
                  %1062 = vst [vmem:[%s676 + $0x600] sm:$0xff] %v1061
                  %v1063 = vld [vmem:[%s675 + $0xc10] sm:$0xff]
                  %1064 = vst [vmem:[%s676 + $0x608] sm:$0xff] %v1063
                  %v1065 = vld [vmem:[%s675 + $0xc20] sm:$0xff]
                  %1066 = vst [vmem:[%s676 + $0x610] sm:$0xff] %v1065
                  %v1067 = vld [vmem:[%s675 + $0xc30] sm:$0xff]
                  %1068 = vst [vmem:[%s676 + $0x618] sm:$0xff] %v1067
                  %v1069 = vld [vmem:[%s675 + $0xc40] sm:$0xff]
                  %1070 = vst [vmem:[%s676 + $0x620] sm:$0xff] %v1069
                  %v1071 = vld [vmem:[%s675 + $0xc50] sm:$0xff]
                  %1072 = vst [vmem:[%s676 + $0x628] sm:$0xff] %v1071
                  %v1073 = vld [vmem:[%s675 + $0xc60] sm:$0xff]
                  %1074 = vst [vmem:[%s676 + $0x630] sm:$0xff] %v1073
                  %v1075 = vld [vmem:[%s675 + $0xc70] sm:$0xff]
                  %1076 = vst [vmem:[%s676 + $0x638] sm:$0xff] %v1075
                  %v1077 = vld [vmem:[%s675 + $0xc80] sm:$0xff]
                  %1078 = vst [vmem:[%s676 + $0x640] sm:$0xff] %v1077
                  %v1079 = vld [vmem:[%s675 + $0xc90] sm:$0xff]
                  %1080 = vst [vmem:[%s676 + $0x648] sm:$0xff] %v1079
                  %v1081 = vld [vmem:[%s675 + $0xca0] sm:$0xff]
                  %1082 = vst [vmem:[%s676 + $0x650] sm:$0xff] %v1081
                  %v1083 = vld [vmem:[%s675 + $0xcb0] sm:$0xff]
                  %1084 = vst [vmem:[%s676 + $0x658] sm:$0xff] %v1083
                  %v1085 = vld [vmem:[%s675 + $0xcc0] sm:$0xff]
                  %1086 = vst [vmem:[%s676 + $0x660] sm:$0xff] %v1085
                  %v1087 = vld [vmem:[%s675 + $0xcd0] sm:$0xff]
                  %1088 = vst [vmem:[%s676 + $0x668] sm:$0xff] %v1087
                  %v1089 = vld [vmem:[%s675 + $0xce0] sm:$0xff]
                  %1090 = vst [vmem:[%s676 + $0x670] sm:$0xff] %v1089
                  %v1091 = vld [vmem:[%s675 + $0xcf0] sm:$0xff]
                  %1092 = vst [vmem:[%s676 + $0x678] sm:$0xff] %v1091
                  %v1093 = vld [vmem:[%s675 + $0xd00] sm:$0xff]
                  %1094 = vst [vmem:[%s676 + $0x680] sm:$0xff] %v1093
                  %v1095 = vld [vmem:[%s675 + $0xd10] sm:$0xff]
                  %1096 = vst [vmem:[%s676 + $0x688] sm:$0xff] %v1095
                  %v1097 = vld [vmem:[%s675 + $0xd20] sm:$0xff]
                  %1098 = vst [vmem:[%s676 + $0x690] sm:$0xff] %v1097
                  %v1099 = vld [vmem:[%s675 + $0xd30] sm:$0xff]
                  %1100 = vst [vmem:[%s676 + $0x698] sm:$0xff] %v1099
                  %v1101 = vld [vmem:[%s675 + $0xd40] sm:$0xff]
                  %1102 = vst [vmem:[%s676 + $0x6a0] sm:$0xff] %v1101
                  %v1103 = vld [vmem:[%s675 + $0xd50] sm:$0xff]
                  %1104 = vst [vmem:[%s676 + $0x6a8] sm:$0xff] %v1103
                  %v1105 = vld [vmem:[%s675 + $0xd60] sm:$0xff]
                  %1106 = vst [vmem:[%s676 + $0x6b0] sm:$0xff] %v1105
                  %v1107 = vld [vmem:[%s675 + $0xd70] sm:$0xff]
                  %1108 = vst [vmem:[%s676 + $0x6b8] sm:$0xff] %v1107
                  %v1109 = vld [vmem:[%s675 + $0xd80] sm:$0xff]
                  %1110 = vst [vmem:[%s676 + $0x6c0] sm:$0xff] %v1109
                  %v1111 = vld [vmem:[%s675 + $0xd90] sm:$0xff]
                  %1112 = vst [vmem:[%s676 + $0x6c8] sm:$0xff] %v1111
                  %v1113 = vld [vmem:[%s675 + $0xda0] sm:$0xff]
                  %1114 = vst [vmem:[%s676 + $0x6d0] sm:$0xff] %v1113
                  %v1115 = vld [vmem:[%s675 + $0xdb0] sm:$0xff]
                  %1116 = vst [vmem:[%s676 + $0x6d8] sm:$0xff] %v1115
                  %v1117 = vld [vmem:[%s675 + $0xdc0] sm:$0xff]
                  %1118 = vst [vmem:[%s676 + $0x6e0] sm:$0xff] %v1117
                  %v1119 = vld [vmem:[%s675 + $0xdd0] sm:$0xff]
                  %1120 = vst [vmem:[%s676 + $0x6e8] sm:$0xff] %v1119
                  %v1121 = vld [vmem:[%s675 + $0xde0] sm:$0xff]
                  %1122 = vst [vmem:[%s676 + $0x6f0] sm:$0xff] %v1121
                  %v1123 = vld [vmem:[%s675 + $0xdf0] sm:$0xff]
                  %1124 = vst [vmem:[%s676 + $0x6f8] sm:$0xff] %v1123
                  %v1125 = vld [vmem:[%s675 + $0xe00] sm:$0xff]
                  %1126 = vst [vmem:[%s676 + $0x700] sm:$0xff] %v1125
                  %v1127 = vld [vmem:[%s675 + $0xe10] sm:$0xff]
                  %1128 = vst [vmem:[%s676 + $0x708] sm:$0xff] %v1127
                  %v1129 = vld [vmem:[%s675 + $0xe20] sm:$0xff]
                  %1130 = vst [vmem:[%s676 + $0x710] sm:$0xff] %v1129
                  %v1131 = vld [vmem:[%s675 + $0xe30] sm:$0xff]
                  %1132 = vst [vmem:[%s676 + $0x718] sm:$0xff] %v1131
                  %v1133 = vld [vmem:[%s675 + $0xe40] sm:$0xff]
                  %1134 = vst [vmem:[%s676 + $0x720] sm:$0xff] %v1133
                  %v1135 = vld [vmem:[%s675 + $0xe50] sm:$0xff]
                  %1136 = vst [vmem:[%s676 + $0x728] sm:$0xff] %v1135
                  %v1137 = vld [vmem:[%s675 + $0xe60] sm:$0xff]
                  %1138 = vst [vmem:[%s676 + $0x730] sm:$0xff] %v1137
                  %v1139 = vld [vmem:[%s675 + $0xe70] sm:$0xff]
                  %1140 = vst [vmem:[%s676 + $0x738] sm:$0xff] %v1139
                  %v1141 = vld [vmem:[%s675 + $0xe80] sm:$0xff]
                  %1142 = vst [vmem:[%s676 + $0x740] sm:$0xff] %v1141
                  %v1143 = vld [vmem:[%s675 + $0xe90] sm:$0xff]
                  %1144 = vst [vmem:[%s676 + $0x748] sm:$0xff] %v1143
                  %v1145 = vld [vmem:[%s675 + $0xea0] sm:$0xff]
                  %1146 = vst [vmem:[%s676 + $0x750] sm:$0xff] %v1145
                  %v1147 = vld [vmem:[%s675 + $0xeb0] sm:$0xff]
                  %1148 = vst [vmem:[%s676 + $0x758] sm:$0xff] %v1147
                  %v1149 = vld [vmem:[%s675 + $0xec0] sm:$0xff]
                  %1150 = vst [vmem:[%s676 + $0x760] sm:$0xff] %v1149
                  %v1151 = vld [vmem:[%s675 + $0xed0] sm:$0xff]
                  %1152 = vst [vmem:[%s676 + $0x768] sm:$0xff] %v1151
                  %v1153 = vld [vmem:[%s675 + $0xee0] sm:$0xff]
                  %1154 = vst [vmem:[%s676 + $0x770] sm:$0xff] %v1153
                  %v1155 = vld [vmem:[%s675 + $0xef0] sm:$0xff]
                  %1156 = vst [vmem:[%s676 + $0x778] sm:$0xff] %v1155
                  %v1157 = vld [vmem:[%s675 + $0xf00] sm:$0xff]
                  %1158 = vst [vmem:[%s676 + $0x780] sm:$0xff] %v1157
                  %v1159 = vld [vmem:[%s675 + $0xf10] sm:$0xff]
                  %1160 = vst [vmem:[%s676 + $0x788] sm:$0xff] %v1159
                  %v1161 = vld [vmem:[%s675 + $0xf20] sm:$0xff]
                  %1162 = vst [vmem:[%s676 + $0x790] sm:$0xff] %v1161
                  %v1163 = vld [vmem:[%s675 + $0xf30] sm:$0xff]
                  %1164 = vst [vmem:[%s676 + $0x798] sm:$0xff] %v1163
                  %v1165 = vld [vmem:[%s675 + $0xf40] sm:$0xff]
                  %1166 = vst [vmem:[%s676 + $0x7a0] sm:$0xff] %v1165
                  %v1167 = vld [vmem:[%s675 + $0xf50] sm:$0xff]
                  %1168 = vst [vmem:[%s676 + $0x7a8] sm:$0xff] %v1167
                  %v1169 = vld [vmem:[%s675 + $0xf60] sm:$0xff]
                  %1170 = vst [vmem:[%s676 + $0x7b0] sm:$0xff] %v1169
                  %v1171 = vld [vmem:[%s675 + $0xf70] sm:$0xff]
                  %1172 = vst [vmem:[%s676 + $0x7b8] sm:$0xff] %v1171
                  %v1173 = vld [vmem:[%s675 + $0xf80] sm:$0xff]
                  %1174 = vst [vmem:[%s676 + $0x7c0] sm:$0xff] %v1173
                  %v1175 = vld [vmem:[%s675 + $0xf90] sm:$0xff]
                  %1176 = vst [vmem:[%s676 + $0x7c8] sm:$0xff] %v1175
                  %v1177 = vld [vmem:[%s675 + $0xfa0] sm:$0xff]
                  %1178 = vst [vmem:[%s676 + $0x7d0] sm:$0xff] %v1177
                  %v1179 = vld [vmem:[%s675 + $0xfb0] sm:$0xff]
                  %1180 = vst [vmem:[%s676 + $0x7d8] sm:$0xff] %v1179
                  %v1181 = vld [vmem:[%s675 + $0xfc0] sm:$0xff]
                  %1182 = vst [vmem:[%s676 + $0x7e0] sm:$0xff] %v1181
                  %v1183 = vld [vmem:[%s675 + $0xfd0] sm:$0xff]
                  %1184 = vst [vmem:[%s676 + $0x7e8] sm:$0xff] %v1183
                  %v1185 = vld [vmem:[%s675 + $0xfe0] sm:$0xff]
                  %1186 = vst [vmem:[%s676 + $0x7f0] sm:$0xff] %v1185
                  %v1187 = vld [vmem:[%s675 + $0xff0] sm:$0xff]
                  %1188 = vst [vmem:[%s676 + $0x7f8] sm:$0xff] %v1187
                $region52: #{pallas_linear.1} parent=46 // loop_footer
                  %s674 = sadd.s32 1, %s670
                $region53: #{pallas_linear.1} parent=46 // loop_footer_branch
                  %669 = sbr.rel target = $region49
                $region54: #{pallas_linear.1} parent=46 // loop_exit
                  _
              $region47: #{pallas_linear.1} parent=31 // pred_fallthru
                _
              // Predicated region
              $region55: #{pallas_linear.1} parent=31 // pred_check
                _
              $region56: #{pallas_linear.1} parent=31 // pred_check_branch
                %1190 = sbr.rel target = $region58
              $region57: #{pallas_linear.1} parent=31 // pred_region
                _
              $region58: #{pallas_linear.1} parent=31 // pred_fallthru
                _
            $region32: #{pallas_linear.1} parent=27 // pred_fallthru
              _
            // Predicated region
            $region33: #{pallas_linear.1} parent=27 // pred_check
              _
            $region34: #{pallas_linear.1} parent=27 // pred_check_branch
              %145 = sbr.rel target = $region36
            $region35: #{pallas_linear.1} parent=27 // pred_region
              loop: start=0, step=1, limit=1
              $region37: #{pallas_linear.1} parent=35 // loop_pre_header
                _
              $region38: #{pallas_linear.1} parent=35 // loop_header
                %s148 = sphi 0, %s152
                %p149 = scmp.ge.s32.totalorder %s148, 1
                %s153 = sphi %s139, %s139
                %s154 = sphi %s136, %s136
              $region39: #{pallas_linear.1} parent=35 // loop_header_branch
                %151 = sbr.rel (%p149) target = $region43
              $region40: #{pallas_linear.1} parent=35 // loop_body
                %v155 = vld [vmem:[%s153] sm:$0xff]
                %156 = vst [vmem:[%s154] sm:$0xff] %v155
                %v157 = vld [vmem:[%s153 + $0x10] sm:$0xff]
                %158 = vst [vmem:[%s154 + $0x8] sm:$0xff] %v157
                %v159 = vld [vmem:[%s153 + $0x20] sm:$0xff]
                %160 = vst [vmem:[%s154 + $0x10] sm:$0xff] %v159
                %v161 = vld [vmem:[%s153 + $0x30] sm:$0xff]
                %162 = vst [vmem:[%s154 + $0x18] sm:$0xff] %v161
                %v163 = vld [vmem:[%s153 + $0x40] sm:$0xff]
                %164 = vst [vmem:[%s154 + $0x20] sm:$0xff] %v163
                %v165 = vld [vmem:[%s153 + $0x50] sm:$0xff]
                %166 = vst [vmem:[%s154 + $0x28] sm:$0xff] %v165
                %v167 = vld [vmem:[%s153 + $0x60] sm:$0xff]
                %168 = vst [vmem:[%s154 + $0x30] sm:$0xff] %v167
                %v169 = vld [vmem:[%s153 + $0x70] sm:$0xff]
                %170 = vst [vmem:[%s154 + $0x38] sm:$0xff] %v169
                %v171 = vld [vmem:[%s153 + $0x80] sm:$0xff]
                %172 = vst [vmem:[%s154 + $0x40] sm:$0xff] %v171
                %v173 = vld [vmem:[%s153 + $0x90] sm:$0xff]
                %174 = vst [vmem:[%s154 + $0x48] sm:$0xff] %v173
                %v175 = vld [vmem:[%s153 + $0xa0] sm:$0xff]
                %176 = vst [vmem:[%s154 + $0x50] sm:$0xff] %v175
                %v177 = vld [vmem:[%s153 + $0xb0] sm:$0xff]
                %178 = vst [vmem:[%s154 + $0x58] sm:$0xff] %v177
                %v179 = vld [vmem:[%s153 + $0xc0] sm:$0xff]
                %180 = vst [vmem:[%s154 + $0x60] sm:$0xff] %v179
                %v181 = vld [vmem:[%s153 + $0xd0] sm:$0xff]
                %182 = vst [vmem:[%s154 + $0x68] sm:$0xff] %v181
                %v183 = vld [vmem:[%s153 + $0xe0] sm:$0xff]
                %184 = vst [vmem:[%s154 + $0x70] sm:$0xff] %v183
                %v185 = vld [vmem:[%s153 + $0xf0] sm:$0xff]
                %186 = vst [vmem:[%s154 + $0x78] sm:$0xff] %v185
                %v187 = vld [vmem:[%s153 + $0x100] sm:$0xff]
                %188 = vst [vmem:[%s154 + $0x80] sm:$0xff] %v187
                %v189 = vld [vmem:[%s153 + $0x110] sm:$0xff]
                %190 = vst [vmem:[%s154 + $0x88] sm:$0xff] %v189
                %v191 = vld [vmem:[%s153 + $0x120] sm:$0xff]
                %192 = vst [vmem:[%s154 + $0x90] sm:$0xff] %v191
                %v193 = vld [vmem:[%s153 + $0x130] sm:$0xff]
                %194 = vst [vmem:[%s154 + $0x98] sm:$0xff] %v193
                %v195 = vld [vmem:[%s153 + $0x140] sm:$0xff]
                %196 = vst [vmem:[%s154 + $0xa0] sm:$0xff] %v195
                %v197 = vld [vmem:[%s153 + $0x150] sm:$0xff]
                %198 = vst [vmem:[%s154 + $0xa8] sm:$0xff] %v197
                %v199 = vld [vmem:[%s153 + $0x160] sm:$0xff]
                %200 = vst [vmem:[%s154 + $0xb0] sm:$0xff] %v199
                %v201 = vld [vmem:[%s153 + $0x170] sm:$0xff]
                %202 = vst [vmem:[%s154 + $0xb8] sm:$0xff] %v201
                %v203 = vld [vmem:[%s153 + $0x180] sm:$0xff]
                %204 = vst [vmem:[%s154 + $0xc0] sm:$0xff] %v203
                %v205 = vld [vmem:[%s153 + $0x190] sm:$0xff]
                %206 = vst [vmem:[%s154 + $0xc8] sm:$0xff] %v205
                %v207 = vld [vmem:[%s153 + $0x1a0] sm:$0xff]
                %208 = vst [vmem:[%s154 + $0xd0] sm:$0xff] %v207
                %v209 = vld [vmem:[%s153 + $0x1b0] sm:$0xff]
                %210 = vst [vmem:[%s154 + $0xd8] sm:$0xff] %v209
                %v211 = vld [vmem:[%s153 + $0x1c0] sm:$0xff]
                %212 = vst [vmem:[%s154 + $0xe0] sm:$0xff] %v211
                %v213 = vld [vmem:[%s153 + $0x1d0] sm:$0xff]
                %214 = vst [vmem:[%s154 + $0xe8] sm:$0xff] %v213
                %v215 = vld [vmem:[%s153 + $0x1e0] sm:$0xff]
                %216 = vst [vmem:[%s154 + $0xf0] sm:$0xff] %v215
                %v217 = vld [vmem:[%s153 + $0x1f0] sm:$0xff]
                %218 = vst [vmem:[%s154 + $0xf8] sm:$0xff] %v217
                %v219 = vld [vmem:[%s153 + $0x200] sm:$0xff]
                %220 = vst [vmem:[%s154 + $0x100] sm:$0xff] %v219
                %v221 = vld [vmem:[%s153 + $0x210] sm:$0xff]
                %222 = vst [vmem:[%s154 + $0x108] sm:$0xff] %v221
                %v223 = vld [vmem:[%s153 + $0x220] sm:$0xff]
                %224 = vst [vmem:[%s154 + $0x110] sm:$0xff] %v223
                %v225 = vld [vmem:[%s153 + $0x230] sm:$0xff]
                %226 = vst [vmem:[%s154 + $0x118] sm:$0xff] %v225
                %v227 = vld [vmem:[%s153 + $0x240] sm:$0xff]
                %228 = vst [vmem:[%s154 + $0x120] sm:$0xff] %v227
                %v229 = vld [vmem:[%s153 + $0x250] sm:$0xff]
                %230 = vst [vmem:[%s154 + $0x128] sm:$0xff] %v229
                %v231 = vld [vmem:[%s153 + $0x260] sm:$0xff]
                %232 = vst [vmem:[%s154 + $0x130] sm:$0xff] %v231
                %v233 = vld [vmem:[%s153 + $0x270] sm:$0xff]
                %234 = vst [vmem:[%s154 + $0x138] sm:$0xff] %v233
                %v235 = vld [vmem:[%s153 + $0x280] sm:$0xff]
                %236 = vst [vmem:[%s154 + $0x140] sm:$0xff] %v235
                %v237 = vld [vmem:[%s153 + $0x290] sm:$0xff]
                %238 = vst [vmem:[%s154 + $0x148] sm:$0xff] %v237
                %v239 = vld [vmem:[%s153 + $0x2a0] sm:$0xff]
                %240 = vst [vmem:[%s154 + $0x150] sm:$0xff] %v239
                %v241 = vld [vmem:[%s153 + $0x2b0] sm:$0xff]
                %242 = vst [vmem:[%s154 + $0x158] sm:$0xff] %v241
                %v243 = vld [vmem:[%s153 + $0x2c0] sm:$0xff]
                %244 = vst [vmem:[%s154 + $0x160] sm:$0xff] %v243
                %v245 = vld [vmem:[%s153 + $0x2d0] sm:$0xff]
                %246 = vst [vmem:[%s154 + $0x168] sm:$0xff] %v245
                %v247 = vld [vmem:[%s153 + $0x2e0] sm:$0xff]
                %248 = vst [vmem:[%s154 + $0x170] sm:$0xff] %v247
                %v249 = vld [vmem:[%s153 + $0x2f0] sm:$0xff]
                %250 = vst [vmem:[%s154 + $0x178] sm:$0xff] %v249
                %v251 = vld [vmem:[%s153 + $0x300] sm:$0xff]
                %252 = vst [vmem:[%s154 + $0x180] sm:$0xff] %v251
                %v253 = vld [vmem:[%s153 + $0x310] sm:$0xff]
                %254 = vst [vmem:[%s154 + $0x188] sm:$0xff] %v253
                %v255 = vld [vmem:[%s153 + $0x320] sm:$0xff]
                %256 = vst [vmem:[%s154 + $0x190] sm:$0xff] %v255
                %v257 = vld [vmem:[%s153 + $0x330] sm:$0xff]
                %258 = vst [vmem:[%s154 + $0x198] sm:$0xff] %v257
                %v259 = vld [vmem:[%s153 + $0x340] sm:$0xff]
                %260 = vst [vmem:[%s154 + $0x1a0] sm:$0xff] %v259
                %v261 = vld [vmem:[%s153 + $0x350] sm:$0xff]
                %262 = vst [vmem:[%s154 + $0x1a8] sm:$0xff] %v261
                %v263 = vld [vmem:[%s153 + $0x360] sm:$0xff]
                %264 = vst [vmem:[%s154 + $0x1b0] sm:$0xff] %v263
                %v265 = vld [vmem:[%s153 + $0x370] sm:$0xff]
                %266 = vst [vmem:[%s154 + $0x1b8] sm:$0xff] %v265
                %v267 = vld [vmem:[%s153 + $0x380] sm:$0xff]
                %268 = vst [vmem:[%s154 + $0x1c0] sm:$0xff] %v267
                %v269 = vld [vmem:[%s153 + $0x390] sm:$0xff]
                %270 = vst [vmem:[%s154 + $0x1c8] sm:$0xff] %v269
                %v271 = vld [vmem:[%s153 + $0x3a0] sm:$0xff]
                %272 = vst [vmem:[%s154 + $0x1d0] sm:$0xff] %v271
                %v273 = vld [vmem:[%s153 + $0x3b0] sm:$0xff]
                %274 = vst [vmem:[%s154 + $0x1d8] sm:$0xff] %v273
                %v275 = vld [vmem:[%s153 + $0x3c0] sm:$0xff]
                %276 = vst [vmem:[%s154 + $0x1e0] sm:$0xff] %v275
                %v277 = vld [vmem:[%s153 + $0x3d0] sm:$0xff]
                %278 = vst [vmem:[%s154 + $0x1e8] sm:$0xff] %v277
                %v279 = vld [vmem:[%s153 + $0x3e0] sm:$0xff]
                %280 = vst [vmem:[%s154 + $0x1f0] sm:$0xff] %v279
                %v281 = vld [vmem:[%s153 + $0x3f0] sm:$0xff]
                %282 = vst [vmem:[%s154 + $0x1f8] sm:$0xff] %v281
                %v283 = vld [vmem:[%s153 + $0x400] sm:$0xff]
                %284 = vst [vmem:[%s154 + $0x200] sm:$0xff] %v283
                %v285 = vld [vmem:[%s153 + $0x410] sm:$0xff]
                %286 = vst [vmem:[%s154 + $0x208] sm:$0xff] %v285
                %v287 = vld [vmem:[%s153 + $0x420] sm:$0xff]
                %288 = vst [vmem:[%s154 + $0x210] sm:$0xff] %v287
                %v289 = vld [vmem:[%s153 + $0x430] sm:$0xff]
                %290 = vst [vmem:[%s154 + $0x218] sm:$0xff] %v289
                %v291 = vld [vmem:[%s153 + $0x440] sm:$0xff]
                %292 = vst [vmem:[%s154 + $0x220] sm:$0xff] %v291
                %v293 = vld [vmem:[%s153 + $0x450] sm:$0xff]
                %294 = vst [vmem:[%s154 + $0x228] sm:$0xff] %v293
                %v295 = vld [vmem:[%s153 + $0x460] sm:$0xff]
                %296 = vst [vmem:[%s154 + $0x230] sm:$0xff] %v295
                %v297 = vld [vmem:[%s153 + $0x470] sm:$0xff]
                %298 = vst [vmem:[%s154 + $0x238] sm:$0xff] %v297
                %v299 = vld [vmem:[%s153 + $0x480] sm:$0xff]
                %300 = vst [vmem:[%s154 + $0x240] sm:$0xff] %v299
                %v301 = vld [vmem:[%s153 + $0x490] sm:$0xff]
                %302 = vst [vmem:[%s154 + $0x248] sm:$0xff] %v301
                %v303 = vld [vmem:[%s153 + $0x4a0] sm:$0xff]
                %304 = vst [vmem:[%s154 + $0x250] sm:$0xff] %v303
                %v305 = vld [vmem:[%s153 + $0x4b0] sm:$0xff]
                %306 = vst [vmem:[%s154 + $0x258] sm:$0xff] %v305
                %v307 = vld [vmem:[%s153 + $0x4c0] sm:$0xff]
                %308 = vst [vmem:[%s154 + $0x260] sm:$0xff] %v307
                %v309 = vld [vmem:[%s153 + $0x4d0] sm:$0xff]
                %310 = vst [vmem:[%s154 + $0x268] sm:$0xff] %v309
                %v311 = vld [vmem:[%s153 + $0x4e0] sm:$0xff]
                %312 = vst [vmem:[%s154 + $0x270] sm:$0xff] %v311
                %v313 = vld [vmem:[%s153 + $0x4f0] sm:$0xff]
                %314 = vst [vmem:[%s154 + $0x278] sm:$0xff] %v313
                %v315 = vld [vmem:[%s153 + $0x500] sm:$0xff]
                %316 = vst [vmem:[%s154 + $0x280] sm:$0xff] %v315
                %v317 = vld [vmem:[%s153 + $0x510] sm:$0xff]
                %318 = vst [vmem:[%s154 + $0x288] sm:$0xff] %v317
                %v319 = vld [vmem:[%s153 + $0x520] sm:$0xff]
                %320 = vst [vmem:[%s154 + $0x290] sm:$0xff] %v319
                %v321 = vld [vmem:[%s153 + $0x530] sm:$0xff]
                %322 = vst [vmem:[%s154 + $0x298] sm:$0xff] %v321
                %v323 = vld [vmem:[%s153 + $0x540] sm:$0xff]
                %324 = vst [vmem:[%s154 + $0x2a0] sm:$0xff] %v323
                %v325 = vld [vmem:[%s153 + $0x550] sm:$0xff]
                %326 = vst [vmem:[%s154 + $0x2a8] sm:$0xff] %v325
                %v327 = vld [vmem:[%s153 + $0x560] sm:$0xff]
                %328 = vst [vmem:[%s154 + $0x2b0] sm:$0xff] %v327
                %v329 = vld [vmem:[%s153 + $0x570] sm:$0xff]
                %330 = vst [vmem:[%s154 + $0x2b8] sm:$0xff] %v329
                %v331 = vld [vmem:[%s153 + $0x580] sm:$0xff]
                %332 = vst [vmem:[%s154 + $0x2c0] sm:$0xff] %v331
                %v333 = vld [vmem:[%s153 + $0x590] sm:$0xff]
                %334 = vst [vmem:[%s154 + $0x2c8] sm:$0xff] %v333
                %v335 = vld [vmem:[%s153 + $0x5a0] sm:$0xff]
                %336 = vst [vmem:[%s154 + $0x2d0] sm:$0xff] %v335
                %v337 = vld [vmem:[%s153 + $0x5b0] sm:$0xff]
                %338 = vst [vmem:[%s154 + $0x2d8] sm:$0xff] %v337
                %v339 = vld [vmem:[%s153 + $0x5c0] sm:$0xff]
                %340 = vst [vmem:[%s154 + $0x2e0] sm:$0xff] %v339
                %v341 = vld [vmem:[%s153 + $0x5d0] sm:$0xff]
                %342 = vst [vmem:[%s154 + $0x2e8] sm:$0xff] %v341
                %v343 = vld [vmem:[%s153 + $0x5e0] sm:$0xff]
                %344 = vst [vmem:[%s154 + $0x2f0] sm:$0xff] %v343
                %v345 = vld [vmem:[%s153 + $0x5f0] sm:$0xff]
                %346 = vst [vmem:[%s154 + $0x2f8] sm:$0xff] %v345
                %v347 = vld [vmem:[%s153 + $0x600] sm:$0xff]
                %348 = vst [vmem:[%s154 + $0x300] sm:$0xff] %v347
                %v349 = vld [vmem:[%s153 + $0x610] sm:$0xff]
                %350 = vst [vmem:[%s154 + $0x308] sm:$0xff] %v349
                %v351 = vld [vmem:[%s153 + $0x620] sm:$0xff]
                %352 = vst [vmem:[%s154 + $0x310] sm:$0xff] %v351
                %v353 = vld [vmem:[%s153 + $0x630] sm:$0xff]
                %354 = vst [vmem:[%s154 + $0x318] sm:$0xff] %v353
                %v355 = vld [vmem:[%s153 + $0x640] sm:$0xff]
                %356 = vst [vmem:[%s154 + $0x320] sm:$0xff] %v355
                %v357 = vld [vmem:[%s153 + $0x650] sm:$0xff]
                %358 = vst [vmem:[%s154 + $0x328] sm:$0xff] %v357
                %v359 = vld [vmem:[%s153 + $0x660] sm:$0xff]
                %360 = vst [vmem:[%s154 + $0x330] sm:$0xff] %v359
                %v361 = vld [vmem:[%s153 + $0x670] sm:$0xff]
                %362 = vst [vmem:[%s154 + $0x338] sm:$0xff] %v361
                %v363 = vld [vmem:[%s153 + $0x680] sm:$0xff]
                %364 = vst [vmem:[%s154 + $0x340] sm:$0xff] %v363
                %v365 = vld [vmem:[%s153 + $0x690] sm:$0xff]
                %366 = vst [vmem:[%s154 + $0x348] sm:$0xff] %v365
                %v367 = vld [vmem:[%s153 + $0x6a0] sm:$0xff]
                %368 = vst [vmem:[%s154 + $0x350] sm:$0xff] %v367
                %v369 = vld [vmem:[%s153 + $0x6b0] sm:$0xff]
                %370 = vst [vmem:[%s154 + $0x358] sm:$0xff] %v369
                %v371 = vld [vmem:[%s153 + $0x6c0] sm:$0xff]
                %372 = vst [vmem:[%s154 + $0x360] sm:$0xff] %v371
                %v373 = vld [vmem:[%s153 + $0x6d0] sm:$0xff]
                %374 = vst [vmem:[%s154 + $0x368] sm:$0xff] %v373
                %v375 = vld [vmem:[%s153 + $0x6e0] sm:$0xff]
                %376 = vst [vmem:[%s154 + $0x370] sm:$0xff] %v375
                %v377 = vld [vmem:[%s153 + $0x6f0] sm:$0xff]
                %378 = vst [vmem:[%s154 + $0x378] sm:$0xff] %v377
                %v379 = vld [vmem:[%s153 + $0x700] sm:$0xff]
                %380 = vst [vmem:[%s154 + $0x380] sm:$0xff] %v379
                %v381 = vld [vmem:[%s153 + $0x710] sm:$0xff]
                %382 = vst [vmem:[%s154 + $0x388] sm:$0xff] %v381
                %v383 = vld [vmem:[%s153 + $0x720] sm:$0xff]
                %384 = vst [vmem:[%s154 + $0x390] sm:$0xff] %v383
                %v385 = vld [vmem:[%s153 + $0x730] sm:$0xff]
                %386 = vst [vmem:[%s154 + $0x398] sm:$0xff] %v385
                %v387 = vld [vmem:[%s153 + $0x740] sm:$0xff]
                %388 = vst [vmem:[%s154 + $0x3a0] sm:$0xff] %v387
                %v389 = vld [vmem:[%s153 + $0x750] sm:$0xff]
                %390 = vst [vmem:[%s154 + $0x3a8] sm:$0xff] %v389
                %v391 = vld [vmem:[%s153 + $0x760] sm:$0xff]
                %392 = vst [vmem:[%s154 + $0x3b0] sm:$0xff] %v391
                %v393 = vld [vmem:[%s153 + $0x770] sm:$0xff]
                %394 = vst [vmem:[%s154 + $0x3b8] sm:$0xff] %v393
                %v395 = vld [vmem:[%s153 + $0x780] sm:$0xff]
                %396 = vst [vmem:[%s154 + $0x3c0] sm:$0xff] %v395
                %v397 = vld [vmem:[%s153 + $0x790] sm:$0xff]
                %398 = vst [vmem:[%s154 + $0x3c8] sm:$0xff] %v397
                %v399 = vld [vmem:[%s153 + $0x7a0] sm:$0xff]
                %400 = vst [vmem:[%s154 + $0x3d0] sm:$0xff] %v399
                %v401 = vld [vmem:[%s153 + $0x7b0] sm:$0xff]
                %402 = vst [vmem:[%s154 + $0x3d8] sm:$0xff] %v401
                %v403 = vld [vmem:[%s153 + $0x7c0] sm:$0xff]
                %404 = vst [vmem:[%s154 + $0x3e0] sm:$0xff] %v403
                %v405 = vld [vmem:[%s153 + $0x7d0] sm:$0xff]
                %406 = vst [vmem:[%s154 + $0x3e8] sm:$0xff] %v405
                %v407 = vld [vmem:[%s153 + $0x7e0] sm:$0xff]
                %408 = vst [vmem:[%s154 + $0x3f0] sm:$0xff] %v407
                %v409 = vld [vmem:[%s153 + $0x7f0] sm:$0xff]
                %410 = vst [vmem:[%s154 + $0x3f8] sm:$0xff] %v409
                %v411 = vld [vmem:[%s153 + $0x800] sm:$0xff]
                %412 = vst [vmem:[%s154 + $0x400] sm:$0xff] %v411
                %v413 = vld [vmem:[%s153 + $0x810] sm:$0xff]
                %414 = vst [vmem:[%s154 + $0x408] sm:$0xff] %v413
                %v415 = vld [vmem:[%s153 + $0x820] sm:$0xff]
                %416 = vst [vmem:[%s154 + $0x410] sm:$0xff] %v415
                %v417 = vld [vmem:[%s153 + $0x830] sm:$0xff]
                %418 = vst [vmem:[%s154 + $0x418] sm:$0xff] %v417
                %v419 = vld [vmem:[%s153 + $0x840] sm:$0xff]
                %420 = vst [vmem:[%s154 + $0x420] sm:$0xff] %v419
                %v421 = vld [vmem:[%s153 + $0x850] sm:$0xff]
                %422 = vst [vmem:[%s154 + $0x428] sm:$0xff] %v421
                %v423 = vld [vmem:[%s153 + $0x860] sm:$0xff]
                %424 = vst [vmem:[%s154 + $0x430] sm:$0xff] %v423
                %v425 = vld [vmem:[%s153 + $0x870] sm:$0xff]
                %426 = vst [vmem:[%s154 + $0x438] sm:$0xff] %v425
                %v427 = vld [vmem:[%s153 + $0x880] sm:$0xff]
                %428 = vst [vmem:[%s154 + $0x440] sm:$0xff] %v427
                %v429 = vld [vmem:[%s153 + $0x890] sm:$0xff]
                %430 = vst [vmem:[%s154 + $0x448] sm:$0xff] %v429
                %v431 = vld [vmem:[%s153 + $0x8a0] sm:$0xff]
                %432 = vst [vmem:[%s154 + $0x450] sm:$0xff] %v431
                %v433 = vld [vmem:[%s153 + $0x8b0] sm:$0xff]
                %434 = vst [vmem:[%s154 + $0x458] sm:$0xff] %v433
                %v435 = vld [vmem:[%s153 + $0x8c0] sm:$0xff]
                %436 = vst [vmem:[%s154 + $0x460] sm:$0xff] %v435
                %v437 = vld [vmem:[%s153 + $0x8d0] sm:$0xff]
                %438 = vst [vmem:[%s154 + $0x468] sm:$0xff] %v437
                %v439 = vld [vmem:[%s153 + $0x8e0] sm:$0xff]
                %440 = vst [vmem:[%s154 + $0x470] sm:$0xff] %v439
                %v441 = vld [vmem:[%s153 + $0x8f0] sm:$0xff]
                %442 = vst [vmem:[%s154 + $0x478] sm:$0xff] %v441
                %v443 = vld [vmem:[%s153 + $0x900] sm:$0xff]
                %444 = vst [vmem:[%s154 + $0x480] sm:$0xff] %v443
                %v445 = vld [vmem:[%s153 + $0x910] sm:$0xff]
                %446 = vst [vmem:[%s154 + $0x488] sm:$0xff] %v445
                %v447 = vld [vmem:[%s153 + $0x920] sm:$0xff]
                %448 = vst [vmem:[%s154 + $0x490] sm:$0xff] %v447
                %v449 = vld [vmem:[%s153 + $0x930] sm:$0xff]
                %450 = vst [vmem:[%s154 + $0x498] sm:$0xff] %v449
                %v451 = vld [vmem:[%s153 + $0x940] sm:$0xff]
                %452 = vst [vmem:[%s154 + $0x4a0] sm:$0xff] %v451
                %v453 = vld [vmem:[%s153 + $0x950] sm:$0xff]
                %454 = vst [vmem:[%s154 + $0x4a8] sm:$0xff] %v453
                %v455 = vld [vmem:[%s153 + $0x960] sm:$0xff]
                %456 = vst [vmem:[%s154 + $0x4b0] sm:$0xff] %v455
                %v457 = vld [vmem:[%s153 + $0x970] sm:$0xff]
                %458 = vst [vmem:[%s154 + $0x4b8] sm:$0xff] %v457
                %v459 = vld [vmem:[%s153 + $0x980] sm:$0xff]
                %460 = vst [vmem:[%s154 + $0x4c0] sm:$0xff] %v459
                %v461 = vld [vmem:[%s153 + $0x990] sm:$0xff]
                %462 = vst [vmem:[%s154 + $0x4c8] sm:$0xff] %v461
                %v463 = vld [vmem:[%s153 + $0x9a0] sm:$0xff]
                %464 = vst [vmem:[%s154 + $0x4d0] sm:$0xff] %v463
                %v465 = vld [vmem:[%s153 + $0x9b0] sm:$0xff]
                %466 = vst [vmem:[%s154 + $0x4d8] sm:$0xff] %v465
                %v467 = vld [vmem:[%s153 + $0x9c0] sm:$0xff]
                %468 = vst [vmem:[%s154 + $0x4e0] sm:$0xff] %v467
                %v469 = vld [vmem:[%s153 + $0x9d0] sm:$0xff]
                %470 = vst [vmem:[%s154 + $0x4e8] sm:$0xff] %v469
                %v471 = vld [vmem:[%s153 + $0x9e0] sm:$0xff]
                %472 = vst [vmem:[%s154 + $0x4f0] sm:$0xff] %v471
                %v473 = vld [vmem:[%s153 + $0x9f0] sm:$0xff]
                %474 = vst [vmem:[%s154 + $0x4f8] sm:$0xff] %v473
                %v475 = vld [vmem:[%s153 + $0xa00] sm:$0xff]
                %476 = vst [vmem:[%s154 + $0x500] sm:$0xff] %v475
                %v477 = vld [vmem:[%s153 + $0xa10] sm:$0xff]
                %478 = vst [vmem:[%s154 + $0x508] sm:$0xff] %v477
                %v479 = vld [vmem:[%s153 + $0xa20] sm:$0xff]
                %480 = vst [vmem:[%s154 + $0x510] sm:$0xff] %v479
                %v481 = vld [vmem:[%s153 + $0xa30] sm:$0xff]
                %482 = vst [vmem:[%s154 + $0x518] sm:$0xff] %v481
                %v483 = vld [vmem:[%s153 + $0xa40] sm:$0xff]
                %484 = vst [vmem:[%s154 + $0x520] sm:$0xff] %v483
                %v485 = vld [vmem:[%s153 + $0xa50] sm:$0xff]
                %486 = vst [vmem:[%s154 + $0x528] sm:$0xff] %v485
                %v487 = vld [vmem:[%s153 + $0xa60] sm:$0xff]
                %488 = vst [vmem:[%s154 + $0x530] sm:$0xff] %v487
                %v489 = vld [vmem:[%s153 + $0xa70] sm:$0xff]
                %490 = vst [vmem:[%s154 + $0x538] sm:$0xff] %v489
                %v491 = vld [vmem:[%s153 + $0xa80] sm:$0xff]
                %492 = vst [vmem:[%s154 + $0x540] sm:$0xff] %v491
                %v493 = vld [vmem:[%s153 + $0xa90] sm:$0xff]
                %494 = vst [vmem:[%s154 + $0x548] sm:$0xff] %v493
                %v495 = vld [vmem:[%s153 + $0xaa0] sm:$0xff]
                %496 = vst [vmem:[%s154 + $0x550] sm:$0xff] %v495
                %v497 = vld [vmem:[%s153 + $0xab0] sm:$0xff]
                %498 = vst [vmem:[%s154 + $0x558] sm:$0xff] %v497
                %v499 = vld [vmem:[%s153 + $0xac0] sm:$0xff]
                %500 = vst [vmem:[%s154 + $0x560] sm:$0xff] %v499
                %v501 = vld [vmem:[%s153 + $0xad0] sm:$0xff]
                %502 = vst [vmem:[%s154 + $0x568] sm:$0xff] %v501
                %v503 = vld [vmem:[%s153 + $0xae0] sm:$0xff]
                %504 = vst [vmem:[%s154 + $0x570] sm:$0xff] %v503
                %v505 = vld [vmem:[%s153 + $0xaf0] sm:$0xff]
                %506 = vst [vmem:[%s154 + $0x578] sm:$0xff] %v505
                %v507 = vld [vmem:[%s153 + $0xb00] sm:$0xff]
                %508 = vst [vmem:[%s154 + $0x580] sm:$0xff] %v507
                %v509 = vld [vmem:[%s153 + $0xb10] sm:$0xff]
                %510 = vst [vmem:[%s154 + $0x588] sm:$0xff] %v509
                %v511 = vld [vmem:[%s153 + $0xb20] sm:$0xff]
                %512 = vst [vmem:[%s154 + $0x590] sm:$0xff] %v511
                %v513 = vld [vmem:[%s153 + $0xb30] sm:$0xff]
                %514 = vst [vmem:[%s154 + $0x598] sm:$0xff] %v513
                %v515 = vld [vmem:[%s153 + $0xb40] sm:$0xff]
                %516 = vst [vmem:[%s154 + $0x5a0] sm:$0xff] %v515
                %v517 = vld [vmem:[%s153 + $0xb50] sm:$0xff]
                %518 = vst [vmem:[%s154 + $0x5a8] sm:$0xff] %v517
                %v519 = vld [vmem:[%s153 + $0xb60] sm:$0xff]
                %520 = vst [vmem:[%s154 + $0x5b0] sm:$0xff] %v519
                %v521 = vld [vmem:[%s153 + $0xb70] sm:$0xff]
                %522 = vst [vmem:[%s154 + $0x5b8] sm:$0xff] %v521
                %v523 = vld [vmem:[%s153 + $0xb80] sm:$0xff]
                %524 = vst [vmem:[%s154 + $0x5c0] sm:$0xff] %v523
                %v525 = vld [vmem:[%s153 + $0xb90] sm:$0xff]
                %526 = vst [vmem:[%s154 + $0x5c8] sm:$0xff] %v525
                %v527 = vld [vmem:[%s153 + $0xba0] sm:$0xff]
                %528 = vst [vmem:[%s154 + $0x5d0] sm:$0xff] %v527
                %v529 = vld [vmem:[%s153 + $0xbb0] sm:$0xff]
                %530 = vst [vmem:[%s154 + $0x5d8] sm:$0xff] %v529
                %v531 = vld [vmem:[%s153 + $0xbc0] sm:$0xff]
                %532 = vst [vmem:[%s154 + $0x5e0] sm:$0xff] %v531
                %v533 = vld [vmem:[%s153 + $0xbd0] sm:$0xff]
                %534 = vst [vmem:[%s154 + $0x5e8] sm:$0xff] %v533
                %v535 = vld [vmem:[%s153 + $0xbe0] sm:$0xff]
                %536 = vst [vmem:[%s154 + $0x5f0] sm:$0xff] %v535
                %v537 = vld [vmem:[%s153 + $0xbf0] sm:$0xff]
                %538 = vst [vmem:[%s154 + $0x5f8] sm:$0xff] %v537
                %v539 = vld [vmem:[%s153 + $0xc00] sm:$0xff]
                %540 = vst [vmem:[%s154 + $0x600] sm:$0xff] %v539
                %v541 = vld [vmem:[%s153 + $0xc10] sm:$0xff]
                %542 = vst [vmem:[%s154 + $0x608] sm:$0xff] %v541
                %v543 = vld [vmem:[%s153 + $0xc20] sm:$0xff]
                %544 = vst [vmem:[%s154 + $0x610] sm:$0xff] %v543
                %v545 = vld [vmem:[%s153 + $0xc30] sm:$0xff]
                %546 = vst [vmem:[%s154 + $0x618] sm:$0xff] %v545
                %v547 = vld [vmem:[%s153 + $0xc40] sm:$0xff]
                %548 = vst [vmem:[%s154 + $0x620] sm:$0xff] %v547
                %v549 = vld [vmem:[%s153 + $0xc50] sm:$0xff]
                %550 = vst [vmem:[%s154 + $0x628] sm:$0xff] %v549
                %v551 = vld [vmem:[%s153 + $0xc60] sm:$0xff]
                %552 = vst [vmem:[%s154 + $0x630] sm:$0xff] %v551
                %v553 = vld [vmem:[%s153 + $0xc70] sm:$0xff]
                %554 = vst [vmem:[%s154 + $0x638] sm:$0xff] %v553
                %v555 = vld [vmem:[%s153 + $0xc80] sm:$0xff]
                %556 = vst [vmem:[%s154 + $0x640] sm:$0xff] %v555
                %v557 = vld [vmem:[%s153 + $0xc90] sm:$0xff]
                %558 = vst [vmem:[%s154 + $0x648] sm:$0xff] %v557
                %v559 = vld [vmem:[%s153 + $0xca0] sm:$0xff]
                %560 = vst [vmem:[%s154 + $0x650] sm:$0xff] %v559
                %v561 = vld [vmem:[%s153 + $0xcb0] sm:$0xff]
                %562 = vst [vmem:[%s154 + $0x658] sm:$0xff] %v561
                %v563 = vld [vmem:[%s153 + $0xcc0] sm:$0xff]
                %564 = vst [vmem:[%s154 + $0x660] sm:$0xff] %v563
                %v565 = vld [vmem:[%s153 + $0xcd0] sm:$0xff]
                %566 = vst [vmem:[%s154 + $0x668] sm:$0xff] %v565
                %v567 = vld [vmem:[%s153 + $0xce0] sm:$0xff]
                %568 = vst [vmem:[%s154 + $0x670] sm:$0xff] %v567
                %v569 = vld [vmem:[%s153 + $0xcf0] sm:$0xff]
                %570 = vst [vmem:[%s154 + $0x678] sm:$0xff] %v569
                %v571 = vld [vmem:[%s153 + $0xd00] sm:$0xff]
                %572 = vst [vmem:[%s154 + $0x680] sm:$0xff] %v571
                %v573 = vld [vmem:[%s153 + $0xd10] sm:$0xff]
                %574 = vst [vmem:[%s154 + $0x688] sm:$0xff] %v573
                %v575 = vld [vmem:[%s153 + $0xd20] sm:$0xff]
                %576 = vst [vmem:[%s154 + $0x690] sm:$0xff] %v575
                %v577 = vld [vmem:[%s153 + $0xd30] sm:$0xff]
                %578 = vst [vmem:[%s154 + $0x698] sm:$0xff] %v577
                %v579 = vld [vmem:[%s153 + $0xd40] sm:$0xff]
                %580 = vst [vmem:[%s154 + $0x6a0] sm:$0xff] %v579
                %v581 = vld [vmem:[%s153 + $0xd50] sm:$0xff]
                %582 = vst [vmem:[%s154 + $0x6a8] sm:$0xff] %v581
                %v583 = vld [vmem:[%s153 + $0xd60] sm:$0xff]
                %584 = vst [vmem:[%s154 + $0x6b0] sm:$0xff] %v583
                %v585 = vld [vmem:[%s153 + $0xd70] sm:$0xff]
                %586 = vst [vmem:[%s154 + $0x6b8] sm:$0xff] %v585
                %v587 = vld [vmem:[%s153 + $0xd80] sm:$0xff]
                %588 = vst [vmem:[%s154 + $0x6c0] sm:$0xff] %v587
                %v589 = vld [vmem:[%s153 + $0xd90] sm:$0xff]
                %590 = vst [vmem:[%s154 + $0x6c8] sm:$0xff] %v589
                %v591 = vld [vmem:[%s153 + $0xda0] sm:$0xff]
                %592 = vst [vmem:[%s154 + $0x6d0] sm:$0xff] %v591
                %v593 = vld [vmem:[%s153 + $0xdb0] sm:$0xff]
                %594 = vst [vmem:[%s154 + $0x6d8] sm:$0xff] %v593
                %v595 = vld [vmem:[%s153 + $0xdc0] sm:$0xff]
                %596 = vst [vmem:[%s154 + $0x6e0] sm:$0xff] %v595
                %v597 = vld [vmem:[%s153 + $0xdd0] sm:$0xff]
                %598 = vst [vmem:[%s154 + $0x6e8] sm:$0xff] %v597
                %v599 = vld [vmem:[%s153 + $0xde0] sm:$0xff]
                %600 = vst [vmem:[%s154 + $0x6f0] sm:$0xff] %v599
                %v601 = vld [vmem:[%s153 + $0xdf0] sm:$0xff]
                %602 = vst [vmem:[%s154 + $0x6f8] sm:$0xff] %v601
                %v603 = vld [vmem:[%s153 + $0xe00] sm:$0xff]
                %604 = vst [vmem:[%s154 + $0x700] sm:$0xff] %v603
                %v605 = vld [vmem:[%s153 + $0xe10] sm:$0xff]
                %606 = vst [vmem:[%s154 + $0x708] sm:$0xff] %v605
                %v607 = vld [vmem:[%s153 + $0xe20] sm:$0xff]
                %608 = vst [vmem:[%s154 + $0x710] sm:$0xff] %v607
                %v609 = vld [vmem:[%s153 + $0xe30] sm:$0xff]
                %610 = vst [vmem:[%s154 + $0x718] sm:$0xff] %v609
                %v611 = vld [vmem:[%s153 + $0xe40] sm:$0xff]
                %612 = vst [vmem:[%s154 + $0x720] sm:$0xff] %v611
                %v613 = vld [vmem:[%s153 + $0xe50] sm:$0xff]
                %614 = vst [vmem:[%s154 + $0x728] sm:$0xff] %v613
                %v615 = vld [vmem:[%s153 + $0xe60] sm:$0xff]
                %616 = vst [vmem:[%s154 + $0x730] sm:$0xff] %v615
                %v617 = vld [vmem:[%s153 + $0xe70] sm:$0xff]
                %618 = vst [vmem:[%s154 + $0x738] sm:$0xff] %v617
                %v619 = vld [vmem:[%s153 + $0xe80] sm:$0xff]
                %620 = vst [vmem:[%s154 + $0x740] sm:$0xff] %v619
                %v621 = vld [vmem:[%s153 + $0xe90] sm:$0xff]
                %622 = vst [vmem:[%s154 + $0x748] sm:$0xff] %v621
                %v623 = vld [vmem:[%s153 + $0xea0] sm:$0xff]
                %624 = vst [vmem:[%s154 + $0x750] sm:$0xff] %v623
                %v625 = vld [vmem:[%s153 + $0xeb0] sm:$0xff]
                %626 = vst [vmem:[%s154 + $0x758] sm:$0xff] %v625
                %v627 = vld [vmem:[%s153 + $0xec0] sm:$0xff]
                %628 = vst [vmem:[%s154 + $0x760] sm:$0xff] %v627
                %v629 = vld [vmem:[%s153 + $0xed0] sm:$0xff]
                %630 = vst [vmem:[%s154 + $0x768] sm:$0xff] %v629
                %v631 = vld [vmem:[%s153 + $0xee0] sm:$0xff]
                %632 = vst [vmem:[%s154 + $0x770] sm:$0xff] %v631
                %v633 = vld [vmem:[%s153 + $0xef0] sm:$0xff]
                %634 = vst [vmem:[%s154 + $0x778] sm:$0xff] %v633
                %v635 = vld [vmem:[%s153 + $0xf00] sm:$0xff]
                %636 = vst [vmem:[%s154 + $0x780] sm:$0xff] %v635
                %v637 = vld [vmem:[%s153 + $0xf10] sm:$0xff]
                %638 = vst [vmem:[%s154 + $0x788] sm:$0xff] %v637
                %v639 = vld [vmem:[%s153 + $0xf20] sm:$0xff]
                %640 = vst [vmem:[%s154 + $0x790] sm:$0xff] %v639
                %v641 = vld [vmem:[%s153 + $0xf30] sm:$0xff]
                %642 = vst [vmem:[%s154 + $0x798] sm:$0xff] %v641
                %v643 = vld [vmem:[%s153 + $0xf40] sm:$0xff]
                %644 = vst [vmem:[%s154 + $0x7a0] sm:$0xff] %v643
                %v645 = vld [vmem:[%s153 + $0xf50] sm:$0xff]
                %646 = vst [vmem:[%s154 + $0x7a8] sm:$0xff] %v645
                %v647 = vld [vmem:[%s153 + $0xf60] sm:$0xff]
                %648 = vst [vmem:[%s154 + $0x7b0] sm:$0xff] %v647
                %v649 = vld [vmem:[%s153 + $0xf70] sm:$0xff]
                %650 = vst [vmem:[%s154 + $0x7b8] sm:$0xff] %v649
                %v651 = vld [vmem:[%s153 + $0xf80] sm:$0xff]
                %652 = vst [vmem:[%s154 + $0x7c0] sm:$0xff] %v651
                %v653 = vld [vmem:[%s153 + $0xf90] sm:$0xff]
                %654 = vst [vmem:[%s154 + $0x7c8] sm:$0xff] %v653
                %v655 = vld [vmem:[%s153 + $0xfa0] sm:$0xff]
                %656 = vst [vmem:[%s154 + $0x7d0] sm:$0xff] %v655
                %v657 = vld [vmem:[%s153 + $0xfb0] sm:$0xff]
                %658 = vst [vmem:[%s154 + $0x7d8] sm:$0xff] %v657
                %v659 = vld [vmem:[%s153 + $0xfc0] sm:$0xff]
                %660 = vst [vmem:[%s154 + $0x7e0] sm:$0xff] %v659
                %v661 = vld [vmem:[%s153 + $0xfd0] sm:$0xff]
                %662 = vst [vmem:[%s154 + $0x7e8] sm:$0xff] %v661
                %v663 = vld [vmem:[%s153 + $0xfe0] sm:$0xff]
                %664 = vst [vmem:[%s154 + $0x7f0] sm:$0xff] %v663
                %v665 = vld [vmem:[%s153 + $0xff0] sm:$0xff]
                %666 = vst [vmem:[%s154 + $0x7f8] sm:$0xff] %v665
              $region41: #{pallas_linear.1} parent=35 // loop_footer
                %s152 = sadd.s32 1, %s148
              $region42: #{pallas_linear.1} parent=35 // loop_footer_branch
                %147 = sbr.rel target = $region38
              $region43: #{pallas_linear.1} parent=35 // loop_exit
                _
            $region36: #{pallas_linear.1} parent=27 // pred_fallthru
              _
          $region28: #{pallas_linear.1} parent=23 // pred_fallthru
            _
          %1191 = vnop
        $region24: #{pallas_linear.1} parent=19 // pred_fallthru
          _
        // Predicated region
        $region59: #{pallas_linear.1} parent=19 // pred_check
          %p1192 = pneg %p76
        $region60: #{pallas_linear.1} parent=19 // pred_check_branch
          %1194 = sbr.rel (%p1192) target = $region62
        $region61: #{pallas_linear.1} parent=19 // pred_region
          %s1195 = smul.u32 2, %s9
          %p1196 = scmp.lt.s32.totalorder %s1195, 3
          %s1197 = scalar_select %p1196, %s1195, 3
          %s1198 = scalar_lea.vmem %s2, %s1197
          %s1199 = smul.u32 2, %s9
        $region62: #{pallas_linear.1} parent=19 // pred_fallthru
          _
      $region20: #{pallas_linear.1} parent=5 // pred_fallthru
        _
      %p1200 = scmp.le.s32.totalorder 1, %s9
      %p1201 = scmp.lt.s32.totalorder %s9, 3
      %p1202 = pnand %p1200, %p1201
      %p1203 = pneg %p1202
      // Predicated region
      $region63: #{pallas_linear.1} parent=5 // pred_check
        _
      $region64: #{pallas_linear.1} parent=5 // pred_check_branch
        %1205 = sbr.rel (%p1202) target = $region66
      $region65: #{pallas_linear.1} parent=5 // pred_region
        %s1206 = ssub.s32 %s9, 1
        %s1207 = sand.u32 %s43, 1
        %s1208 = sand.u32 %s43, 1
        %s1209 = smul.addr %s1208, 2048
        %s1210 = scalar_lea.vmem [#allocation2], %s1209
        // Predicated region
        $region67: #{pallas_linear.1} parent=65 // pred_check
          %p1211 = pneg %p56
        $region68: #{pallas_linear.1} parent=65 // pred_check_branch
          %1213 = sbr.rel (%p1211) target = $region70
        $region69: #{pallas_linear.1} parent=65 // pred_region
          _
        $region70: #{pallas_linear.1} parent=65 // pred_fallthru
          _
        %p1214 = pneg %p30
        %p1215 = pneg %p27
        %s1216 = sand.u32 %s43, 1
        %s1217 = sand.u32 %s43, 1
        %s1218 = smul.addr %s1217, 2048
        %s1219 = scalar_lea.vmem [#allocation2], %s1218
        %p1220 = pneg %p56
        %p1221 = pneg %p53
        %s1222 = smul.u32 2, %s14
        %p1223 = scmp.lt.s32.totalorder %s1222, 3
        %s1224 = scalar_select %p1223, %s1222, 3
        %s1225 = scalar_lea.vmem %s2, %s1224
        %p1226 = pneg %p82
        %p1227 = pneg %p79
        %p1228 = pneg %p108
        %p1229 = pneg %p105
        %s1230 = sand.u32 %s95, 1
        %s1231 = sand.u32 %s95, 1
        %s1232 = smul.addr %s1231, 400
        %s1233 = scalar_lea.vmem [#allocation3], %s1232
        %s1234 = smul.u32 2, %s14
        %s1235 = smul.u32 2, %s14
        %p1236 = scmp.lt.s32.totalorder %s1235, 3
        %s1237 = scalar_select %p1236, %s1235, 3
        %s1238 = scalar_lea.vmem %s2, %s1237
        %s1239 = smul.u32 2, %s14
        %s1240 = smul.u32 2, %s14
        %v1241 = vld [vmem:[%s0] sm:$0xff]
        %v1242 = vld [vmem:[%s0 + $0x8] sm:$0xff]
        %v1243 = vld [vmem:[%s0 + $0x10] sm:$0xff]
        %v1244 = vld [vmem:[%s0 + $0x18] sm:$0xff]
        %v1245 = vld [vmem:[%s0 + $0x20] sm:$0xff]
        %v1246 = vld [vmem:[%s0 + $0x28] sm:$0xff]
        %v1247 = vld [vmem:[%s0 + $0x30] sm:$0xff]
        %v1248 = vld [vmem:[%s0 + $0x38] sm:$0xff]
        %v1249 = vld [vmem:[%s0 + $0x40] sm:$0xff]
        %v1250 = vld [vmem:[%s0 + $0x48] sm:$0xff]
        %v1251 = vld [vmem:[%s0 + $0x50] sm:$0xff]
        %v1252 = vld [vmem:[%s0 + $0x58] sm:$0xff]
        %v1253 = vld [vmem:[%s0 + $0x60] sm:$0xff]
        %v1254 = vld [vmem:[%s0 + $0x68] sm:$0xff]
        %v1255 = vld [vmem:[%s0 + $0x70] sm:$0xff]
        %v1256 = vld [vmem:[%s0 + $0x78] sm:$0xff]
        %v1257 = vld [vmem:[%s0 + $0x80] sm:$0xff]
        %v1258 = vld [vmem:[%s0 + $0x88] sm:$0xff]
        %v1259 = vld [vmem:[%s0 + $0x90] sm:$0xff]
        %v1260 = vld [vmem:[%s0 + $0x98] sm:$0xff]
        %v1261 = vld [vmem:[%s0 + $0xa0] sm:$0xff]
        %v1262 = vld [vmem:[%s0 + $0xa8] sm:$0xff]
        %v1263 = vld [vmem:[%s0 + $0xb0] sm:$0xff]
        %v1264 = vld [vmem:[%s0 + $0xb8] sm:$0xff]
        %v1265 = vld [vmem:[%s0 + $0xc0] sm:$0xff]
        %v1266 = vld [vmem:[%s0 + $0xc8] sm:$0xff]
        %v1267 = vld [vmem:[%s0 + $0xd0] sm:$0xff]
        %v1268 = vld [vmem:[%s0 + $0xd8] sm:$0xff]
        %v1269 = vld [vmem:[%s0 + $0xe0] sm:$0xff]
        %v1270 = vld [vmem:[%s0 + $0xe8] sm:$0xff]
        %v1271 = vld [vmem:[%s0 + $0xf0] sm:$0xff]
        %v1272 = vld [vmem:[%s0 + $0xf8] sm:$0xff]
        %v1273 = vld [vmem:[%s0 + $0x100] sm:$0xff]
        %v1274 = vld [vmem:[%s0 + $0x108] sm:$0xff]
        %v1275 = vld [vmem:[%s0 + $0x110] sm:$0xff]
        %v1276 = vld [vmem:[%s0 + $0x118] sm:$0xff]
        %v1277 = vld [vmem:[%s0 + $0x120] sm:$0xff]
        %v1278 = vld [vmem:[%s0 + $0x128] sm:$0xff]
        %v1279 = vld [vmem:[%s0 + $0x130] sm:$0xff]
        %v1280 = vld [vmem:[%s0 + $0x138] sm:$0xff]
        %v1281 = vld [vmem:[%s0 + $0x140] sm:$0xff]
        %v1282 = vld [vmem:[%s0 + $0x148] sm:$0xff]
        %v1283 = vld [vmem:[%s0 + $0x150] sm:$0xff]
        %v1284 = vld [vmem:[%s0 + $0x158] sm:$0xff]
        %v1285 = vld [vmem:[%s0 + $0x160] sm:$0xff]
        %v1286 = vld [vmem:[%s0 + $0x168] sm:$0xff]
        %v1287 = vld [vmem:[%s0 + $0x170] sm:$0xff]
        %v1288 = vld [vmem:[%s0 + $0x178] sm:$0xff]
        %v1289 = vld [vmem:[%s0 + $0x180] sm:$0xff]
        %v1290 = vld [vmem:[%s0 + $0x188] sm:$0xff]
        %v1291 = vld [vmem:[%s0 + $0x190] sm:$0xff]
        %v1292 = vld [vmem:[%s0 + $0x198] sm:$0xff]
        %v1293 = vld [vmem:[%s0 + $0x1a0] sm:$0xff]
        %v1294 = vld [vmem:[%s0 + $0x1a8] sm:$0xff]
        %v1295 = vld [vmem:[%s0 + $0x1b0] sm:$0xff]
        %v1296 = vld [vmem:[%s0 + $0x1b8] sm:$0xff]
        %v1297 = vld [vmem:[%s0 + $0x1c0] sm:$0xff]
        %v1298 = vld [vmem:[%s0 + $0x1c8] sm:$0xff]
        %v1299 = vld [vmem:[%s0 + $0x1d0] sm:$0xff]
        %v1300 = vld [vmem:[%s0 + $0x1d8] sm:$0xff]
        %v1301 = vld [vmem:[%s0 + $0x1e0] sm:$0xff]
        %v1302 = vld [vmem:[%s0 + $0x1e8] sm:$0xff]
        %v1303 = vld [vmem:[%s0 + $0x1f0] sm:$0xff]
        %v1304 = vld [vmem:[%s0 + $0x1f8] sm:$0xff]
        %v1305 = vld [vmem:[%s0 + $0x200] sm:$0xff]
        %v1306 = vld [vmem:[%s0 + $0x208] sm:$0xff]
        %v1307 = vld [vmem:[%s0 + $0x210] sm:$0xff]
        %v1308 = vld [vmem:[%s0 + $0x218] sm:$0xff]
        %v1309 = vld [vmem:[%s0 + $0x220] sm:$0xff]
        %v1310 = vld [vmem:[%s0 + $0x228] sm:$0xff]
        %v1311 = vld [vmem:[%s0 + $0x230] sm:$0xff]
        %v1312 = vld [vmem:[%s0 + $0x238] sm:$0xff]
        %v1313 = vld [vmem:[%s0 + $0x240] sm:$0xff]
        %v1314 = vld [vmem:[%s0 + $0x248] sm:$0xff]
        %v1315 = vld [vmem:[%s0 + $0x250] sm:$0xff]
        %v1316 = vld [vmem:[%s0 + $0x258] sm:$0xff]
        %v1317 = vld [vmem:[%s0 + $0x260] sm:$0xff]
        %v1318 = vld [vmem:[%s0 + $0x268] sm:$0xff]
        %v1319 = vld [vmem:[%s0 + $0x270] sm:$0xff]
        %v1320 = vld [vmem:[%s0 + $0x278] sm:$0xff]
        %v1321 = vld [vmem:[%s0 + $0x280] sm:$0xff]
        %v1322 = vld [vmem:[%s0 + $0x288] sm:$0xff]
        %v1323 = vld [vmem:[%s0 + $0x290] sm:$0xff]
        %v1324 = vld [vmem:[%s0 + $0x298] sm:$0xff]
        %v1325 = vld [vmem:[%s0 + $0x2a0] sm:$0xff]
        %v1326 = vld [vmem:[%s0 + $0x2a8] sm:$0xff]
        %v1327 = vld [vmem:[%s0 + $0x2b0] sm:$0xff]
        %v1328 = vld [vmem:[%s0 + $0x2b8] sm:$0xff]
        %v1329 = vld [vmem:[%s0 + $0x2c0] sm:$0xff]
        %v1330 = vld [vmem:[%s0 + $0x2c8] sm:$0xff]
        %v1331 = vld [vmem:[%s0 + $0x2d0] sm:$0xff]
        %v1332 = vld [vmem:[%s0 + $0x2d8] sm:$0xff]
        %v1333 = vld [vmem:[%s0 + $0x2e0] sm:$0xff]
        %v1334 = vld [vmem:[%s0 + $0x2e8] sm:$0xff]
        %v1335 = vld [vmem:[%s0 + $0x2f0] sm:$0xff]
        %v1336 = vld [vmem:[%s0 + $0x2f8] sm:$0xff]
        %v1337 = vld [vmem:[%s0 + $0x300] sm:$0xff]
        %v1338 = vld [vmem:[%s0 + $0x308] sm:$0xff]
        %v1339 = vld [vmem:[%s0 + $0x310] sm:$0xff]
        %v1340 = vld [vmem:[%s0 + $0x318] sm:$0xff]
        %v1341 = vld [vmem:[%s0 + $0x320] sm:$0xff]
        %v1342 = vld [vmem:[%s0 + $0x328] sm:$0xff]
        %v1343 = vld [vmem:[%s0 + $0x330] sm:$0xff]
        %v1344 = vld [vmem:[%s0 + $0x338] sm:$0xff]
        %v1345 = vld [vmem:[%s0 + $0x340] sm:$0xff]
        %v1346 = vld [vmem:[%s0 + $0x348] sm:$0xff]
        %v1347 = vld [vmem:[%s0 + $0x350] sm:$0xff]
        %v1348 = vld [vmem:[%s0 + $0x358] sm:$0xff]
        %v1349 = vld [vmem:[%s0 + $0x360] sm:$0xff]
        %v1350 = vld [vmem:[%s0 + $0x368] sm:$0xff]
        %v1351 = vld [vmem:[%s0 + $0x370] sm:$0xff]
        %v1352 = vld [vmem:[%s0 + $0x378] sm:$0xff]
        %v1353 = vld [vmem:[%s0 + $0x380] sm:$0xff]
        %v1354 = vld [vmem:[%s0 + $0x388] sm:$0xff]
        %v1355 = vld [vmem:[%s0 + $0x390] sm:$0xff]
        %v1356 = vld [vmem:[%s0 + $0x398] sm:$0xff]
        %v1357 = vld [vmem:[%s0 + $0x3a0] sm:$0xff]
        %v1358 = vld [vmem:[%s0 + $0x3a8] sm:$0xff]
        %v1359 = vld [vmem:[%s0 + $0x3b0] sm:$0xff]
        %v1360 = vld [vmem:[%s0 + $0x3b8] sm:$0xff]
        %v1361 = vld [vmem:[%s0 + $0x3c0] sm:$0xff]
        %v1362 = vld [vmem:[%s0 + $0x3c8] sm:$0xff]
        %v1363 = vld [vmem:[%s0 + $0x3d0] sm:$0xff]
        %v1364 = vld [vmem:[%s0 + $0x3d8] sm:$0xff]
        %v1365 = vld [vmem:[%s0 + $0x3e0] sm:$0xff]
        %v1366 = vld [vmem:[%s0 + $0x3e8] sm:$0xff]
        %v1367 = vld [vmem:[%s0 + $0x3f0] sm:$0xff]
        %v1368 = vld [vmem:[%s0 + $0x3f8] sm:$0xff]
        %v1369 = vld [vmem:[%s0 + $0x400] sm:$0xff]
        %v1370 = vld [vmem:[%s0 + $0x408] sm:$0xff]
        %v1371 = vld [vmem:[%s0 + $0x410] sm:$0xff]
        %v1372 = vld [vmem:[%s0 + $0x418] sm:$0xff]
        %v1373 = vld [vmem:[%s0 + $0x420] sm:$0xff]
        %v1374 = vld [vmem:[%s0 + $0x428] sm:$0xff]
        %v1375 = vld [vmem:[%s0 + $0x430] sm:$0xff]
        %v1376 = vld [vmem:[%s0 + $0x438] sm:$0xff]
        %v1377 = vld [vmem:[%s0 + $0x440] sm:$0xff]
        %v1378 = vld [vmem:[%s0 + $0x448] sm:$0xff]
        %v1379 = vld [vmem:[%s0 + $0x450] sm:$0xff]
        %v1380 = vld [vmem:[%s0 + $0x458] sm:$0xff]
        %v1381 = vld [vmem:[%s0 + $0x460] sm:$0xff]
        %v1382 = vld [vmem:[%s0 + $0x468] sm:$0xff]
        %v1383 = vld [vmem:[%s0 + $0x470] sm:$0xff]
        %v1384 = vld [vmem:[%s0 + $0x478] sm:$0xff]
        %v1385 = vld [vmem:[%s0 + $0x480] sm:$0xff]
        %v1386 = vld [vmem:[%s0 + $0x488] sm:$0xff]
        %v1387 = vld [vmem:[%s0 + $0x490] sm:$0xff]
        %v1388 = vld [vmem:[%s0 + $0x498] sm:$0xff]
        %v1389 = vld [vmem:[%s0 + $0x4a0] sm:$0xff]
        %v1390 = vld [vmem:[%s0 + $0x4a8] sm:$0xff]
        %v1391 = vld [vmem:[%s0 + $0x4b0] sm:$0xff]
        %v1392 = vld [vmem:[%s0 + $0x4b8] sm:$0xff]
        %v1393 = vld [vmem:[%s0 + $0x4c0] sm:$0xff]
        %v1394 = vld [vmem:[%s0 + $0x4c8] sm:$0xff]
        %v1395 = vld [vmem:[%s0 + $0x4d0] sm:$0xff]
        %v1396 = vld [vmem:[%s0 + $0x4d8] sm:$0xff]
        %v1397 = vld [vmem:[%s0 + $0x4e0] sm:$0xff]
        %v1398 = vld [vmem:[%s0 + $0x4e8] sm:$0xff]
        %v1399 = vld [vmem:[%s0 + $0x4f0] sm:$0xff]
        %v1400 = vld [vmem:[%s0 + $0x4f8] sm:$0xff]
        %v1401 = vld [vmem:[%s0 + $0x500] sm:$0xff]
        %v1402 = vld [vmem:[%s0 + $0x508] sm:$0xff]
        %v1403 = vld [vmem:[%s0 + $0x510] sm:$0xff]
        %v1404 = vld [vmem:[%s0 + $0x518] sm:$0xff]
        %v1405 = vld [vmem:[%s0 + $0x520] sm:$0xff]
        %v1406 = vld [vmem:[%s0 + $0x528] sm:$0xff]
        %v1407 = vld [vmem:[%s0 + $0x530] sm:$0xff]
        %v1408 = vld [vmem:[%s0 + $0x538] sm:$0xff]
        %v1409 = vld [vmem:[%s0 + $0x540] sm:$0xff]
        %v1410 = vld [vmem:[%s0 + $0x548] sm:$0xff]
        %v1411 = vld [vmem:[%s0 + $0x550] sm:$0xff]
        %v1412 = vld [vmem:[%s0 + $0x558] sm:$0xff]
        %v1413 = vld [vmem:[%s0 + $0x560] sm:$0xff]
        %v1414 = vld [vmem:[%s0 + $0x568] sm:$0xff]
        %v1415 = vld [vmem:[%s0 + $0x570] sm:$0xff]
        %v1416 = vld [vmem:[%s0 + $0x578] sm:$0xff]
        %v1417 = vld [vmem:[%s0 + $0x580] sm:$0xff]
        %v1418 = vld [vmem:[%s0 + $0x588] sm:$0xff]
        %v1419 = vld [vmem:[%s0 + $0x590] sm:$0xff]
        %v1420 = vld [vmem:[%s0 + $0x598] sm:$0xff]
        %v1421 = vld [vmem:[%s0 + $0x5a0] sm:$0xff]
        %v1422 = vld [vmem:[%s0 + $0x5a8] sm:$0xff]
        %v1423 = vld [vmem:[%s0 + $0x5b0] sm:$0xff]
        %v1424 = vld [vmem:[%s0 + $0x5b8] sm:$0xff]
        %v1425 = vld [vmem:[%s0 + $0x5c0] sm:$0xff]
        %v1426 = vld [vmem:[%s0 + $0x5c8] sm:$0xff]
        %v1427 = vld [vmem:[%s0 + $0x5d0] sm:$0xff]
        %v1428 = vld [vmem:[%s0 + $0x5d8] sm:$0xff]
        %v1429 = vld [vmem:[%s0 + $0x5e0] sm:$0xff]
        %v1430 = vld [vmem:[%s0 + $0x5e8] sm:$0xff]
        %v1431 = vld [vmem:[%s0 + $0x5f0] sm:$0xff]
        %v1432 = vld [vmem:[%s0 + $0x5f8] sm:$0xff]
        %v1433 = vld [vmem:[%s0 + $0x600] sm:$0xff]
        %v1434 = vld [vmem:[%s0 + $0x608] sm:$0xff]
        %v1435 = vld [vmem:[%s0 + $0x610] sm:$0xff]
        %v1436 = vld [vmem:[%s0 + $0x618] sm:$0xff]
        %v1437 = vld [vmem:[%s0 + $0x620] sm:$0xff]
        %v1438 = vld [vmem:[%s0 + $0x628] sm:$0xff]
        %v1439 = vld [vmem:[%s0 + $0x630] sm:$0xff]
        %v1440 = vld [vmem:[%s0 + $0x638] sm:$0xff]
        %v1441 = vld [vmem:[%s0 + $0x640] sm:$0xff]
        %v1442 = vld [vmem:[%s0 + $0x648] sm:$0xff]
        %v1443 = vld [vmem:[%s0 + $0x650] sm:$0xff]
        %v1444 = vld [vmem:[%s0 + $0x658] sm:$0xff]
        %v1445 = vld [vmem:[%s0 + $0x660] sm:$0xff]
        %v1446 = vld [vmem:[%s0 + $0x668] sm:$0xff]
        %v1447 = vld [vmem:[%s0 + $0x670] sm:$0xff]
        %v1448 = vld [vmem:[%s0 + $0x678] sm:$0xff]
        %v1449 = vld [vmem:[%s0 + $0x680] sm:$0xff]
        %v1450 = vld [vmem:[%s0 + $0x688] sm:$0xff]
        %v1451 = vld [vmem:[%s0 + $0x690] sm:$0xff]
        %v1452 = vld [vmem:[%s0 + $0x698] sm:$0xff]
        %v1453 = vld [vmem:[%s0 + $0x6a0] sm:$0xff]
        %v1454 = vld [vmem:[%s0 + $0x6a8] sm:$0xff]
        %v1455 = vld [vmem:[%s0 + $0x6b0] sm:$0xff]
        %v1456 = vld [vmem:[%s0 + $0x6b8] sm:$0xff]
        %v1457 = vld [vmem:[%s0 + $0x6c0] sm:$0xff]
        %v1458 = vld [vmem:[%s0 + $0x6c8] sm:$0xff]
        %v1459 = vld [vmem:[%s0 + $0x6d0] sm:$0xff]
        %v1460 = vld [vmem:[%s0 + $0x6d8] sm:$0xff]
        %v1461 = vld [vmem:[%s0 + $0x6e0] sm:$0xff]
        %v1462 = vld [vmem:[%s0 + $0x6e8] sm:$0xff]
        %v1463 = vld [vmem:[%s0 + $0x6f0] sm:$0xff]
        %v1464 = vld [vmem:[%s0 + $0x6f8] sm:$0xff]
        %v1465 = vld [vmem:[%s0 + $0x700] sm:$0xff]
        %v1466 = vld [vmem:[%s0 + $0x708] sm:$0xff]
        %v1467 = vld [vmem:[%s0 + $0x710] sm:$0xff]
        %v1468 = vld [vmem:[%s0 + $0x718] sm:$0xff]
        %v1469 = vld [vmem:[%s0 + $0x720] sm:$0xff]
        %v1470 = vld [vmem:[%s0 + $0x728] sm:$0xff]
        %v1471 = vld [vmem:[%s0 + $0x730] sm:$0xff]
        %v1472 = vld [vmem:[%s0 + $0x738] sm:$0xff]
        %v1473 = vld [vmem:[%s0 + $0x740] sm:$0xff]
        %v1474 = vld [vmem:[%s0 + $0x748] sm:$0xff]
        %v1475 = vld [vmem:[%s0 + $0x750] sm:$0xff]
        %v1476 = vld [vmem:[%s0 + $0x758] sm:$0xff]
        %v1477 = vld [vmem:[%s0 + $0x760] sm:$0xff]
        %v1478 = vld [vmem:[%s0 + $0x768] sm:$0xff]
        %v1479 = vld [vmem:[%s0 + $0x770] sm:$0xff]
        %v1480 = vld [vmem:[%s0 + $0x778] sm:$0xff]
        %v1481 = vld [vmem:[%s0 + $0x780] sm:$0xff]
        %v1482 = vld [vmem:[%s0 + $0x788] sm:$0xff]
        %v1483 = vld [vmem:[%s0 + $0x790] sm:$0xff]
        %v1484 = vld [vmem:[%s0 + $0x798] sm:$0xff]
        %v1485 = vld [vmem:[%s0 + $0x7a0] sm:$0xff]
        %v1486 = vld [vmem:[%s0 + $0x7a8] sm:$0xff]
        %v1487 = vld [vmem:[%s0 + $0x7b0] sm:$0xff]
        %v1488 = vld [vmem:[%s0 + $0x7b8] sm:$0xff]
        %v1489 = vld [vmem:[%s0 + $0x7c0] sm:$0xff]
        %v1490 = vld [vmem:[%s0 + $0x7c8] sm:$0xff]
        %v1491 = vld [vmem:[%s0 + $0x7d0] sm:$0xff]
        %v1492 = vld [vmem:[%s0 + $0x7d8] sm:$0xff]
        %v1493 = vld [vmem:[%s0 + $0x7e0] sm:$0xff]
        %v1494 = vld [vmem:[%s0 + $0x7e8] sm:$0xff]
        %v1495 = vld [vmem:[%s0 + $0x7f0] sm:$0xff]
        %v1496 = vld [vmem:[%s0 + $0x7f8] sm:$0xff]
        %v1497 = vld [vmem:[%s0 + $0x800] sm:$0xff]
        %v1498 = vld [vmem:[%s0 + $0x808] sm:$0xff]
        %v1499 = vld [vmem:[%s0 + $0x810] sm:$0xff]
        %v1500 = vld [vmem:[%s0 + $0x818] sm:$0xff]
        %v1501 = vld [vmem:[%s0 + $0x820] sm:$0xff]
        %v1502 = vld [vmem:[%s0 + $0x828] sm:$0xff]
        %v1503 = vld [vmem:[%s0 + $0x830] sm:$0xff]
        %v1504 = vld [vmem:[%s0 + $0x838] sm:$0xff]
        %v1505 = vld [vmem:[%s0 + $0x840] sm:$0xff]
        %v1506 = vld [vmem:[%s0 + $0x848] sm:$0xff]
        %v1507 = vld [vmem:[%s0 + $0x850] sm:$0xff]
        %v1508 = vld [vmem:[%s0 + $0x858] sm:$0xff]
        %v1509 = vld [vmem:[%s0 + $0x860] sm:$0xff]
        %v1510 = vld [vmem:[%s0 + $0x868] sm:$0xff]
        %v1511 = vld [vmem:[%s0 + $0x870] sm:$0xff]
        %v1512 = vld [vmem:[%s0 + $0x878] sm:$0xff]
        %v1513 = vld [vmem:[%s0 + $0x880] sm:$0xff]
        %v1514 = vld [vmem:[%s0 + $0x888] sm:$0xff]
        %v1515 = vld [vmem:[%s0 + $0x890] sm:$0xff]
        %v1516 = vld [vmem:[%s0 + $0x898] sm:$0xff]
        %v1517 = vld [vmem:[%s0 + $0x8a0] sm:$0xff]
        %v1518 = vld [vmem:[%s0 + $0x8a8] sm:$0xff]
        %v1519 = vld [vmem:[%s0 + $0x8b0] sm:$0xff]
        %v1520 = vld [vmem:[%s0 + $0x8b8] sm:$0xff]
        %v1521 = vld [vmem:[%s0 + $0x8c0] sm:$0xff]
        %v1522 = vld [vmem:[%s0 + $0x8c8] sm:$0xff]
        %v1523 = vld [vmem:[%s0 + $0x8d0] sm:$0xff]
        %v1524 = vld [vmem:[%s0 + $0x8d8] sm:$0xff]
        %v1525 = vld [vmem:[%s0 + $0x8e0] sm:$0xff]
        %v1526 = vld [vmem:[%s0 + $0x8e8] sm:$0xff]
        %v1527 = vld [vmem:[%s0 + $0x8f0] sm:$0xff]
        %v1528 = vld [vmem:[%s0 + $0x8f8] sm:$0xff]
        %v1529 = vld [vmem:[%s0 + $0x900] sm:$0xff]
        %v1530 = vld [vmem:[%s0 + $0x908] sm:$0xff]
        %v1531 = vld [vmem:[%s0 + $0x910] sm:$0xff]
        %v1532 = vld [vmem:[%s0 + $0x918] sm:$0xff]
        %v1533 = vld [vmem:[%s0 + $0x920] sm:$0xff]
        %v1534 = vld [vmem:[%s0 + $0x928] sm:$0xff]
        %v1535 = vld [vmem:[%s0 + $0x930] sm:$0xff]
        %v1536 = vld [vmem:[%s0 + $0x938] sm:$0xff]
        %v1537 = vld [vmem:[%s0 + $0x940] sm:$0xff]
        %v1538 = vld [vmem:[%s0 + $0x948] sm:$0xff]
        %v1539 = vld [vmem:[%s0 + $0x950] sm:$0xff]
        %v1540 = vld [vmem:[%s0 + $0x958] sm:$0xff]
        %v1541 = vld [vmem:[%s0 + $0x960] sm:$0xff]
        %v1542 = vld [vmem:[%s0 + $0x968] sm:$0xff]
        %v1543 = vld [vmem:[%s0 + $0x970] sm:$0xff]
        %v1544 = vld [vmem:[%s0 + $0x978] sm:$0xff]
        %v1545 = vld [vmem:[%s0 + $0x980] sm:$0xff]
        %v1546 = vld [vmem:[%s0 + $0x988] sm:$0xff]
        %v1547 = vld [vmem:[%s0 + $0x990] sm:$0xff]
        %v1548 = vld [vmem:[%s0 + $0x998] sm:$0xff]
        %v1549 = vld [vmem:[%s0 + $0x9a0] sm:$0xff]
        %v1550 = vld [vmem:[%s0 + $0x9a8] sm:$0xff]
        %v1551 = vld [vmem:[%s0 + $0x9b0] sm:$0xff]
        %v1552 = vld [vmem:[%s0 + $0x9b8] sm:$0xff]
        %v1553 = vld [vmem:[%s0 + $0x9c0] sm:$0xff]
        %v1554 = vld [vmem:[%s0 + $0x9c8] sm:$0xff]
        %v1555 = vld [vmem:[%s0 + $0x9d0] sm:$0xff]
        %v1556 = vld [vmem:[%s0 + $0x9d8] sm:$0xff]
        %v1557 = vld [vmem:[%s0 + $0x9e0] sm:$0xff]
        %v1558 = vld [vmem:[%s0 + $0x9e8] sm:$0xff]
        %v1559 = vld [vmem:[%s0 + $0x9f0] sm:$0xff]
        %v1560 = vld [vmem:[%s0 + $0x9f8] sm:$0xff]
        %v1561 = vld [vmem:[%s0 + $0xa00] sm:$0xff]
        %v1562 = vld [vmem:[%s0 + $0xa08] sm:$0xff]
        %v1563 = vld [vmem:[%s0 + $0xa10] sm:$0xff]
        %v1564 = vld [vmem:[%s0 + $0xa18] sm:$0xff]
        %v1565 = vld [vmem:[%s0 + $0xa20] sm:$0xff]
        %v1566 = vld [vmem:[%s0 + $0xa28] sm:$0xff]
        %v1567 = vld [vmem:[%s0 + $0xa30] sm:$0xff]
        %v1568 = vld [vmem:[%s0 + $0xa38] sm:$0xff]
        %v1569 = vld [vmem:[%s0 + $0xa40] sm:$0xff]
        %v1570 = vld [vmem:[%s0 + $0xa48] sm:$0xff]
        %v1571 = vld [vmem:[%s0 + $0xa50] sm:$0xff]
        %v1572 = vld [vmem:[%s0 + $0xa58] sm:$0xff]
        %v1573 = vld [vmem:[%s0 + $0xa60] sm:$0xff]
        %v1574 = vld [vmem:[%s0 + $0xa68] sm:$0xff]
        %v1575 = vld [vmem:[%s0 + $0xa70] sm:$0xff]
        %v1576 = vld [vmem:[%s0 + $0xa78] sm:$0xff]
        %v1577 = vld [vmem:[%s0 + $0xa80] sm:$0xff]
        %v1578 = vld [vmem:[%s0 + $0xa88] sm:$0xff]
        %v1579 = vld [vmem:[%s0 + $0xa90] sm:$0xff]
        %v1580 = vld [vmem:[%s0 + $0xa98] sm:$0xff]
        %v1581 = vld [vmem:[%s0 + $0xaa0] sm:$0xff]
        %v1582 = vld [vmem:[%s0 + $0xaa8] sm:$0xff]
        %v1583 = vld [vmem:[%s0 + $0xab0] sm:$0xff]
        %v1584 = vld [vmem:[%s0 + $0xab8] sm:$0xff]
        %v1585 = vld [vmem:[%s0 + $0xac0] sm:$0xff]
        %v1586 = vld [vmem:[%s0 + $0xac8] sm:$0xff]
        %v1587 = vld [vmem:[%s0 + $0xad0] sm:$0xff]
        %v1588 = vld [vmem:[%s0 + $0xad8] sm:$0xff]
        %v1589 = vld [vmem:[%s0 + $0xae0] sm:$0xff]
        %v1590 = vld [vmem:[%s0 + $0xae8] sm:$0xff]
        %v1591 = vld [vmem:[%s0 + $0xaf0] sm:$0xff]
        %v1592 = vld [vmem:[%s0 + $0xaf8] sm:$0xff]
        %v1593 = vld [vmem:[%s0 + $0xb00] sm:$0xff]
        %v1594 = vld [vmem:[%s0 + $0xb08] sm:$0xff]
        %v1595 = vld [vmem:[%s0 + $0xb10] sm:$0xff]
        %v1596 = vld [vmem:[%s0 + $0xb18] sm:$0xff]
        %v1597 = vld [vmem:[%s0 + $0xb20] sm:$0xff]
        %v1598 = vld [vmem:[%s0 + $0xb28] sm:$0xff]
        %v1599 = vld [vmem:[%s0 + $0xb30] sm:$0xff]
        %v1600 = vld [vmem:[%s0 + $0xb38] sm:$0xff]
        %v1601 = vld [vmem:[%s0 + $0xb40] sm:$0xff]
        %v1602 = vld [vmem:[%s0 + $0xb48] sm:$0xff]
        %v1603 = vld [vmem:[%s0 + $0xb50] sm:$0xff]
        %v1604 = vld [vmem:[%s0 + $0xb58] sm:$0xff]
        %v1605 = vld [vmem:[%s0 + $0xb60] sm:$0xff]
        %v1606 = vld [vmem:[%s0 + $0xb68] sm:$0xff]
        %v1607 = vld [vmem:[%s0 + $0xb70] sm:$0xff]
        %v1608 = vld [vmem:[%s0 + $0xb78] sm:$0xff]
        %v1609 = vld [vmem:[%s0 + $0xb80] sm:$0xff]
        %v1610 = vld [vmem:[%s0 + $0xb88] sm:$0xff]
        %v1611 = vld [vmem:[%s0 + $0xb90] sm:$0xff]
        %v1612 = vld [vmem:[%s0 + $0xb98] sm:$0xff]
        %v1613 = vld [vmem:[%s0 + $0xba0] sm:$0xff]
        %v1614 = vld [vmem:[%s0 + $0xba8] sm:$0xff]
        %v1615 = vld [vmem:[%s0 + $0xbb0] sm:$0xff]
        %v1616 = vld [vmem:[%s0 + $0xbb8] sm:$0xff]
        %v1617 = vld [vmem:[%s0 + $0xbc0] sm:$0xff]
        %v1618 = vld [vmem:[%s0 + $0xbc8] sm:$0xff]
        %v1619 = vld [vmem:[%s0 + $0xbd0] sm:$0xff]
        %v1620 = vld [vmem:[%s0 + $0xbd8] sm:$0xff]
        %v1621 = vld [vmem:[%s0 + $0xbe0] sm:$0xff]
        %v1622 = vld [vmem:[%s0 + $0xbe8] sm:$0xff]
        %v1623 = vld [vmem:[%s0 + $0xbf0] sm:$0xff]
        %v1624 = vld [vmem:[%s0 + $0xbf8] sm:$0xff]
        %v1625 = vld [vmem:[%s0 + $0xc00] sm:$0xf]
        %v1626 = vld [vmem:[%s0 + $0xc08] sm:$0xf]
        %v1627 = vld [vmem:[%s0 + $0xc10] sm:$0xf]
        %v1628 = vld [vmem:[%s0 + $0xc18] sm:$0xf]
        %v1629 = vld [vmem:[%s0 + $0xc20] sm:$0xf]
        %v1630 = vld [vmem:[%s0 + $0xc28] sm:$0xf]
        %v1631 = vld [vmem:[%s0 + $0xc30] sm:$0xf]
        %v1632 = vld [vmem:[%s0 + $0xc38] sm:$0xf]
        %v1633 = vld [vmem:[%s0 + $0xc40] sm:$0xf]
        %v1634 = vld [vmem:[%s0 + $0xc48] sm:$0xf]
        %v1635 = vld [vmem:[%s0 + $0xc50] sm:$0xf]
        %v1636 = vld [vmem:[%s0 + $0xc58] sm:$0xf]
        %v1637 = vld [vmem:[%s0 + $0xc60] sm:$0xf]
        %v1638 = vld [vmem:[%s0 + $0xc68] sm:$0xf]
        %v1639 = vld [vmem:[%s0 + $0xc70] sm:$0xf]
        %v1640 = vld [vmem:[%s0 + $0xc78] sm:$0xf]
        %v1641 = vpack.c.bf16 %v1257, %v1241
        %v1642 = vpack.c.bf16 %v1258, %v1242
        %v1643 = vpack.c.bf16 %v1259, %v1243
        %v1644 = vpack.c.bf16 %v1260, %v1244
        %v1645 = vpack.c.bf16 %v1261, %v1245
        %v1646 = vpack.c.bf16 %v1262, %v1246
        %v1647 = vpack.c.bf16 %v1263, %v1247
        %v1648 = vpack.c.bf16 %v1264, %v1248
        %v1649 = vpack.c.bf16 %v1265, %v1249
        %v1650 = vpack.c.bf16 %v1266, %v1250
        %v1651 = vpack.c.bf16 %v1267, %v1251
        %v1652 = vpack.c.bf16 %v1268, %v1252
        %v1653 = vpack.c.bf16 %v1269, %v1253
        %v1654 = vpack.c.bf16 %v1270, %v1254
        %v1655 = vpack.c.bf16 %v1271, %v1255
        %v1656 = vpack.c.bf16 %v1272, %v1256
        %v1657 = vpack.c.bf16 %v1289, %v1273
        %v1658 = vpack.c.bf16 %v1290, %v1274
        %v1659 = vpack.c.bf16 %v1291, %v1275
        %v1660 = vpack.c.bf16 %v1292, %v1276
        %v1661 = vpack.c.bf16 %v1293, %v1277
        %v1662 = vpack.c.bf16 %v1294, %v1278
        %v1663 = vpack.c.bf16 %v1295, %v1279
        %v1664 = vpack.c.bf16 %v1296, %v1280
        %v1665 = vpack.c.bf16 %v1297, %v1281
        %v1666 = vpack.c.bf16 %v1298, %v1282
        %v1667 = vpack.c.bf16 %v1299, %v1283
        %v1668 = vpack.c.bf16 %v1300, %v1284
        %v1669 = vpack.c.bf16 %v1301, %v1285
        %v1670 = vpack.c.bf16 %v1302, %v1286
        %v1671 = vpack.c.bf16 %v1303, %v1287
        %v1672 = vpack.c.bf16 %v1304, %v1288
        %v1673 = vpack.c.bf16 %v1321, %v1305
        %v1674 = vpack.c.bf16 %v1322, %v1306
        %v1675 = vpack.c.bf16 %v1323, %v1307
        %v1676 = vpack.c.bf16 %v1324, %v1308
        %v1677 = vpack.c.bf16 %v1325, %v1309
        %v1678 = vpack.c.bf16 %v1326, %v1310
        %v1679 = vpack.c.bf16 %v1327, %v1311
        %v1680 = vpack.c.bf16 %v1328, %v1312
        %v1681 = vpack.c.bf16 %v1329, %v1313
        %v1682 = vpack.c.bf16 %v1330, %v1314
        %v1683 = vpack.c.bf16 %v1331, %v1315
        %v1684 = vpack.c.bf16 %v1332, %v1316
        %v1685 = vpack.c.bf16 %v1333, %v1317
        %v1686 = vpack.c.bf16 %v1334, %v1318
        %v1687 = vpack.c.bf16 %v1335, %v1319
        %v1688 = vpack.c.bf16 %v1336, %v1320
        %v1689 = vpack.c.bf16 %v1353, %v1337
        %v1690 = vpack.c.bf16 %v1354, %v1338
        %v1691 = vpack.c.bf16 %v1355, %v1339
        %v1692 = vpack.c.bf16 %v1356, %v1340
        %v1693 = vpack.c.bf16 %v1357, %v1341
        %v1694 = vpack.c.bf16 %v1358, %v1342
        %v1695 = vpack.c.bf16 %v1359, %v1343
        %v1696 = vpack.c.bf16 %v1360, %v1344
        %v1697 = vpack.c.bf16 %v1361, %v1345
        %v1698 = vpack.c.bf16 %v1362, %v1346
        %v1699 = vpack.c.bf16 %v1363, %v1347
        %v1700 = vpack.c.bf16 %v1364, %v1348
        %v1701 = vpack.c.bf16 %v1365, %v1349
        %v1702 = vpack.c.bf16 %v1366, %v1350
        %v1703 = vpack.c.bf16 %v1367, %v1351
        %v1704 = vpack.c.bf16 %v1368, %v1352
        %v1705 = vpack.c.bf16 %v1385, %v1369
        %v1706 = vpack.c.bf16 %v1386, %v1370
        %v1707 = vpack.c.bf16 %v1387, %v1371
        %v1708 = vpack.c.bf16 %v1388, %v1372
        %v1709 = vpack.c.bf16 %v1389, %v1373
        %v1710 = vpack.c.bf16 %v1390, %v1374
        %v1711 = vpack.c.bf16 %v1391, %v1375
        %v1712 = vpack.c.bf16 %v1392, %v1376
        %v1713 = vpack.c.bf16 %v1393, %v1377
        %v1714 = vpack.c.bf16 %v1394, %v1378
        %v1715 = vpack.c.bf16 %v1395, %v1379
        %v1716 = vpack.c.bf16 %v1396, %v1380
        %v1717 = vpack.c.bf16 %v1397, %v1381
        %v1718 = vpack.c.bf16 %v1398, %v1382
        %v1719 = vpack.c.bf16 %v1399, %v1383
        %v1720 = vpack.c.bf16 %v1400, %v1384
        %v1721 = vpack.c.bf16 %v1417, %v1401
        %v1722 = vpack.c.bf16 %v1418, %v1402
        %v1723 = vpack.c.bf16 %v1419, %v1403
        %v1724 = vpack.c.bf16 %v1420, %v1404
        %v1725 = vpack.c.bf16 %v1421, %v1405
        %v1726 = vpack.c.bf16 %v1422, %v1406
        %v1727 = vpack.c.bf16 %v1423, %v1407
        %v1728 = vpack.c.bf16 %v1424, %v1408
        %v1729 = vpack.c.bf16 %v1425, %v1409
        %v1730 = vpack.c.bf16 %v1426, %v1410
        %v1731 = vpack.c.bf16 %v1427, %v1411
        %v1732 = vpack.c.bf16 %v1428, %v1412
        %v1733 = vpack.c.bf16 %v1429, %v1413
        %v1734 = vpack.c.bf16 %v1430, %v1414
        %v1735 = vpack.c.bf16 %v1431, %v1415
        %v1736 = vpack.c.bf16 %v1432, %v1416
        %v1737 = vpack.c.bf16 %v1449, %v1433
        %v1738 = vpack.c.bf16 %v1450, %v1434
        %v1739 = vpack.c.bf16 %v1451, %v1435
        %v1740 = vpack.c.bf16 %v1452, %v1436
        %v1741 = vpack.c.bf16 %v1453, %v1437
        %v1742 = vpack.c.bf16 %v1454, %v1438
        %v1743 = vpack.c.bf16 %v1455, %v1439
        %v1744 = vpack.c.bf16 %v1456, %v1440
        %v1745 = vpack.c.bf16 %v1457, %v1441
        %v1746 = vpack.c.bf16 %v1458, %v1442
        %v1747 = vpack.c.bf16 %v1459, %v1443
        %v1748 = vpack.c.bf16 %v1460, %v1444
        %v1749 = vpack.c.bf16 %v1461, %v1445
        %v1750 = vpack.c.bf16 %v1462, %v1446
        %v1751 = vpack.c.bf16 %v1463, %v1447
        %v1752 = vpack.c.bf16 %v1464, %v1448
        %v1753 = vpack.c.bf16 %v1481, %v1465
        %v1754 = vpack.c.bf16 %v1482, %v1466
        %v1755 = vpack.c.bf16 %v1483, %v1467
        %v1756 = vpack.c.bf16 %v1484, %v1468
        %v1757 = vpack.c.bf16 %v1485, %v1469
        %v1758 = vpack.c.bf16 %v1486, %v1470
        %v1759 = vpack.c.bf16 %v1487, %v1471
        %v1760 = vpack.c.bf16 %v1488, %v1472
        %v1761 = vpack.c.bf16 %v1489, %v1473
        %v1762 = vpack.c.bf16 %v1490, %v1474
        %v1763 = vpack.c.bf16 %v1491, %v1475
        %v1764 = vpack.c.bf16 %v1492, %v1476
        %v1765 = vpack.c.bf16 %v1493, %v1477
        %v1766 = vpack.c.bf16 %v1494, %v1478
        %v1767 = vpack.c.bf16 %v1495, %v1479
        %v1768 = vpack.c.bf16 %v1496, %v1480
        %v1769 = vpack.c.bf16 %v1513, %v1497
        %v1770 = vpack.c.bf16 %v1514, %v1498
        %v1771 = vpack.c.bf16 %v1515, %v1499
        %v1772 = vpack.c.bf16 %v1516, %v1500
        %v1773 = vpack.c.bf16 %v1517, %v1501
        %v1774 = vpack.c.bf16 %v1518, %v1502
        %v1775 = vpack.c.bf16 %v1519, %v1503
        %v1776 = vpack.c.bf16 %v1520, %v1504
        %v1777 = vpack.c.bf16 %v1521, %v1505
        %v1778 = vpack.c.bf16 %v1522, %v1506
        %v1779 = vpack.c.bf16 %v1523, %v1507
        %v1780 = vpack.c.bf16 %v1524, %v1508
        %v1781 = vpack.c.bf16 %v1525, %v1509
        %v1782 = vpack.c.bf16 %v1526, %v1510
        %v1783 = vpack.c.bf16 %v1527, %v1511
        %v1784 = vpack.c.bf16 %v1528, %v1512
        %v1785 = vpack.c.bf16 %v1545, %v1529
        %v1786 = vpack.c.bf16 %v1546, %v1530
        %v1787 = vpack.c.bf16 %v1547, %v1531
        %v1788 = vpack.c.bf16 %v1548, %v1532
        %v1789 = vpack.c.bf16 %v1549, %v1533
        %v1790 = vpack.c.bf16 %v1550, %v1534
        %v1791 = vpack.c.bf16 %v1551, %v1535
        %v1792 = vpack.c.bf16 %v1552, %v1536
        %v1793 = vpack.c.bf16 %v1553, %v1537
        %v1794 = vpack.c.bf16 %v1554, %v1538
        %v1795 = vpack.c.bf16 %v1555, %v1539
        %v1796 = vpack.c.bf16 %v1556, %v1540
        %v1797 = vpack.c.bf16 %v1557, %v1541
        %v1798 = vpack.c.bf16 %v1558, %v1542
        %v1799 = vpack.c.bf16 %v1559, %v1543
        %v1800 = vpack.c.bf16 %v1560, %v1544
        %v1801 = vpack.c.bf16 %v1577, %v1561
        %v1802 = vpack.c.bf16 %v1578, %v1562
        %v1803 = vpack.c.bf16 %v1579, %v1563
        %v1804 = vpack.c.bf16 %v1580, %v1564
        %v1805 = vpack.c.bf16 %v1581, %v1565
        %v1806 = vpack.c.bf16 %v1582, %v1566
        %v1807 = vpack.c.bf16 %v1583, %v1567
        %v1808 = vpack.c.bf16 %v1584, %v1568
        %v1809 = vpack.c.bf16 %v1585, %v1569
        %v1810 = vpack.c.bf16 %v1586, %v1570
        %v1811 = vpack.c.bf16 %v1587, %v1571
        %v1812 = vpack.c.bf16 %v1588, %v1572
        %v1813 = vpack.c.bf16 %v1589, %v1573
        %v1814 = vpack.c.bf16 %v1590, %v1574
        %v1815 = vpack.c.bf16 %v1591, %v1575
        %v1816 = vpack.c.bf16 %v1592, %v1576
        %v1817 = vpack.c.bf16 %v1609, %v1593
        %v1818 = vpack.c.bf16 %v1610, %v1594
        %v1819 = vpack.c.bf16 %v1611, %v1595
        %v1820 = vpack.c.bf16 %v1612, %v1596
        %v1821 = vpack.c.bf16 %v1613, %v1597
        %v1822 = vpack.c.bf16 %v1614, %v1598
        %v1823 = vpack.c.bf16 %v1615, %v1599
        %v1824 = vpack.c.bf16 %v1616, %v1600
        %v1825 = vpack.c.bf16 %v1617, %v1601
        %v1826 = vpack.c.bf16 %v1618, %v1602
        %v1827 = vpack.c.bf16 %v1619, %v1603
        %v1828 = vpack.c.bf16 %v1620, %v1604
        %v1829 = vpack.c.bf16 %v1621, %v1605
        %v1830 = vpack.c.bf16 %v1622, %v1606
        %v1831 = vpack.c.bf16 %v1623, %v1607
        %v1832 = vpack.c.bf16 %v1624, %v1608
        %v1833 = vpack.c.bf16 %v1625, %v1625
        %v1834 = vpack.c.bf16 %v1626, %v1626
        %v1835 = vpack.c.bf16 %v1627, %v1627
        %v1836 = vpack.c.bf16 %v1628, %v1628
        %v1837 = vpack.c.bf16 %v1629, %v1629
        %v1838 = vpack.c.bf16 %v1630, %v1630
        %v1839 = vpack.c.bf16 %v1631, %v1631
        %v1840 = vpack.c.bf16 %v1632, %v1632
        %v1841 = vpack.c.bf16 %v1633, %v1633
        %v1842 = vpack.c.bf16 %v1634, %v1634
        %v1843 = vpack.c.bf16 %v1635, %v1635
        %v1844 = vpack.c.bf16 %v1636, %v1636
        %v1845 = vpack.c.bf16 %v1637, %v1637
        %v1846 = vpack.c.bf16 %v1638, %v1638
        %v1847 = vpack.c.bf16 %v1639, %v1639
        %v1848 = vpack.c.bf16 %v1640, %v1640
        %v1849 = vld [vmem:[%s1210] sm:$0xff]
        %v1850 = vld [vmem:[%s1210 + $0x8] sm:$0xff]
        %v1851 = vld [vmem:[%s1210 + $0x10] sm:$0xff]
        %v1852 = vld [vmem:[%s1210 + $0x18] sm:$0xff]
        %v1853 = vld [vmem:[%s1210 + $0x20] sm:$0xff]
        %v1854 = vld [vmem:[%s1210 + $0x28] sm:$0xff]
        %v1855 = vld [vmem:[%s1210 + $0x30] sm:$0xff]
        %v1856 = vld [vmem:[%s1210 + $0x38] sm:$0xff]
        %v1857 = vld [vmem:[%s1210 + $0x40] sm:$0xff]
        %v1858 = vld [vmem:[%s1210 + $0x48] sm:$0xff]
        %v1859 = vld [vmem:[%s1210 + $0x50] sm:$0xff]
        %v1860 = vld [vmem:[%s1210 + $0x58] sm:$0xff]
        %v1861 = vld [vmem:[%s1210 + $0x60] sm:$0xff]
        %v1862 = vld [vmem:[%s1210 + $0x68] sm:$0xff]
        %v1863 = vld [vmem:[%s1210 + $0x70] sm:$0xff]
        %v1864 = vld [vmem:[%s1210 + $0x78] sm:$0xff]
        %v1865 = vld [vmem:[%s1210 + $0x80] sm:$0xff]
        %v1866 = vld [vmem:[%s1210 + $0x88] sm:$0xff]
        %v1867 = vld [vmem:[%s1210 + $0x90] sm:$0xff]
        %v1868 = vld [vmem:[%s1210 + $0x98] sm:$0xff]
        %v1869 = vld [vmem:[%s1210 + $0xa0] sm:$0xff]
        %v1870 = vld [vmem:[%s1210 + $0xa8] sm:$0xff]
        %v1871 = vld [vmem:[%s1210 + $0xb0] sm:$0xff]
        %v1872 = vld [vmem:[%s1210 + $0xb8] sm:$0xff]
        %v1873 = vld [vmem:[%s1210 + $0xc0] sm:$0xff]
        %v1874 = vld [vmem:[%s1210 + $0xc8] sm:$0xff]
        %v1875 = vld [vmem:[%s1210 + $0xd0] sm:$0xff]
        %v1876 = vld [vmem:[%s1210 + $0xd8] sm:$0xff]
        %v1877 = vld [vmem:[%s1210 + $0xe0] sm:$0xff]
        %v1878 = vld [vmem:[%s1210 + $0xe8] sm:$0xff]
        %v1879 = vld [vmem:[%s1210 + $0xf0] sm:$0xff]
        %v1880 = vld [vmem:[%s1210 + $0xf8] sm:$0xff]
        %v1881 = vld [vmem:[%s1210 + $0x100] sm:$0xff]
        %v1882 = vld [vmem:[%s1210 + $0x108] sm:$0xff]
        %v1883 = vld [vmem:[%s1210 + $0x110] sm:$0xff]
        %v1884 = vld [vmem:[%s1210 + $0x118] sm:$0xff]
        %v1885 = vld [vmem:[%s1210 + $0x120] sm:$0xff]
        %v1886 = vld [vmem:[%s1210 + $0x128] sm:$0xff]
        %v1887 = vld [vmem:[%s1210 + $0x130] sm:$0xff]
        %v1888 = vld [vmem:[%s1210 + $0x138] sm:$0xff]
        %v1889 = vld [vmem:[%s1210 + $0x140] sm:$0xff]
        %v1890 = vld [vmem:[%s1210 + $0x148] sm:$0xff]
        %v1891 = vld [vmem:[%s1210 + $0x150] sm:$0xff]
        %v1892 = vld [vmem:[%s1210 + $0x158] sm:$0xff]
        %v1893 = vld [vmem:[%s1210 + $0x160] sm:$0xff]
        %v1894 = vld [vmem:[%s1210 + $0x168] sm:$0xff]
        %v1895 = vld [vmem:[%s1210 + $0x170] sm:$0xff]
        %v1896 = vld [vmem:[%s1210 + $0x178] sm:$0xff]
        %v1897 = vld [vmem:[%s1210 + $0x180] sm:$0xff]
        %v1898 = vld [vmem:[%s1210 + $0x188] sm:$0xff]
        %v1899 = vld [vmem:[%s1210 + $0x190] sm:$0xff]
        %v1900 = vld [vmem:[%s1210 + $0x198] sm:$0xff]
        %v1901 = vld [vmem:[%s1210 + $0x1a0] sm:$0xff]
        %v1902 = vld [vmem:[%s1210 + $0x1a8] sm:$0xff]
        %v1903 = vld [vmem:[%s1210 + $0x1b0] sm:$0xff]
        %v1904 = vld [vmem:[%s1210 + $0x1b8] sm:$0xff]
        %v1905 = vld [vmem:[%s1210 + $0x1c0] sm:$0xff]
        %v1906 = vld [vmem:[%s1210 + $0x1c8] sm:$0xff]
        %v1907 = vld [vmem:[%s1210 + $0x1d0] sm:$0xff]
        %v1908 = vld [vmem:[%s1210 + $0x1d8] sm:$0xff]
        %v1909 = vld [vmem:[%s1210 + $0x1e0] sm:$0xff]
        %v1910 = vld [vmem:[%s1210 + $0x1e8] sm:$0xff]
        %v1911 = vld [vmem:[%s1210 + $0x1f0] sm:$0xff]
        %v1912 = vld [vmem:[%s1210 + $0x1f8] sm:$0xff]
        %v1913 = vld [vmem:[%s1210 + $0x200] sm:$0xff]
        %v1914 = vld [vmem:[%s1210 + $0x208] sm:$0xff]
        %v1915 = vld [vmem:[%s1210 + $0x210] sm:$0xff]
        %v1916 = vld [vmem:[%s1210 + $0x218] sm:$0xff]
        %v1917 = vld [vmem:[%s1210 + $0x220] sm:$0xff]
        %v1918 = vld [vmem:[%s1210 + $0x228] sm:$0xff]
        %v1919 = vld [vmem:[%s1210 + $0x230] sm:$0xff]
        %v1920 = vld [vmem:[%s1210 + $0x238] sm:$0xff]
        %v1921 = vld [vmem:[%s1210 + $0x240] sm:$0xff]
        %v1922 = vld [vmem:[%s1210 + $0x248] sm:$0xff]
        %v1923 = vld [vmem:[%s1210 + $0x250] sm:$0xff]
        %v1924 = vld [vmem:[%s1210 + $0x258] sm:$0xff]
        %v1925 = vld [vmem:[%s1210 + $0x260] sm:$0xff]
        %v1926 = vld [vmem:[%s1210 + $0x268] sm:$0xff]
        %v1927 = vld [vmem:[%s1210 + $0x270] sm:$0xff]
        %v1928 = vld [vmem:[%s1210 + $0x278] sm:$0xff]
        %v1929 = vld [vmem:[%s1210 + $0x280] sm:$0xff]
        %v1930 = vld [vmem:[%s1210 + $0x288] sm:$0xff]
        %v1931 = vld [vmem:[%s1210 + $0x290] sm:$0xff]
        %v1932 = vld [vmem:[%s1210 + $0x298] sm:$0xff]
        %v1933 = vld [vmem:[%s1210 + $0x2a0] sm:$0xff]
        %v1934 = vld [vmem:[%s1210 + $0x2a8] sm:$0xff]
        %v1935 = vld [vmem:[%s1210 + $0x2b0] sm:$0xff]
        %v1936 = vld [vmem:[%s1210 + $0x2b8] sm:$0xff]
        %v1937 = vld [vmem:[%s1210 + $0x2c0] sm:$0xff]
        %v1938 = vld [vmem:[%s1210 + $0x2c8] sm:$0xff]
        %v1939 = vld [vmem:[%s1210 + $0x2d0] sm:$0xff]
        %v1940 = vld [vmem:[%s1210 + $0x2d8] sm:$0xff]
        %v1941 = vld [vmem:[%s1210 + $0x2e0] sm:$0xff]
        %v1942 = vld [vmem:[%s1210 + $0x2e8] sm:$0xff]
        %v1943 = vld [vmem:[%s1210 + $0x2f0] sm:$0xff]
        %v1944 = vld [vmem:[%s1210 + $0x2f8] sm:$0xff]
        %v1945 = vld [vmem:[%s1210 + $0x300] sm:$0xff]
        %v1946 = vld [vmem:[%s1210 + $0x308] sm:$0xff]
        %v1947 = vld [vmem:[%s1210 + $0x310] sm:$0xff]
        %v1948 = vld [vmem:[%s1210 + $0x318] sm:$0xff]
        %v1949 = vld [vmem:[%s1210 + $0x320] sm:$0xff]
        %v1950 = vld [vmem:[%s1210 + $0x328] sm:$0xff]
        %v1951 = vld [vmem:[%s1210 + $0x330] sm:$0xff]
        %v1952 = vld [vmem:[%s1210 + $0x338] sm:$0xff]
        %v1953 = vld [vmem:[%s1210 + $0x340] sm:$0xff]
        %v1954 = vld [vmem:[%s1210 + $0x348] sm:$0xff]
        %v1955 = vld [vmem:[%s1210 + $0x350] sm:$0xff]
        %v1956 = vld [vmem:[%s1210 + $0x358] sm:$0xff]
        %v1957 = vld [vmem:[%s1210 + $0x360] sm:$0xff]
        %v1958 = vld [vmem:[%s1210 + $0x368] sm:$0xff]
        %v1959 = vld [vmem:[%s1210 + $0x370] sm:$0xff]
        %v1960 = vld [vmem:[%s1210 + $0x378] sm:$0xff]
        %v1961 = vld [vmem:[%s1210 + $0x380] sm:$0xff]
        %v1962 = vld [vmem:[%s1210 + $0x388] sm:$0xff]
        %v1963 = vld [vmem:[%s1210 + $0x390] sm:$0xff]
        %v1964 = vld [vmem:[%s1210 + $0x398] sm:$0xff]
        %v1965 = vld [vmem:[%s1210 + $0x3a0] sm:$0xff]
        %v1966 = vld [vmem:[%s1210 + $0x3a8] sm:$0xff]
        %v1967 = vld [vmem:[%s1210 + $0x3b0] sm:$0xff]
        %v1968 = vld [vmem:[%s1210 + $0x3b8] sm:$0xff]
        %v1969 = vld [vmem:[%s1210 + $0x3c0] sm:$0xff]
        %v1970 = vld [vmem:[%s1210 + $0x3c8] sm:$0xff]
        %v1971 = vld [vmem:[%s1210 + $0x3d0] sm:$0xff]
        %v1972 = vld [vmem:[%s1210 + $0x3d8] sm:$0xff]
        %v1973 = vld [vmem:[%s1210 + $0x3e0] sm:$0xff]
        %v1974 = vld [vmem:[%s1210 + $0x3e8] sm:$0xff]
        %v1975 = vld [vmem:[%s1210 + $0x3f0] sm:$0xff]
        %v1976 = vld [vmem:[%s1210 + $0x3f8] sm:$0xff]
        %v1977 = vld [vmem:[%s1210 + $0x400] sm:$0xff]
        %v1978 = vld [vmem:[%s1210 + $0x408] sm:$0xff]
        %v1979 = vld [vmem:[%s1210 + $0x410] sm:$0xff]
        %v1980 = vld [vmem:[%s1210 + $0x418] sm:$0xff]
        %v1981 = vld [vmem:[%s1210 + $0x420] sm:$0xff]
        %v1982 = vld [vmem:[%s1210 + $0x428] sm:$0xff]
        %v1983 = vld [vmem:[%s1210 + $0x430] sm:$0xff]
        %v1984 = vld [vmem:[%s1210 + $0x438] sm:$0xff]
        %v1985 = vld [vmem:[%s1210 + $0x440] sm:$0xff]
        %v1986 = vld [vmem:[%s1210 + $0x448] sm:$0xff]
        %v1987 = vld [vmem:[%s1210 + $0x450] sm:$0xff]
        %v1988 = vld [vmem:[%s1210 + $0x458] sm:$0xff]
        %v1989 = vld [vmem:[%s1210 + $0x460] sm:$0xff]
        %v1990 = vld [vmem:[%s1210 + $0x468] sm:$0xff]
        %v1991 = vld [vmem:[%s1210 + $0x470] sm:$0xff]
        %v1992 = vld [vmem:[%s1210 + $0x478] sm:$0xff]
        %v1993 = vld [vmem:[%s1210 + $0x480] sm:$0xff]
        %v1994 = vld [vmem:[%s1210 + $0x488] sm:$0xff]
        %v1995 = vld [vmem:[%s1210 + $0x490] sm:$0xff]
        %v1996 = vld [vmem:[%s1210 + $0x498] sm:$0xff]
        %v1997 = vld [vmem:[%s1210 + $0x4a0] sm:$0xff]
        %v1998 = vld [vmem:[%s1210 + $0x4a8] sm:$0xff]
        %v1999 = vld [vmem:[%s1210 + $0x4b0] sm:$0xff]
        %v2000 = vld [vmem:[%s1210 + $0x4b8] sm:$0xff]
        %v2001 = vld [vmem:[%s1210 + $0x4c0] sm:$0xff]
        %v2002 = vld [vmem:[%s1210 + $0x4c8] sm:$0xff]
        %v2003 = vld [vmem:[%s1210 + $0x4d0] sm:$0xff]
        %v2004 = vld [vmem:[%s1210 + $0x4d8] sm:$0xff]
        %v2005 = vld [vmem:[%s1210 + $0x4e0] sm:$0xff]
        %v2006 = vld [vmem:[%s1210 + $0x4e8] sm:$0xff]
        %v2007 = vld [vmem:[%s1210 + $0x4f0] sm:$0xff]
        %v2008 = vld [vmem:[%s1210 + $0x4f8] sm:$0xff]
        %v2009 = vld [vmem:[%s1210 + $0x500] sm:$0xff]
        %v2010 = vld [vmem:[%s1210 + $0x508] sm:$0xff]
        %v2011 = vld [vmem:[%s1210 + $0x510] sm:$0xff]
        %v2012 = vld [vmem:[%s1210 + $0x518] sm:$0xff]
        %v2013 = vld [vmem:[%s1210 + $0x520] sm:$0xff]
        %v2014 = vld [vmem:[%s1210 + $0x528] sm:$0xff]
        %v2015 = vld [vmem:[%s1210 + $0x530] sm:$0xff]
        %v2016 = vld [vmem:[%s1210 + $0x538] sm:$0xff]
        %v2017 = vld [vmem:[%s1210 + $0x540] sm:$0xff]
        %v2018 = vld [vmem:[%s1210 + $0x548] sm:$0xff]
        %v2019 = vld [vmem:[%s1210 + $0x550] sm:$0xff]
        %v2020 = vld [vmem:[%s1210 + $0x558] sm:$0xff]
        %v2021 = vld [vmem:[%s1210 + $0x560] sm:$0xff]
        %v2022 = vld [vmem:[%s1210 + $0x568] sm:$0xff]
        %v2023 = vld [vmem:[%s1210 + $0x570] sm:$0xff]
        %v2024 = vld [vmem:[%s1210 + $0x578] sm:$0xff]
        %v2025 = vld [vmem:[%s1210 + $0x580] sm:$0xff]
        %v2026 = vld [vmem:[%s1210 + $0x588] sm:$0xff]
        %v2027 = vld [vmem:[%s1210 + $0x590] sm:$0xff]
        %v2028 = vld [vmem:[%s1210 + $0x598] sm:$0xff]
        %v2029 = vld [vmem:[%s1210 + $0x5a0] sm:$0xff]
        %v2030 = vld [vmem:[%s1210 + $0x5a8] sm:$0xff]
        %v2031 = vld [vmem:[%s1210 + $0x5b0] sm:$0xff]
        %v2032 = vld [vmem:[%s1210 + $0x5b8] sm:$0xff]
        %v2033 = vld [vmem:[%s1210 + $0x5c0] sm:$0xff]
        %v2034 = vld [vmem:[%s1210 + $0x5c8] sm:$0xff]
        %v2035 = vld [vmem:[%s1210 + $0x5d0] sm:$0xff]
        %v2036 = vld [vmem:[%s1210 + $0x5d8] sm:$0xff]
        %v2037 = vld [vmem:[%s1210 + $0x5e0] sm:$0xff]
        %v2038 = vld [vmem:[%s1210 + $0x5e8] sm:$0xff]
        %v2039 = vld [vmem:[%s1210 + $0x5f0] sm:$0xff]
        %v2040 = vld [vmem:[%s1210 + $0x5f8] sm:$0xff]
        %v2041 = vld [vmem:[%s1210 + $0x600] sm:$0xff]
        %v2042 = vld [vmem:[%s1210 + $0x608] sm:$0xff]
        %v2043 = vld [vmem:[%s1210 + $0x610] sm:$0xff]
        %v2044 = vld [vmem:[%s1210 + $0x618] sm:$0xff]
        %v2045 = vld [vmem:[%s1210 + $0x620] sm:$0xff]
        %v2046 = vld [vmem:[%s1210 + $0x628] sm:$0xff]
        %v2047 = vld [vmem:[%s1210 + $0x630] sm:$0xff]
        %v2048 = vld [vmem:[%s1210 + $0x638] sm:$0xff]
        %v2049 = vld [vmem:[%s1210 + $0x640] sm:$0xff]
        %v2050 = vld [vmem:[%s1210 + $0x648] sm:$0xff]
        %v2051 = vld [vmem:[%s1210 + $0x650] sm:$0xff]
        %v2052 = vld [vmem:[%s1210 + $0x658] sm:$0xff]
        %v2053 = vld [vmem:[%s1210 + $0x660] sm:$0xff]
        %v2054 = vld [vmem:[%s1210 + $0x668] sm:$0xff]
        %v2055 = vld [vmem:[%s1210 + $0x670] sm:$0xff]
        %v2056 = vld [vmem:[%s1210 + $0x678] sm:$0xff]
        %v2057 = vld [vmem:[%s1210 + $0x680] sm:$0xff]
        %v2058 = vld [vmem:[%s1210 + $0x688] sm:$0xff]
        %v2059 = vld [vmem:[%s1210 + $0x690] sm:$0xff]
        %v2060 = vld [vmem:[%s1210 + $0x698] sm:$0xff]
        %v2061 = vld [vmem:[%s1210 + $0x6a0] sm:$0xff]
        %v2062 = vld [vmem:[%s1210 + $0x6a8] sm:$0xff]
        %v2063 = vld [vmem:[%s1210 + $0x6b0] sm:$0xff]
        %v2064 = vld [vmem:[%s1210 + $0x6b8] sm:$0xff]
        %v2065 = vld [vmem:[%s1210 + $0x6c0] sm:$0xff]
        %v2066 = vld [vmem:[%s1210 + $0x6c8] sm:$0xff]
        %v2067 = vld [vmem:[%s1210 + $0x6d0] sm:$0xff]
        %v2068 = vld [vmem:[%s1210 + $0x6d8] sm:$0xff]
        %v2069 = vld [vmem:[%s1210 + $0x6e0] sm:$0xff]
        %v2070 = vld [vmem:[%s1210 + $0x6e8] sm:$0xff]
        %v2071 = vld [vmem:[%s1210 + $0x6f0] sm:$0xff]
        %v2072 = vld [vmem:[%s1210 + $0x6f8] sm:$0xff]
        %v2073 = vld [vmem:[%s1210 + $0x700] sm:$0xff]
        %v2074 = vld [vmem:[%s1210 + $0x708] sm:$0xff]
        %v2075 = vld [vmem:[%s1210 + $0x710] sm:$0xff]
        %v2076 = vld [vmem:[%s1210 + $0x718] sm:$0xff]
        %v2077 = vld [vmem:[%s1210 + $0x720] sm:$0xff]
        %v2078 = vld [vmem:[%s1210 + $0x728] sm:$0xff]
        %v2079 = vld [vmem:[%s1210 + $0x730] sm:$0xff]
        %v2080 = vld [vmem:[%s1210 + $0x738] sm:$0xff]
        %v2081 = vld [vmem:[%s1210 + $0x740] sm:$0xff]
        %v2082 = vld [vmem:[%s1210 + $0x748] sm:$0xff]
        %v2083 = vld [vmem:[%s1210 + $0x750] sm:$0xff]
        %v2084 = vld [vmem:[%s1210 + $0x758] sm:$0xff]
        %v2085 = vld [vmem:[%s1210 + $0x760] sm:$0xff]
        %v2086 = vld [vmem:[%s1210 + $0x768] sm:$0xff]
        %v2087 = vld [vmem:[%s1210 + $0x770] sm:$0xff]
        %v2088 = vld [vmem:[%s1210 + $0x778] sm:$0xff]
        %v2089 = vld [vmem:[%s1210 + $0x780] sm:$0xff]
        %v2090 = vld [vmem:[%s1210 + $0x788] sm:$0xff]
        %v2091 = vld [vmem:[%s1210 + $0x790] sm:$0xff]
        %v2092 = vld [vmem:[%s1210 + $0x798] sm:$0xff]
        %v2093 = vld [vmem:[%s1210 + $0x7a0] sm:$0xff]
        %v2094 = vld [vmem:[%s1210 + $0x7a8] sm:$0xff]
        %v2095 = vld [vmem:[%s1210 + $0x7b0] sm:$0xff]
        %v2096 = vld [vmem:[%s1210 + $0x7b8] sm:$0xff]
        %v2097 = vld [vmem:[%s1210 + $0x7c0] sm:$0xff]
        %v2098 = vld [vmem:[%s1210 + $0x7c8] sm:$0xff]
        %v2099 = vld [vmem:[%s1210 + $0x7d0] sm:$0xff]
        %v2100 = vld [vmem:[%s1210 + $0x7d8] sm:$0xff]
        %v2101 = vld [vmem:[%s1210 + $0x7e0] sm:$0xff]
        %v2102 = vld [vmem:[%s1210 + $0x7e8] sm:$0xff]
        %v2103 = vld [vmem:[%s1210 + $0x7f0] sm:$0xff]
        %v2104 = vld [vmem:[%s1210 + $0x7f8] sm:$0xff]
        %v2105 = vld [vmem:[%s1238] sm:$0x3]
        %v2107 = vlaneseq
        %v2108 = vshrl.u32 %v2107, 7
        %v2109 = vsub.s32 0, %v2108
        %v2110 = vrot.slane %v2105, %v2109
        %v2111 = vlaneseq
        %v2112 = vshrl.u32 %v2111, 7
        %v2113 = vsub.s32 1, %v2112
        %v2114 = vrot.slane %v2105, %v2113
        %v2373 = vunpack.c.l.b16 %v1849
        %v2374 = vunpack.c.h.b16 %v1849
        %v2375 = vunpack.c.l.b16 %v1850
        %v2376 = vunpack.c.h.b16 %v1850
        %v2377 = vunpack.c.l.b16 %v1851
        %v2378 = vunpack.c.h.b16 %v1851
        %v2379 = vunpack.c.l.b16 %v1852
        %v2380 = vunpack.c.h.b16 %v1852
        %v2381 = vunpack.c.l.b16 %v1853
        %v2382 = vunpack.c.h.b16 %v1853
        %v2383 = vunpack.c.l.b16 %v1854
        %v2384 = vunpack.c.h.b16 %v1854
        %v2385 = vunpack.c.l.b16 %v1855
        %v2386 = vunpack.c.h.b16 %v1855
        %v2387 = vunpack.c.l.b16 %v1856
        %v2388 = vunpack.c.h.b16 %v1856
        %v2389 = vunpack.c.l.b16 %v1857
        %v2390 = vunpack.c.h.b16 %v1857
        %v2391 = vunpack.c.l.b16 %v1858
        %v2392 = vunpack.c.h.b16 %v1858
        %v2393 = vunpack.c.l.b16 %v1859
        %v2394 = vunpack.c.h.b16 %v1859
        %v2395 = vunpack.c.l.b16 %v1860
        %v2396 = vunpack.c.h.b16 %v1860
        %v2397 = vunpack.c.l.b16 %v1861
        %v2398 = vunpack.c.h.b16 %v1861
        %v2399 = vunpack.c.l.b16 %v1862
        %v2400 = vunpack.c.h.b16 %v1862
        %v2401 = vunpack.c.l.b16 %v1863
        %v2402 = vunpack.c.h.b16 %v1863
        %v2403 = vunpack.c.l.b16 %v1864
        %v2404 = vunpack.c.h.b16 %v1864
        %v2405 = vunpack.c.l.b16 %v1865
        %v2406 = vunpack.c.h.b16 %v1865
        %v2407 = vunpack.c.l.b16 %v1866
        %v2408 = vunpack.c.h.b16 %v1866
        %v2409 = vunpack.c.l.b16 %v1867
        %v2410 = vunpack.c.h.b16 %v1867
        %v2411 = vunpack.c.l.b16 %v1868
        %v2412 = vunpack.c.h.b16 %v1868
        %v2413 = vunpack.c.l.b16 %v1869
        %v2414 = vunpack.c.h.b16 %v1869
        %v2415 = vunpack.c.l.b16 %v1870
        %v2416 = vunpack.c.h.b16 %v1870
        %v2417 = vunpack.c.l.b16 %v1871
        %v2418 = vunpack.c.h.b16 %v1871
        %v2419 = vunpack.c.l.b16 %v1872
        %v2420 = vunpack.c.h.b16 %v1872
        %v2421 = vunpack.c.l.b16 %v1873
        %v2422 = vunpack.c.h.b16 %v1873
        %v2423 = vunpack.c.l.b16 %v1874
        %v2424 = vunpack.c.h.b16 %v1874
        %v2425 = vunpack.c.l.b16 %v1875
        %v2426 = vunpack.c.h.b16 %v1875
        %v2427 = vunpack.c.l.b16 %v1876
        %v2428 = vunpack.c.h.b16 %v1876
        %v2429 = vunpack.c.l.b16 %v1877
        %v2430 = vunpack.c.h.b16 %v1877
        %v2431 = vunpack.c.l.b16 %v1878
        %v2432 = vunpack.c.h.b16 %v1878
        %v2433 = vunpack.c.l.b16 %v1879
        %v2434 = vunpack.c.h.b16 %v1879
        %v2435 = vunpack.c.l.b16 %v1880
        %v2436 = vunpack.c.h.b16 %v1880
        %v2437 = vunpack.c.l.b16 %v1881
        %v2438 = vunpack.c.h.b16 %v1881
        %v2439 = vunpack.c.l.b16 %v1882
        %v2440 = vunpack.c.h.b16 %v1882
        %v2441 = vunpack.c.l.b16 %v1883
        %v2442 = vunpack.c.h.b16 %v1883
        %v2443 = vunpack.c.l.b16 %v1884
        %v2444 = vunpack.c.h.b16 %v1884
        %v2445 = vunpack.c.l.b16 %v1885
        %v2446 = vunpack.c.h.b16 %v1885
        %v2447 = vunpack.c.l.b16 %v1886
        %v2448 = vunpack.c.h.b16 %v1886
        %v2449 = vunpack.c.l.b16 %v1887
        %v2450 = vunpack.c.h.b16 %v1887
        %v2451 = vunpack.c.l.b16 %v1888
        %v2452 = vunpack.c.h.b16 %v1888
        %v2453 = vunpack.c.l.b16 %v1889
        %v2454 = vunpack.c.h.b16 %v1889
        %v2455 = vunpack.c.l.b16 %v1890
        %v2456 = vunpack.c.h.b16 %v1890
        %v2457 = vunpack.c.l.b16 %v1891
        %v2458 = vunpack.c.h.b16 %v1891
        %v2459 = vunpack.c.l.b16 %v1892
        %v2460 = vunpack.c.h.b16 %v1892
        %v2461 = vunpack.c.l.b16 %v1893
        %v2462 = vunpack.c.h.b16 %v1893
        %v2463 = vunpack.c.l.b16 %v1894
        %v2464 = vunpack.c.h.b16 %v1894
        %v2465 = vunpack.c.l.b16 %v1895
        %v2466 = vunpack.c.h.b16 %v1895
        %v2467 = vunpack.c.l.b16 %v1896
        %v2468 = vunpack.c.h.b16 %v1896
        %v2469 = vunpack.c.l.b16 %v1897
        %v2470 = vunpack.c.h.b16 %v1897
        %v2471 = vunpack.c.l.b16 %v1898
        %v2472 = vunpack.c.h.b16 %v1898
        %v2473 = vunpack.c.l.b16 %v1899
        %v2474 = vunpack.c.h.b16 %v1899
        %v2475 = vunpack.c.l.b16 %v1900
        %v2476 = vunpack.c.h.b16 %v1900
        %v2477 = vunpack.c.l.b16 %v1901
        %v2478 = vunpack.c.h.b16 %v1901
        %v2479 = vunpack.c.l.b16 %v1902
        %v2480 = vunpack.c.h.b16 %v1902
        %v2481 = vunpack.c.l.b16 %v1903
        %v2482 = vunpack.c.h.b16 %v1903
        %v2483 = vunpack.c.l.b16 %v1904
        %v2484 = vunpack.c.h.b16 %v1904
        %v2485 = vunpack.c.l.b16 %v1905
        %v2486 = vunpack.c.h.b16 %v1905
        %v2487 = vunpack.c.l.b16 %v1906
        %v2488 = vunpack.c.h.b16 %v1906
        %v2489 = vunpack.c.l.b16 %v1907
        %v2490 = vunpack.c.h.b16 %v1907
        %v2491 = vunpack.c.l.b16 %v1908
        %v2492 = vunpack.c.h.b16 %v1908
        %v2493 = vunpack.c.l.b16 %v1909
        %v2494 = vunpack.c.h.b16 %v1909
        %v2495 = vunpack.c.l.b16 %v1910
        %v2496 = vunpack.c.h.b16 %v1910
        %v2497 = vunpack.c.l.b16 %v1911
        %v2498 = vunpack.c.h.b16 %v1911
        %v2499 = vunpack.c.l.b16 %v1912
        %v2500 = vunpack.c.h.b16 %v1912
        %v2501 = vunpack.c.l.b16 %v1913
        %v2502 = vunpack.c.h.b16 %v1913
        %v2503 = vunpack.c.l.b16 %v1914
        %v2504 = vunpack.c.h.b16 %v1914
        %v2505 = vunpack.c.l.b16 %v1915
        %v2506 = vunpack.c.h.b16 %v1915
        %v2507 = vunpack.c.l.b16 %v1916
        %v2508 = vunpack.c.h.b16 %v1916
        %v2509 = vunpack.c.l.b16 %v1917
        %v2510 = vunpack.c.h.b16 %v1917
        %v2511 = vunpack.c.l.b16 %v1918
        %v2512 = vunpack.c.h.b16 %v1918
        %v2513 = vunpack.c.l.b16 %v1919
        %v2514 = vunpack.c.h.b16 %v1919
        %v2515 = vunpack.c.l.b16 %v1920
        %v2516 = vunpack.c.h.b16 %v1920
        %v2517 = vunpack.c.l.b16 %v1921
        %v2518 = vunpack.c.h.b16 %v1921
        %v2519 = vunpack.c.l.b16 %v1922
        %v2520 = vunpack.c.h.b16 %v1922
        %v2521 = vunpack.c.l.b16 %v1923
        %v2522 = vunpack.c.h.b16 %v1923
        %v2523 = vunpack.c.l.b16 %v1924
        %v2524 = vunpack.c.h.b16 %v1924
        %v2525 = vunpack.c.l.b16 %v1925
        %v2526 = vunpack.c.h.b16 %v1925
        %v2527 = vunpack.c.l.b16 %v1926
        %v2528 = vunpack.c.h.b16 %v1926
        %v2529 = vunpack.c.l.b16 %v1927
        %v2530 = vunpack.c.h.b16 %v1927
        %v2531 = vunpack.c.l.b16 %v1928
        %v2532 = vunpack.c.h.b16 %v1928
        %v2533 = vunpack.c.l.b16 %v1929
        %v2534 = vunpack.c.h.b16 %v1929
        %v2535 = vunpack.c.l.b16 %v1930
        %v2536 = vunpack.c.h.b16 %v1930
        %v2537 = vunpack.c.l.b16 %v1931
        %v2538 = vunpack.c.h.b16 %v1931
        %v2539 = vunpack.c.l.b16 %v1932
        %v2540 = vunpack.c.h.b16 %v1932
        %v2541 = vunpack.c.l.b16 %v1933
        %v2542 = vunpack.c.h.b16 %v1933
        %v2543 = vunpack.c.l.b16 %v1934
        %v2544 = vunpack.c.h.b16 %v1934
        %v2545 = vunpack.c.l.b16 %v1935
        %v2546 = vunpack.c.h.b16 %v1935
        %v2547 = vunpack.c.l.b16 %v1936
        %v2548 = vunpack.c.h.b16 %v1936
        %v2549 = vunpack.c.l.b16 %v1937
        %v2550 = vunpack.c.h.b16 %v1937
        %v2551 = vunpack.c.l.b16 %v1938
        %v2552 = vunpack.c.h.b16 %v1938
        %v2553 = vunpack.c.l.b16 %v1939
        %v2554 = vunpack.c.h.b16 %v1939
        %v2555 = vunpack.c.l.b16 %v1940
        %v2556 = vunpack.c.h.b16 %v1940
        %v2557 = vunpack.c.l.b16 %v1941
        %v2558 = vunpack.c.h.b16 %v1941
        %v2559 = vunpack.c.l.b16 %v1942
        %v2560 = vunpack.c.h.b16 %v1942
        %v2561 = vunpack.c.l.b16 %v1943
        %v2562 = vunpack.c.h.b16 %v1943
        %v2563 = vunpack.c.l.b16 %v1944
        %v2564 = vunpack.c.h.b16 %v1944
        %v2565 = vunpack.c.l.b16 %v1945
        %v2566 = vunpack.c.h.b16 %v1945
        %v2567 = vunpack.c.l.b16 %v1946
        %v2568 = vunpack.c.h.b16 %v1946
        %v2569 = vunpack.c.l.b16 %v1947
        %v2570 = vunpack.c.h.b16 %v1947
        %v2571 = vunpack.c.l.b16 %v1948
        %v2572 = vunpack.c.h.b16 %v1948
        %v2573 = vunpack.c.l.b16 %v1949
        %v2574 = vunpack.c.h.b16 %v1949
        %v2575 = vunpack.c.l.b16 %v1950
        %v2576 = vunpack.c.h.b16 %v1950
        %v2577 = vunpack.c.l.b16 %v1951
        %v2578 = vunpack.c.h.b16 %v1951
        %v2579 = vunpack.c.l.b16 %v1952
        %v2580 = vunpack.c.h.b16 %v1952
        %v2581 = vunpack.c.l.b16 %v1953
        %v2582 = vunpack.c.h.b16 %v1953
        %v2583 = vunpack.c.l.b16 %v1954
        %v2584 = vunpack.c.h.b16 %v1954
        %v2585 = vunpack.c.l.b16 %v1955
        %v2586 = vunpack.c.h.b16 %v1955
        %v2587 = vunpack.c.l.b16 %v1956
        %v2588 = vunpack.c.h.b16 %v1956
        %v2589 = vunpack.c.l.b16 %v1957
        %v2590 = vunpack.c.h.b16 %v1957
        %v2591 = vunpack.c.l.b16 %v1958
        %v2592 = vunpack.c.h.b16 %v1958
        %v2593 = vunpack.c.l.b16 %v1959
        %v2594 = vunpack.c.h.b16 %v1959
        %v2595 = vunpack.c.l.b16 %v1960
        %v2596 = vunpack.c.h.b16 %v1960
        %v2597 = vunpack.c.l.b16 %v1961
        %v2598 = vunpack.c.h.b16 %v1961
        %v2599 = vunpack.c.l.b16 %v1962
        %v2600 = vunpack.c.h.b16 %v1962
        %v2601 = vunpack.c.l.b16 %v1963
        %v2602 = vunpack.c.h.b16 %v1963
        %v2603 = vunpack.c.l.b16 %v1964
        %v2604 = vunpack.c.h.b16 %v1964
        %v2605 = vunpack.c.l.b16 %v1965
        %v2606 = vunpack.c.h.b16 %v1965
        %v2607 = vunpack.c.l.b16 %v1966
        %v2608 = vunpack.c.h.b16 %v1966
        %v2609 = vunpack.c.l.b16 %v1967
        %v2610 = vunpack.c.h.b16 %v1967
        %v2611 = vunpack.c.l.b16 %v1968
        %v2612 = vunpack.c.h.b16 %v1968
        %v2613 = vunpack.c.l.b16 %v1969
        %v2614 = vunpack.c.h.b16 %v1969
        %v2615 = vunpack.c.l.b16 %v1970
        %v2616 = vunpack.c.h.b16 %v1970
        %v2617 = vunpack.c.l.b16 %v1971
        %v2618 = vunpack.c.h.b16 %v1971
        %v2619 = vunpack.c.l.b16 %v1972
        %v2620 = vunpack.c.h.b16 %v1972
        %v2621 = vunpack.c.l.b16 %v1973
        %v2622 = vunpack.c.h.b16 %v1973
        %v2623 = vunpack.c.l.b16 %v1974
        %v2624 = vunpack.c.h.b16 %v1974
        %v2625 = vunpack.c.l.b16 %v1975
        %v2626 = vunpack.c.h.b16 %v1975
        %v2627 = vunpack.c.l.b16 %v1976
        %v2628 = vunpack.c.h.b16 %v1976
        %v2629 = vunpack.c.l.b16 %v1977
        %v2630 = vunpack.c.h.b16 %v1977
        %v2631 = vunpack.c.l.b16 %v1978
        %v2632 = vunpack.c.h.b16 %v1978
        %v2633 = vunpack.c.l.b16 %v1979
        %v2634 = vunpack.c.h.b16 %v1979
        %v2635 = vunpack.c.l.b16 %v1980
        %v2636 = vunpack.c.h.b16 %v1980
        %v2637 = vunpack.c.l.b16 %v1981
        %v2638 = vunpack.c.h.b16 %v1981
        %v2639 = vunpack.c.l.b16 %v1982
        %v2640 = vunpack.c.h.b16 %v1982
        %v2641 = vunpack.c.l.b16 %v1983
        %v2642 = vunpack.c.h.b16 %v1983
        %v2643 = vunpack.c.l.b16 %v1984
        %v2644 = vunpack.c.h.b16 %v1984
        %v2645 = vunpack.c.l.b16 %v1985
        %v2646 = vunpack.c.h.b16 %v1985
        %v2647 = vunpack.c.l.b16 %v1986
        %v2648 = vunpack.c.h.b16 %v1986
        %v2649 = vunpack.c.l.b16 %v1987
        %v2650 = vunpack.c.h.b16 %v1987
        %v2651 = vunpack.c.l.b16 %v1988
        %v2652 = vunpack.c.h.b16 %v1988
        %v2653 = vunpack.c.l.b16 %v1989
        %v2654 = vunpack.c.h.b16 %v1989
        %v2655 = vunpack.c.l.b16 %v1990
        %v2656 = vunpack.c.h.b16 %v1990
        %v2657 = vunpack.c.l.b16 %v1991
        %v2658 = vunpack.c.h.b16 %v1991
        %v2659 = vunpack.c.l.b16 %v1992
        %v2660 = vunpack.c.h.b16 %v1992
        %v2661 = vunpack.c.l.b16 %v1993
        %v2662 = vunpack.c.h.b16 %v1993
        %v2663 = vunpack.c.l.b16 %v1994
        %v2664 = vunpack.c.h.b16 %v1994
        %v2665 = vunpack.c.l.b16 %v1995
        %v2666 = vunpack.c.h.b16 %v1995
        %v2667 = vunpack.c.l.b16 %v1996
        %v2668 = vunpack.c.h.b16 %v1996
        %v2669 = vunpack.c.l.b16 %v1997
        %v2670 = vunpack.c.h.b16 %v1997
        %v2671 = vunpack.c.l.b16 %v1998
        %v2672 = vunpack.c.h.b16 %v1998
        %v2673 = vunpack.c.l.b16 %v1999
        %v2674 = vunpack.c.h.b16 %v1999
        %v2675 = vunpack.c.l.b16 %v2000
        %v2676 = vunpack.c.h.b16 %v2000
        %v2677 = vunpack.c.l.b16 %v2001
        %v2678 = vunpack.c.h.b16 %v2001
        %v2679 = vunpack.c.l.b16 %v2002
        %v2680 = vunpack.c.h.b16 %v2002
        %v2681 = vunpack.c.l.b16 %v2003
        %v2682 = vunpack.c.h.b16 %v2003
        %v2683 = vunpack.c.l.b16 %v2004
        %v2684 = vunpack.c.h.b16 %v2004
        %v2685 = vunpack.c.l.b16 %v2005
        %v2686 = vunpack.c.h.b16 %v2005
        %v2687 = vunpack.c.l.b16 %v2006
        %v2688 = vunpack.c.h.b16 %v2006
        %v2689 = vunpack.c.l.b16 %v2007
        %v2690 = vunpack.c.h.b16 %v2007
        %v2691 = vunpack.c.l.b16 %v2008
        %v2692 = vunpack.c.h.b16 %v2008
        %v2693 = vunpack.c.l.b16 %v2009
        %v2694 = vunpack.c.h.b16 %v2009
        %v2695 = vunpack.c.l.b16 %v2010
        %v2696 = vunpack.c.h.b16 %v2010
        %v2697 = vunpack.c.l.b16 %v2011
        %v2698 = vunpack.c.h.b16 %v2011
        %v2699 = vunpack.c.l.b16 %v2012
        %v2700 = vunpack.c.h.b16 %v2012
        %v2701 = vunpack.c.l.b16 %v2013
        %v2702 = vunpack.c.h.b16 %v2013
        %v2703 = vunpack.c.l.b16 %v2014
        %v2704 = vunpack.c.h.b16 %v2014
        %v2705 = vunpack.c.l.b16 %v2015
        %v2706 = vunpack.c.h.b16 %v2015
        %v2707 = vunpack.c.l.b16 %v2016
        %v2708 = vunpack.c.h.b16 %v2016
        %v2709 = vunpack.c.l.b16 %v2017
        %v2710 = vunpack.c.h.b16 %v2017
        %v2711 = vunpack.c.l.b16 %v2018
        %v2712 = vunpack.c.h.b16 %v2018
        %v2713 = vunpack.c.l.b16 %v2019
        %v2714 = vunpack.c.h.b16 %v2019
        %v2715 = vunpack.c.l.b16 %v2020
        %v2716 = vunpack.c.h.b16 %v2020
        %v2717 = vunpack.c.l.b16 %v2021
        %v2718 = vunpack.c.h.b16 %v2021
        %v2719 = vunpack.c.l.b16 %v2022
        %v2720 = vunpack.c.h.b16 %v2022
        %v2721 = vunpack.c.l.b16 %v2023
        %v2722 = vunpack.c.h.b16 %v2023
        %v2723 = vunpack.c.l.b16 %v2024
        %v2724 = vunpack.c.h.b16 %v2024
        %v2725 = vunpack.c.l.b16 %v2025
        %v2726 = vunpack.c.h.b16 %v2025
        %v2727 = vunpack.c.l.b16 %v2026
        %v2728 = vunpack.c.h.b16 %v2026
        %v2729 = vunpack.c.l.b16 %v2027
        %v2730 = vunpack.c.h.b16 %v2027
        %v2731 = vunpack.c.l.b16 %v2028
        %v2732 = vunpack.c.h.b16 %v2028
        %v2733 = vunpack.c.l.b16 %v2029
        %v2734 = vunpack.c.h.b16 %v2029
        %v2735 = vunpack.c.l.b16 %v2030
        %v2736 = vunpack.c.h.b16 %v2030
        %v2737 = vunpack.c.l.b16 %v2031
        %v2738 = vunpack.c.h.b16 %v2031
        %v2739 = vunpack.c.l.b16 %v2032
        %v2740 = vunpack.c.h.b16 %v2032
        %v2741 = vunpack.c.l.b16 %v2033
        %v2742 = vunpack.c.h.b16 %v2033
        %v2743 = vunpack.c.l.b16 %v2034
        %v2744 = vunpack.c.h.b16 %v2034
        %v2745 = vunpack.c.l.b16 %v2035
        %v2746 = vunpack.c.h.b16 %v2035
        %v2747 = vunpack.c.l.b16 %v2036
        %v2748 = vunpack.c.h.b16 %v2036
        %v2749 = vunpack.c.l.b16 %v2037
        %v2750 = vunpack.c.h.b16 %v2037
        %v2751 = vunpack.c.l.b16 %v2038
        %v2752 = vunpack.c.h.b16 %v2038
        %v2753 = vunpack.c.l.b16 %v2039
        %v2754 = vunpack.c.h.b16 %v2039
        %v2755 = vunpack.c.l.b16 %v2040
        %v2756 = vunpack.c.h.b16 %v2040
        %v2757 = vunpack.c.l.b16 %v2041
        %v2758 = vunpack.c.h.b16 %v2041
        %v2759 = vunpack.c.l.b16 %v2042
        %v2760 = vunpack.c.h.b16 %v2042
        %v2761 = vunpack.c.l.b16 %v2043
        %v2762 = vunpack.c.h.b16 %v2043
        %v2763 = vunpack.c.l.b16 %v2044
        %v2764 = vunpack.c.h.b16 %v2044
        %v2765 = vunpack.c.l.b16 %v2045
        %v2766 = vunpack.c.h.b16 %v2045
        %v2767 = vunpack.c.l.b16 %v2046
        %v2768 = vunpack.c.h.b16 %v2046
        %v2769 = vunpack.c.l.b16 %v2047
        %v2770 = vunpack.c.h.b16 %v2047
        %v2771 = vunpack.c.l.b16 %v2048
        %v2772 = vunpack.c.h.b16 %v2048
        %v2773 = vunpack.c.l.b16 %v2049
        %v2774 = vunpack.c.h.b16 %v2049
        %v2775 = vunpack.c.l.b16 %v2050
        %v2776 = vunpack.c.h.b16 %v2050
        %v2777 = vunpack.c.l.b16 %v2051
        %v2778 = vunpack.c.h.b16 %v2051
        %v2779 = vunpack.c.l.b16 %v2052
        %v2780 = vunpack.c.h.b16 %v2052
        %v2781 = vunpack.c.l.b16 %v2053
        %v2782 = vunpack.c.h.b16 %v2053
        %v2783 = vunpack.c.l.b16 %v2054
        %v2784 = vunpack.c.h.b16 %v2054
        %v2785 = vunpack.c.l.b16 %v2055
        %v2786 = vunpack.c.h.b16 %v2055
        %v2787 = vunpack.c.l.b16 %v2056
        %v2788 = vunpack.c.h.b16 %v2056
        %v2789 = vunpack.c.l.b16 %v2057
        %v2790 = vunpack.c.h.b16 %v2057
        %v2791 = vunpack.c.l.b16 %v2058
        %v2792 = vunpack.c.h.b16 %v2058
        %v2793 = vunpack.c.l.b16 %v2059
        %v2794 = vunpack.c.h.b16 %v2059
        %v2795 = vunpack.c.l.b16 %v2060
        %v2796 = vunpack.c.h.b16 %v2060
        %v2797 = vunpack.c.l.b16 %v2061
        %v2798 = vunpack.c.h.b16 %v2061
        %v2799 = vunpack.c.l.b16 %v2062
        %v2800 = vunpack.c.h.b16 %v2062
        %v2801 = vunpack.c.l.b16 %v2063
        %v2802 = vunpack.c.h.b16 %v2063
        %v2803 = vunpack.c.l.b16 %v2064
        %v2804 = vunpack.c.h.b16 %v2064
        %v2805 = vunpack.c.l.b16 %v2065
        %v2806 = vunpack.c.h.b16 %v2065
        %v2807 = vunpack.c.l.b16 %v2066
        %v2808 = vunpack.c.h.b16 %v2066
        %v2809 = vunpack.c.l.b16 %v2067
        %v2810 = vunpack.c.h.b16 %v2067
        %v2811 = vunpack.c.l.b16 %v2068
        %v2812 = vunpack.c.h.b16 %v2068
        %v2813 = vunpack.c.l.b16 %v2069
        %v2814 = vunpack.c.h.b16 %v2069
        %v2815 = vunpack.c.l.b16 %v2070
        %v2816 = vunpack.c.h.b16 %v2070
        %v2817 = vunpack.c.l.b16 %v2071
        %v2818 = vunpack.c.h.b16 %v2071
        %v2819 = vunpack.c.l.b16 %v2072
        %v2820 = vunpack.c.h.b16 %v2072
        %v2821 = vunpack.c.l.b16 %v2073
        %v2822 = vunpack.c.h.b16 %v2073
        %v2823 = vunpack.c.l.b16 %v2074
        %v2824 = vunpack.c.h.b16 %v2074
        %v2825 = vunpack.c.l.b16 %v2075
        %v2826 = vunpack.c.h.b16 %v2075
        %v2827 = vunpack.c.l.b16 %v2076
        %v2828 = vunpack.c.h.b16 %v2076
        %v2829 = vunpack.c.l.b16 %v2077
        %v2830 = vunpack.c.h.b16 %v2077
        %v2831 = vunpack.c.l.b16 %v2078
        %v2832 = vunpack.c.h.b16 %v2078
        %v2833 = vunpack.c.l.b16 %v2079
        %v2834 = vunpack.c.h.b16 %v2079
        %v2835 = vunpack.c.l.b16 %v2080
        %v2836 = vunpack.c.h.b16 %v2080
        %v2837 = vunpack.c.l.b16 %v2081
        %v2838 = vunpack.c.h.b16 %v2081
        %v2839 = vunpack.c.l.b16 %v2082
        %v2840 = vunpack.c.h.b16 %v2082
        %v2841 = vunpack.c.l.b16 %v2083
        %v2842 = vunpack.c.h.b16 %v2083
        %v2843 = vunpack.c.l.b16 %v2084
        %v2844 = vunpack.c.h.b16 %v2084
        %v2845 = vunpack.c.l.b16 %v2085
        %v2846 = vunpack.c.h.b16 %v2085
        %v2847 = vunpack.c.l.b16 %v2086
        %v2848 = vunpack.c.h.b16 %v2086
        %v2849 = vunpack.c.l.b16 %v2087
        %v2850 = vunpack.c.h.b16 %v2087
        %v2851 = vunpack.c.l.b16 %v2088
        %v2852 = vunpack.c.h.b16 %v2088
        %v2853 = vunpack.c.l.b16 %v2089
        %v2854 = vunpack.c.h.b16 %v2089
        %v2855 = vunpack.c.l.b16 %v2090
        %v2856 = vunpack.c.h.b16 %v2090
        %v2857 = vunpack.c.l.b16 %v2091
        %v2858 = vunpack.c.h.b16 %v2091
        %v2859 = vunpack.c.l.b16 %v2092
        %v2860 = vunpack.c.h.b16 %v2092
        %v2861 = vunpack.c.l.b16 %v2093
        %v2862 = vunpack.c.h.b16 %v2093
        %v2863 = vunpack.c.l.b16 %v2094
        %v2864 = vunpack.c.h.b16 %v2094
        %v2865 = vunpack.c.l.b16 %v2095
        %v2866 = vunpack.c.h.b16 %v2095
        %v2867 = vunpack.c.l.b16 %v2096
        %v2868 = vunpack.c.h.b16 %v2096
        %v2869 = vunpack.c.l.b16 %v2097
        %v2870 = vunpack.c.h.b16 %v2097
        %v2871 = vunpack.c.l.b16 %v2098
        %v2872 = vunpack.c.h.b16 %v2098
        %v2873 = vunpack.c.l.b16 %v2099
        %v2874 = vunpack.c.h.b16 %v2099
        %v2875 = vunpack.c.l.b16 %v2100
        %v2876 = vunpack.c.h.b16 %v2100
        %v2877 = vunpack.c.l.b16 %v2101
        %v2878 = vunpack.c.h.b16 %v2101
        %v2879 = vunpack.c.l.b16 %v2102
        %v2880 = vunpack.c.h.b16 %v2102
        %v2881 = vunpack.c.l.b16 %v2103
        %v2882 = vunpack.c.h.b16 %v2103
        %v2883 = vunpack.c.l.b16 %v2104
        %v2884 = vunpack.c.h.b16 %v2104
        %v2885 = vpack.c.b16 %v2375, %v2373
        %v2886 = vpack.c.b16 %v2376, %v2374
        %v2887 = vpack.c.b16 %v2379, %v2377
        %v2888 = vpack.c.b16 %v2380, %v2378
        %v2889 = vpack.c.b16 %v2383, %v2381
        %v2890 = vpack.c.b16 %v2384, %v2382
        %v2891 = vpack.c.b16 %v2387, %v2385
        %v2892 = vpack.c.b16 %v2388, %v2386
        %v2893 = vpack.c.b16 %v2391, %v2389
        %v2894 = vpack.c.b16 %v2392, %v2390
        %v2895 = vpack.c.b16 %v2395, %v2393
        %v2896 = vpack.c.b16 %v2396, %v2394
        %v2897 = vpack.c.b16 %v2399, %v2397
        %v2898 = vpack.c.b16 %v2400, %v2398
        %v2899 = vpack.c.b16 %v2403, %v2401
        %v2900 = vpack.c.b16 %v2404, %v2402
        %v2901 = vpack.c.b16 %v2407, %v2405
        %v2902 = vpack.c.b16 %v2408, %v2406
        %v2903 = vpack.c.b16 %v2411, %v2409
        %v2904 = vpack.c.b16 %v2412, %v2410
        %v2905 = vpack.c.b16 %v2415, %v2413
        %v2906 = vpack.c.b16 %v2416, %v2414
        %v2907 = vpack.c.b16 %v2419, %v2417
        %v2908 = vpack.c.b16 %v2420, %v2418
        %v2909 = vpack.c.b16 %v2423, %v2421
        %v2910 = vpack.c.b16 %v2424, %v2422
        %v2911 = vpack.c.b16 %v2427, %v2425
        %v2912 = vpack.c.b16 %v2428, %v2426
        %v2913 = vpack.c.b16 %v2431, %v2429
        %v2914 = vpack.c.b16 %v2432, %v2430
        %v2915 = vpack.c.b16 %v2435, %v2433
        %v2916 = vpack.c.b16 %v2436, %v2434
        %v2917 = vpack.c.b16 %v2439, %v2437
        %v2918 = vpack.c.b16 %v2440, %v2438
        %v2919 = vpack.c.b16 %v2443, %v2441
        %v2920 = vpack.c.b16 %v2444, %v2442
        %v2921 = vpack.c.b16 %v2447, %v2445
        %v2922 = vpack.c.b16 %v2448, %v2446
        %v2923 = vpack.c.b16 %v2451, %v2449
        %v2924 = vpack.c.b16 %v2452, %v2450
        %v2925 = vpack.c.b16 %v2455, %v2453
        %v2926 = vpack.c.b16 %v2456, %v2454
        %v2927 = vpack.c.b16 %v2459, %v2457
        %v2928 = vpack.c.b16 %v2460, %v2458
        %v2929 = vpack.c.b16 %v2463, %v2461
        %v2930 = vpack.c.b16 %v2464, %v2462
        %v2931 = vpack.c.b16 %v2467, %v2465
        %v2932 = vpack.c.b16 %v2468, %v2466
        %v2933 = vpack.c.b16 %v2471, %v2469
        %v2934 = vpack.c.b16 %v2472, %v2470
        %v2935 = vpack.c.b16 %v2475, %v2473
        %v2936 = vpack.c.b16 %v2476, %v2474
        %v2937 = vpack.c.b16 %v2479, %v2477
        %v2938 = vpack.c.b16 %v2480, %v2478
        %v2939 = vpack.c.b16 %v2483, %v2481
        %v2940 = vpack.c.b16 %v2484, %v2482
        %v2941 = vpack.c.b16 %v2487, %v2485
        %v2942 = vpack.c.b16 %v2488, %v2486
        %v2943 = vpack.c.b16 %v2491, %v2489
        %v2944 = vpack.c.b16 %v2492, %v2490
        %v2945 = vpack.c.b16 %v2495, %v2493
        %v2946 = vpack.c.b16 %v2496, %v2494
        %v2947 = vpack.c.b16 %v2499, %v2497
        %v2948 = vpack.c.b16 %v2500, %v2498
        %v2949 = vpack.c.b16 %v2503, %v2501
        %v2950 = vpack.c.b16 %v2504, %v2502
        %v2951 = vpack.c.b16 %v2507, %v2505
        %v2952 = vpack.c.b16 %v2508, %v2506
        %v2953 = vpack.c.b16 %v2511, %v2509
        %v2954 = vpack.c.b16 %v2512, %v2510
        %v2955 = vpack.c.b16 %v2515, %v2513
        %v2956 = vpack.c.b16 %v2516, %v2514
        %v2957 = vpack.c.b16 %v2519, %v2517
        %v2958 = vpack.c.b16 %v2520, %v2518
        %v2959 = vpack.c.b16 %v2523, %v2521
        %v2960 = vpack.c.b16 %v2524, %v2522
        %v2961 = vpack.c.b16 %v2527, %v2525
        %v2962 = vpack.c.b16 %v2528, %v2526
        %v2963 = vpack.c.b16 %v2531, %v2529
        %v2964 = vpack.c.b16 %v2532, %v2530
        %v2965 = vpack.c.b16 %v2535, %v2533
        %v2966 = vpack.c.b16 %v2536, %v2534
        %v2967 = vpack.c.b16 %v2539, %v2537
        %v2968 = vpack.c.b16 %v2540, %v2538
        %v2969 = vpack.c.b16 %v2543, %v2541
        %v2970 = vpack.c.b16 %v2544, %v2542
        %v2971 = vpack.c.b16 %v2547, %v2545
        %v2972 = vpack.c.b16 %v2548, %v2546
        %v2973 = vpack.c.b16 %v2551, %v2549
        %v2974 = vpack.c.b16 %v2552, %v2550
        %v2975 = vpack.c.b16 %v2555, %v2553
        %v2976 = vpack.c.b16 %v2556, %v2554
        %v2977 = vpack.c.b16 %v2559, %v2557
        %v2978 = vpack.c.b16 %v2560, %v2558
        %v2979 = vpack.c.b16 %v2563, %v2561
        %v2980 = vpack.c.b16 %v2564, %v2562
        %v2981 = vpack.c.b16 %v2567, %v2565
        %v2982 = vpack.c.b16 %v2568, %v2566
        %v2983 = vpack.c.b16 %v2571, %v2569
        %v2984 = vpack.c.b16 %v2572, %v2570
        %v2985 = vpack.c.b16 %v2575, %v2573
        %v2986 = vpack.c.b16 %v2576, %v2574
        %v2987 = vpack.c.b16 %v2579, %v2577
        %v2988 = vpack.c.b16 %v2580, %v2578
        %v2989 = vpack.c.b16 %v2583, %v2581
        %v2990 = vpack.c.b16 %v2584, %v2582
        %v2991 = vpack.c.b16 %v2587, %v2585
        %v2992 = vpack.c.b16 %v2588, %v2586
        %v2993 = vpack.c.b16 %v2591, %v2589
        %v2994 = vpack.c.b16 %v2592, %v2590
        %v2995 = vpack.c.b16 %v2595, %v2593
        %v2996 = vpack.c.b16 %v2596, %v2594
        %v2997 = vpack.c.b16 %v2599, %v2597
        %v2998 = vpack.c.b16 %v2600, %v2598
        %v2999 = vpack.c.b16 %v2603, %v2601
        %v3000 = vpack.c.b16 %v2604, %v2602
        %v3001 = vpack.c.b16 %v2607, %v2605
        %v3002 = vpack.c.b16 %v2608, %v2606
        %v3003 = vpack.c.b16 %v2611, %v2609
        %v3004 = vpack.c.b16 %v2612, %v2610
        %v3005 = vpack.c.b16 %v2615, %v2613
        %v3006 = vpack.c.b16 %v2616, %v2614
        %v3007 = vpack.c.b16 %v2619, %v2617
        %v3008 = vpack.c.b16 %v2620, %v2618
        %v3009 = vpack.c.b16 %v2623, %v2621
        %v3010 = vpack.c.b16 %v2624, %v2622
        %v3011 = vpack.c.b16 %v2627, %v2625
        %v3012 = vpack.c.b16 %v2628, %v2626
        %v3013 = vpack.c.b16 %v2631, %v2629
        %v3014 = vpack.c.b16 %v2632, %v2630
        %v3015 = vpack.c.b16 %v2635, %v2633
        %v3016 = vpack.c.b16 %v2636, %v2634
        %v3017 = vpack.c.b16 %v2639, %v2637
        %v3018 = vpack.c.b16 %v2640, %v2638
        %v3019 = vpack.c.b16 %v2643, %v2641
        %v3020 = vpack.c.b16 %v2644, %v2642
        %v3021 = vpack.c.b16 %v2647, %v2645
        %v3022 = vpack.c.b16 %v2648, %v2646
        %v3023 = vpack.c.b16 %v2651, %v2649
        %v3024 = vpack.c.b16 %v2652, %v2650
        %v3025 = vpack.c.b16 %v2655, %v2653
        %v3026 = vpack.c.b16 %v2656, %v2654
        %v3027 = vpack.c.b16 %v2659, %v2657
        %v3028 = vpack.c.b16 %v2660, %v2658
        %v3029 = vpack.c.b16 %v2663, %v2661
        %v3030 = vpack.c.b16 %v2664, %v2662
        %v3031 = vpack.c.b16 %v2667, %v2665
        %v3032 = vpack.c.b16 %v2668, %v2666
        %v3033 = vpack.c.b16 %v2671, %v2669
        %v3034 = vpack.c.b16 %v2672, %v2670
        %v3035 = vpack.c.b16 %v2675, %v2673
        %v3036 = vpack.c.b16 %v2676, %v2674
        %v3037 = vpack.c.b16 %v2679, %v2677
        %v3038 = vpack.c.b16 %v2680, %v2678
        %v3039 = vpack.c.b16 %v2683, %v2681
        %v3040 = vpack.c.b16 %v2684, %v2682
        %v3041 = vpack.c.b16 %v2687, %v2685
        %v3042 = vpack.c.b16 %v2688, %v2686
        %v3043 = vpack.c.b16 %v2691, %v2689
        %v3044 = vpack.c.b16 %v2692, %v2690
        %v3045 = vpack.c.b16 %v2695, %v2693
        %v3046 = vpack.c.b16 %v2696, %v2694
        %v3047 = vpack.c.b16 %v2699, %v2697
        %v3048 = vpack.c.b16 %v2700, %v2698
        %v3049 = vpack.c.b16 %v2703, %v2701
        %v3050 = vpack.c.b16 %v2704, %v2702
        %v3051 = vpack.c.b16 %v2707, %v2705
        %v3052 = vpack.c.b16 %v2708, %v2706
        %v3053 = vpack.c.b16 %v2711, %v2709
        %v3054 = vpack.c.b16 %v2712, %v2710
        %v3055 = vpack.c.b16 %v2715, %v2713
        %v3056 = vpack.c.b16 %v2716, %v2714
        %v3057 = vpack.c.b16 %v2719, %v2717
        %v3058 = vpack.c.b16 %v2720, %v2718
        %v3059 = vpack.c.b16 %v2723, %v2721
        %v3060 = vpack.c.b16 %v2724, %v2722
        %v3061 = vpack.c.b16 %v2727, %v2725
        %v3062 = vpack.c.b16 %v2728, %v2726
        %v3063 = vpack.c.b16 %v2731, %v2729
        %v3064 = vpack.c.b16 %v2732, %v2730
        %v3065 = vpack.c.b16 %v2735, %v2733
        %v3066 = vpack.c.b16 %v2736, %v2734
        %v3067 = vpack.c.b16 %v2739, %v2737
        %v3068 = vpack.c.b16 %v2740, %v2738
        %v3069 = vpack.c.b16 %v2743, %v2741
        %v3070 = vpack.c.b16 %v2744, %v2742
        %v3071 = vpack.c.b16 %v2747, %v2745
        %v3072 = vpack.c.b16 %v2748, %v2746
        %v3073 = vpack.c.b16 %v2751, %v2749
        %v3074 = vpack.c.b16 %v2752, %v2750
        %v3075 = vpack.c.b16 %v2755, %v2753
        %v3076 = vpack.c.b16 %v2756, %v2754
        %v3077 = vpack.c.b16 %v2759, %v2757
        %v3078 = vpack.c.b16 %v2760, %v2758
        %v3079 = vpack.c.b16 %v2763, %v2761
        %v3080 = vpack.c.b16 %v2764, %v2762
        %v3081 = vpack.c.b16 %v2767, %v2765
        %v3082 = vpack.c.b16 %v2768, %v2766
        %v3083 = vpack.c.b16 %v2771, %v2769
        %v3084 = vpack.c.b16 %v2772, %v2770
        %v3085 = vpack.c.b16 %v2775, %v2773
        %v3086 = vpack.c.b16 %v2776, %v2774
        %v3087 = vpack.c.b16 %v2779, %v2777
        %v3088 = vpack.c.b16 %v2780, %v2778
        %v3089 = vpack.c.b16 %v2783, %v2781
        %v3090 = vpack.c.b16 %v2784, %v2782
        %v3091 = vpack.c.b16 %v2787, %v2785
        %v3092 = vpack.c.b16 %v2788, %v2786
        %v3093 = vpack.c.b16 %v2791, %v2789
        %v3094 = vpack.c.b16 %v2792, %v2790
        %v3095 = vpack.c.b16 %v2795, %v2793
        %v3096 = vpack.c.b16 %v2796, %v2794
        %v3097 = vpack.c.b16 %v2799, %v2797
        %v3098 = vpack.c.b16 %v2800, %v2798
        %v3099 = vpack.c.b16 %v2803, %v2801
        %v3100 = vpack.c.b16 %v2804, %v2802
        %v3101 = vpack.c.b16 %v2807, %v2805
        %v3102 = vpack.c.b16 %v2808, %v2806
        %v3103 = vpack.c.b16 %v2811, %v2809
        %v3104 = vpack.c.b16 %v2812, %v2810
        %v3105 = vpack.c.b16 %v2815, %v2813
        %v3106 = vpack.c.b16 %v2816, %v2814
        %v3107 = vpack.c.b16 %v2819, %v2817
        %v3108 = vpack.c.b16 %v2820, %v2818
        %v3109 = vpack.c.b16 %v2823, %v2821
        %v3110 = vpack.c.b16 %v2824, %v2822
        %v3111 = vpack.c.b16 %v2827, %v2825
        %v3112 = vpack.c.b16 %v2828, %v2826
        %v3113 = vpack.c.b16 %v2831, %v2829
        %v3114 = vpack.c.b16 %v2832, %v2830
        %v3115 = vpack.c.b16 %v2835, %v2833
        %v3116 = vpack.c.b16 %v2836, %v2834
        %v3117 = vpack.c.b16 %v2839, %v2837
        %v3118 = vpack.c.b16 %v2840, %v2838
        %v3119 = vpack.c.b16 %v2843, %v2841
        %v3120 = vpack.c.b16 %v2844, %v2842
        %v3121 = vpack.c.b16 %v2847, %v2845
        %v3122 = vpack.c.b16 %v2848, %v2846
        %v3123 = vpack.c.b16 %v2851, %v2849
        %v3124 = vpack.c.b16 %v2852, %v2850
        %v3125 = vpack.c.b16 %v2855, %v2853
        %v3126 = vpack.c.b16 %v2856, %v2854
        %v3127 = vpack.c.b16 %v2859, %v2857
        %v3128 = vpack.c.b16 %v2860, %v2858
        %v3129 = vpack.c.b16 %v2863, %v2861
        %v3130 = vpack.c.b16 %v2864, %v2862
        %v3131 = vpack.c.b16 %v2867, %v2865
        %v3132 = vpack.c.b16 %v2868, %v2866
        %v3133 = vpack.c.b16 %v2871, %v2869
        %v3134 = vpack.c.b16 %v2872, %v2870
        %v3135 = vpack.c.b16 %v2875, %v2873
        %v3136 = vpack.c.b16 %v2876, %v2874
        %v3137 = vpack.c.b16 %v2879, %v2877
        %v3138 = vpack.c.b16 %v2880, %v2878
        %v3139 = vpack.c.b16 %v2883, %v2881
        %v3140 = vpack.c.b16 %v2884, %v2882
        %3397 = vmatprep.subr.bf16.mxu0 %v2886
        %3398 = vmatpush1.bf16.msra.mxu0 %v2885
        %3399 = vmatprep.subr.bf16.mxu0 %v2888
        %3400 = vmatpush1.bf16.msra.mxu0 %v2887
        %3401 = vmatprep.subr.bf16.mxu0 %v2890
        %3402 = vmatpush1.bf16.msra.mxu0 %v2889
        %3403 = vmatprep.subr.bf16.mxu0 %v2892
        %3404 = vmatpush1.bf16.msra.mxu0 %v2891
        %3405 = vmatprep.subr.bf16.mxu0 %v2894
        %3406 = vmatpush1.bf16.msra.mxu0 %v2893
        %3407 = vmatprep.subr.bf16.mxu0 %v2896
        %3408 = vmatpush1.bf16.msra.mxu0 %v2895
        %3409 = vmatprep.subr.bf16.mxu0 %v2898
        %3410 = vmatpush1.bf16.msra.mxu0 %v2897
        %3411 = vmatprep.subr.bf16.mxu0 %v2900
        %3412 = vmatpush1.bf16.msra.mxu0 %v2899
        %3413 = vmatprep.subr.bf16.mxu0 %v2902
        %3414 = vmatpush1.bf16.msra.mxu0 %v2901
        %3415 = vmatprep.subr.bf16.mxu0 %v2904
        %3416 = vmatpush1.bf16.msra.mxu0 %v2903
        %3417 = vmatprep.subr.bf16.mxu0 %v2906
        %3418 = vmatpush1.bf16.msra.mxu0 %v2905
        %3419 = vmatprep.subr.bf16.mxu0 %v2908
        %3420 = vmatpush1.bf16.msra.mxu0 %v2907
        %3421 = vmatprep.subr.bf16.mxu0 %v2910
        %3422 = vmatpush1.bf16.msra.mxu0 %v2909
        %3423 = vmatprep.subr.bf16.mxu0 %v2912
        %3424 = vmatpush1.bf16.msra.mxu0 %v2911
        %3425 = vmatprep.subr.bf16.mxu0 %v2914
        %3426 = vmatpush1.bf16.msra.mxu0 %v2913
        %3427 = vmatprep.subr.bf16.mxu0 %v2916
        %3428 = vmatpush1.bf16.msra.mxu0 %v2915
        %3429 = vmatprep.mubr.bf16.mxu0 %v1642
        %3430 = vmatmul.mubr.bf16.gmra.mrb[0].mxu0 %v1641
        %v3431 = vpop.f32.mrb[0].mxu0
        %v3432 = vadd.f32 %v2110, %v3431
        %v3433 = vpop.f32.mrb[0].mxu0
        %v3434 = vadd.f32 %v2114, %v3433
        %v3435 = vpop.f32.mrb[0].mxu0
        %v3436 = vadd.f32 %v2110, %v3435
        %v3437 = vpop.f32.mrb[0].mxu0
        %v3438 = vadd.f32 %v2114, %v3437
        %3439 = vmatprep.mubr.bf16.mxu0 %v1658
        %3440 = vmatmul.mubr.bf16.gmra.mrb[0].mxu0 %v1657
        %v3441 = vpop.f32.mrb[0].mxu0
        %v3442 = vadd.f32 %v2110, %v3441
        %v3443 = vpop.f32.mrb[0].mxu0
        %v3444 = vadd.f32 %v2114, %v3443
        %v3445 = vpop.f32.mrb[0].mxu0
        %v3446 = vadd.f32 %v2110, %v3445
        %v3447 = vpop.f32.mrb[0].mxu0
        %v3448 = vadd.f32 %v2114, %v3447
        %3449 = vmatprep.mubr.bf16.mxu0 %v1674
        %3450 = vmatmul.mubr.bf16.gmra.mrb[0].mxu0 %v1673
        %v3451 = vpop.f32.mrb[0].mxu0
        %v3452 = vadd.f32 %v2110, %v3451
        %v3453 = vpop.f32.mrb[0].mxu0
        %v3454 = vadd.f32 %v2114, %v3453
        %v3455 = vpop.f32.mrb[0].mxu0
        %v3456 = vadd.f32 %v2110, %v3455
        %v3457 = vpop.f32.mrb[0].mxu0
        %v3458 = vadd.f32 %v2114, %v3457
        %3459 = vmatprep.mubr.bf16.mxu0 %v1690
        %3460 = vmatmul.mubr.bf16.gmra.mrb[0].mxu0 %v1689
        %v3461 = vpop.f32.mrb[0].mxu0
        %v3462 = vadd.f32 %v2110, %v3461
        %v3463 = vpop.f32.mrb[0].mxu0
        %v3464 = vadd.f32 %v2114, %v3463
        %v3465 = vpop.f32.mrb[0].mxu0
        %v3466 = vadd.f32 %v2110, %v3465
        %v3467 = vpop.f32.mrb[0].mxu0
        %v3468 = vadd.f32 %v2114, %v3467
        %3469 = vmatprep.mubr.bf16.mxu0 %v1706
        %3470 = vmatmul.mubr.bf16.gmra.mrb[0].mxu0 %v1705
        %v3471 = vpop.f32.mrb[0].mxu0
        %v3472 = vadd.f32 %v2110, %v3471
        %v3473 = vpop.f32.mrb[0].mxu0
        %v3474 = vadd.f32 %v2114, %v3473
        %v3475 = vpop.f32.mrb[0].mxu0
        %v3476 = vadd.f32 %v2110, %v3475
        %v3477 = vpop.f32.mrb[0].mxu0
        %v3478 = vadd.f32 %v2114, %v3477
        %3479 = vmatprep.mubr.bf16.mxu0 %v1722
        %3480 = vmatmul.mubr.bf16.gmra.mrb[0].mxu0 %v1721
        %v3481 = vpop.f32.mrb[0].mxu0
        %v3482 = vadd.f32 %v2110, %v3481
        %v3483 = vpop.f32.mrb[0].mxu0
        %v3484 = vadd.f32 %v2114, %v3483
        %v3485 = vpop.f32.mrb[0].mxu0
        %v3486 = vadd.f32 %v2110, %v3485
        %v3487 = vpop.f32.mrb[0].mxu0
        %v3488 = vadd.f32 %v2114, %v3487
        %3489 = vmatprep.mubr.bf16.mxu0 %v1738
        %3490 = vmatmul.mubr.bf16.gmra.mrb[0].mxu0 %v1737
        %v3491 = vpop.f32.mrb[0].mxu0
        %v3492 = vadd.f32 %v2110, %v3491
        %v3493 = vpop.f32.mrb[0].mxu0
        %v3494 = vadd.f32 %v2114, %v3493
        %v3495 = vpop.f32.mrb[0].mxu0
        %v3496 = vadd.f32 %v2110, %v3495
        %v3497 = vpop.f32.mrb[0].mxu0
        %v3498 = vadd.f32 %v2114, %v3497
        %3499 = vmatprep.mubr.bf16.mxu0 %v1754
        %3500 = vmatmul.mubr.bf16.gmra.mrb[0].mxu0 %v1753
        %v3501 = vpop.f32.mrb[0].mxu0
        %v3502 = vadd.f32 %v2110, %v3501
        %v3503 = vpop.f32.mrb[0].mxu0
        %v3504 = vadd.f32 %v2114, %v3503
        %v3505 = vpop.f32.mrb[0].mxu0
        %v3506 = vadd.f32 %v2110, %v3505
        %v3507 = vpop.f32.mrb[0].mxu0
        %v3508 = vadd.f32 %v2114, %v3507
        %3509 = vmatprep.mubr.bf16.mxu0 %v1770
        %3510 = vmatmul.mubr.bf16.gmra.mrb[0].mxu0 %v1769
        %v3511 = vpop.f32.mrb[0].mxu0
        %v3512 = vadd.f32 %v2110, %v3511
        %v3513 = vpop.f32.mrb[0].mxu0
        %v3514 = vadd.f32 %v2114, %v3513
        %v3515 = vpop.f32.mrb[0].mxu0
        %v3516 = vadd.f32 %v2110, %v3515
        %v3517 = vpop.f32.mrb[0].mxu0
        %v3518 = vadd.f32 %v2114, %v3517
        %3519 = vmatprep.mubr.bf16.mxu0 %v1786
        %3520 = vmatmul.mubr.bf16.gmra.mrb[0].mxu0 %v1785
        %v3521 = vpop.f32.mrb[0].mxu0
        %v3522 = vadd.f32 %v2110, %v3521
        %v3523 = vpop.f32.mrb[0].mxu0
        %v3524 = vadd.f32 %v2114, %v3523
        %v3525 = vpop.f32.mrb[0].mxu0
        %v3526 = vadd.f32 %v2110, %v3525
        %v3527 = vpop.f32.mrb[0].mxu0
        %v3528 = vadd.f32 %v2114, %v3527
        %3529 = vmatprep.mubr.bf16.mxu0 %v1802
        %3530 = vmatmul.mubr.bf16.gmra.mrb[0].mxu0 %v1801
        %v3531 = vpop.f32.mrb[0].mxu0
        %v3532 = vadd.f32 %v2110, %v3531
        %v3533 = vpop.f32.mrb[0].mxu0
        %v3534 = vadd.f32 %v2114, %v3533
        %v3535 = vpop.f32.mrb[0].mxu0
        %v3536 = vadd.f32 %v2110, %v3535
        %v3537 = vpop.f32.mrb[0].mxu0
        %v3538 = vadd.f32 %v2114, %v3537
        %3539 = vmatprep.mubr.bf16.mxu0 %v1818
        %3540 = vmatmul.mubr.bf16.gmra.mrb[0].mxu0 %v1817
        %v3541 = vpop.f32.mrb[0].mxu0
        %v3542 = vadd.f32 %v2110, %v3541
        %v3543 = vpop.f32.mrb[0].mxu0
        %v3544 = vadd.f32 %v2114, %v3543
        %v3545 = vpop.f32.mrb[0].mxu0
        %v3546 = vadd.f32 %v2110, %v3545
        %v3547 = vpop.f32.mrb[0].mxu0
        %v3548 = vadd.f32 %v2114, %v3547
        %3549 = vmatprep.mubr.bf16.mxu0 %v1834
        %3550 = vmatmul.mubr.bf16.gmra.mrb[0].mxu0 %v1833
        %v3551 = vpop.f32.mrb[0].mxu0
        %v3552 = vadd.f32 %v2110, %v3551
        %v3553 = vpop.f32.mrb[0].mxu0
        %v3554 = vadd.f32 %v2114, %v3553
        %v3555 = vpop.f32.mrb[0].mxu0
        %v3556 = vpop.f32.mrb[0].mxu0
        %3557 = vdwg.mxu0
        %3558 = vmatprep.subr.bf16.mxu0 %v2918
        %3559 = vmatpush1.bf16.msra.mxu0 %v2917
        %3560 = vmatprep.subr.bf16.mxu0 %v2920
        %3561 = vmatpush1.bf16.msra.mxu0 %v2919
        %3562 = vmatprep.subr.bf16.mxu0 %v2922
        %3563 = vmatpush1.bf16.msra.mxu0 %v2921
        %3564 = vmatprep.subr.bf16.mxu0 %v2924
        %3565 = vmatpush1.bf16.msra.mxu0 %v2923
        %3566 = vmatprep.subr.bf16.mxu0 %v2926
        %3567 = vmatpush1.bf16.msra.mxu0 %v2925
        %3568 = vmatprep.subr.bf16.mxu0 %v2928
        %3569 = vmatpush1.bf16.msra.mxu0 %v2927
        %3570 = vmatprep.subr.bf16.mxu0 %v2930
        %3571 = vmatpush1.bf16.msra.mxu0 %v2929
        %3572 = vmatprep.subr.bf16.mxu0 %v2932
        %3573 = vmatpush1.bf16.msra.mxu0 %v2931
        %3574 = vmatprep.subr.bf16.mxu0 %v2934
        %3575 = vmatpush1.bf16.msra.mxu0 %v2933
        %3576 = vmatprep.subr.bf16.mxu0 %v2936
        %3577 = vmatpush1.bf16.msra.mxu0 %v2935
        %3578 = vmatprep.subr.bf16.mxu0 %v2938
        %3579 = vmatpush1.bf16.msra.mxu0 %v2937
        %3580 = vmatprep.subr.bf16.mxu0 %v2940
        %3581 = vmatpush1.bf16.msra.mxu0 %v2939
        %3582 = vmatprep.subr.bf16.mxu0 %v2942
        %3583 = vmatpush1.bf16.msra.mxu0 %v2941
        %3584 = vmatprep.subr.bf16.mxu0 %v2944
        %3585 = vmatpush1.bf16.msra.mxu0 %v2943
        %3586 = vmatprep.subr.bf16.mxu0 %v2946
        %3587 = vmatpush1.bf16.msra.mxu0 %v2945
        %3588 = vmatprep.subr.bf16.mxu0 %v2948
        %3589 = vmatpush1.bf16.msra.mxu0 %v2947
        %3590 = vmatprep.mubr.bf16.mxu0 %v1644
        %3591 = vmatmul.mubr.bf16.gmra.mrb[0].mxu0 %v1643
        %v3592 = vpop.f32.mrb[0].mxu0
        %v3593 = vadd.f32 %v3432, %v3592
        %v3594 = vpop.f32.mrb[0].mxu0
        %v3595 = vadd.f32 %v3434, %v3594
        %v3596 = vpop.f32.mrb[0].mxu0
        %v3597 = vadd.f32 %v3436, %v3596
        %v3598 = vpop.f32.mrb[0].mxu0
        %v3599 = vadd.f32 %v3438, %v3598
        %3600 = vmatprep.mubr.bf16.mxu0 %v1660
        %3601 = vmatmul.mubr.bf16.gmra.mrb[0].mxu0 %v1659
        %v3602 = vpop.f32.mrb[0].mxu0
        %v3603 = vadd.f32 %v3442, %v3602
        %v3604 = vpop.f32.mrb[0].mxu0
        %v3605 = vadd.f32 %v3444, %v3604
        %v3606 = vpop.f32.mrb[0].mxu0
        %v3607 = vadd.f32 %v3446, %v3606
        %v3608 = vpop.f32.mrb[0].mxu0
        %v3609 = vadd.f32 %v3448, %v3608
        %3610 = vmatprep.mubr.bf16.mxu0 %v1676
        %3611 = vmatmul.mubr.bf16.gmra.mrb[0].mxu0 %v1675
        %v3612 = vpop.f32.mrb[0].mxu0
        %v3613 = vadd.f32 %v3452, %v3612
        %v3614 = vpop.f32.mrb[0].mxu0
        %v3615 = vadd.f32 %v3454, %v3614
        %v3616 = vpop.f32.mrb[0].mxu0
        %v3617 = vadd.f32 %v3456, %v3616
        %v3618 = vpop.f32.mrb[0].mxu0
        %v3619 = vadd.f32 %v3458, %v3618
        %3620 = vmatprep.mubr.bf16.mxu0 %v1692
        %3621 = vmatmul.mubr.bf16.gmra.mrb[0].mxu0 %v1691
        %v3622 = vpop.f32.mrb[0].mxu0
        %v3623 = vadd.f32 %v3462, %v3622
        %v3624 = vpop.f32.mrb[0].mxu0
        %v3625 = vadd.f32 %v3464, %v3624
        %v3626 = vpop.f32.mrb[0].mxu0
        %v3627 = vadd.f32 %v3466, %v3626
        %v3628 = vpop.f32.mrb[0].mxu0
        %v3629 = vadd.f32 %v3468, %v3628
        %3630 = vmatprep.mubr.bf16.mxu0 %v1708
        %3631 = vmatmul.mubr.bf16.gmra.mrb[0].mxu0 %v1707
        %v3632 = vpop.f32.mrb[0].mxu0
        %v3633 = vadd.f32 %v3472, %v3632
        %v3634 = vpop.f32.mrb[0].mxu0
        %v3635 = vadd.f32 %v3474, %v3634
        %v3636 = vpop.f32.mrb[0].mxu0
        %v3637 = vadd.f32 %v3476, %v3636
        %v3638 = vpop.f32.mrb[0].mxu0
        %v3639 = vadd.f32 %v3478, %v3638
        %3640 = vmatprep.mubr.bf16.mxu0 %v1724
        %3641 = vmatmul.mubr.bf16.gmra.mrb[0].mxu0 %v1723
        %v3642 = vpop.f32.mrb[0].mxu0
        %v3643 = vadd.f32 %v3482, %v3642
        %v3644 = vpop.f32.mrb[0].mxu0
        %v3645 = vadd.f32 %v3484, %v3644
        %v3646 = vpop.f32.mrb[0].mxu0
        %v3647 = vadd.f32 %v3486, %v3646
        %v3648 = vpop.f32.mrb[0].mxu0
        %v3649 = vadd.f32 %v3488, %v3648
        %3650 = vmatprep.mubr.bf16.mxu0 %v1740
        %3651 = vmatmul.mubr.bf16.gmra.mrb[0].mxu0 %v1739
        %v3652 = vpop.f32.mrb[0].mxu0
        %v3653 = vadd.f32 %v3492, %v3652
        %v3654 = vpop.f32.mrb[0].mxu0
        %v3655 = vadd.f32 %v3494, %v3654
        %v3656 = vpop.f32.mrb[0].mxu0
        %v3657 = vadd.f32 %v3496, %v3656
        %v3658 = vpop.f32.mrb[0].mxu0
        %v3659 = vadd.f32 %v3498, %v3658
        %3660 = vmatprep.mubr.bf16.mxu0 %v1756
        %3661 = vmatmul.mubr.bf16.gmra.mrb[0].mxu0 %v1755
        %v3662 = vpop.f32.mrb[0].mxu0
        %v3663 = vadd.f32 %v3502, %v3662
        %v3664 = vpop.f32.mrb[0].mxu0
        %v3665 = vadd.f32 %v3504, %v3664
        %v3666 = vpop.f32.mrb[0].mxu0
        %v3667 = vadd.f32 %v3506, %v3666
        %v3668 = vpop.f32.mrb[0].mxu0
        %v3669 = vadd.f32 %v3508, %v3668
        %3670 = vmatprep.mubr.bf16.mxu0 %v1772
        %3671 = vmatmul.mubr.bf16.gmra.mrb[0].mxu0 %v1771
        %v3672 = vpop.f32.mrb[0].mxu0
        %v3673 = vadd.f32 %v3512, %v3672
        %v3674 = vpop.f32.mrb[0].mxu0
        %v3675 = vadd.f32 %v3514, %v3674
        %v3676 = vpop.f32.mrb[0].mxu0
        %v3677 = vadd.f32 %v3516, %v3676
        %v3678 = vpop.f32.mrb[0].mxu0
        %v3679 = vadd.f32 %v3518, %v3678
        %3680 = vmatprep.mubr.bf16.mxu0 %v1788
        %3681 = vmatmul.mubr.bf16.gmra.mrb[0].mxu0 %v1787
        %v3682 = vpop.f32.mrb[0].mxu0
        %v3683 = vadd.f32 %v3522, %v3682
        %v3684 = vpop.f32.mrb[0].mxu0
        %v3685 = vadd.f32 %v3524, %v3684
        %v3686 = vpop.f32.mrb[0].mxu0
        %v3687 = vadd.f32 %v3526, %v3686
        %v3688 = vpop.f32.mrb[0].mxu0
        %v3689 = vadd.f32 %v3528, %v3688
        %3690 = vmatprep.mubr.bf16.mxu0 %v1804
        %3691 = vmatmul.mubr.bf16.gmra.mrb[0].mxu0 %v1803
        %v3692 = vpop.f32.mrb[0].mxu0
        %v3693 = vadd.f32 %v3532, %v3692
        %v3694 = vpop.f32.mrb[0].mxu0
        %v3695 = vadd.f32 %v3534, %v3694
        %v3696 = vpop.f32.mrb[0].mxu0
        %v3697 = vadd.f32 %v3536, %v3696
        %v3698 = vpop.f32.mrb[0].mxu0
        %v3699 = vadd.f32 %v3538, %v3698
        %3700 = vmatprep.mubr.bf16.mxu0 %v1820
        %3701 = vmatmul.mubr.bf16.gmra.mrb[0].mxu0 %v1819
        %v3702 = vpop.f32.mrb[0].mxu0
        %v3703 = vadd.f32 %v3542, %v3702
        %v3704 = vpop.f32.mrb[0].mxu0
        %v3705 = vadd.f32 %v3544, %v3704
        %v3706 = vpop.f32.mrb[0].mxu0
        %v3707 = vadd.f32 %v3546, %v3706
        %v3708 = vpop.f32.mrb[0].mxu0
        %v3709 = vadd.f32 %v3548, %v3708
        %3710 = vmatprep.mubr.bf16.mxu0 %v1836
        %3711 = vmatmul.mubr.bf16.gmra.mrb[0].mxu0 %v1835
        %v3712 = vpop.f32.mrb[0].mxu0
        %v3713 = vadd.f32 %v3552, %v3712
        %v3714 = vpop.f32.mrb[0].mxu0
        %v3715 = vadd.f32 %v3554, %v3714
        %v3716 = vpop.f32.mrb[0].mxu0
        %v3717 = vpop.f32.mrb[0].mxu0
        %3718 = vdwg.mxu0
        %3719 = vmatprep.subr.bf16.mxu0 %v2950
        %3720 = vmatpush1.bf16.msra.mxu0 %v2949
        %3721 = vmatprep.subr.bf16.mxu0 %v2952
        %3722 = vmatpush1.bf16.msra.mxu0 %v2951
        %3723 = vmatprep.subr.bf16.mxu0 %v2954
        %3724 = vmatpush1.bf16.msra.mxu0 %v2953
        %3725 = vmatprep.subr.bf16.mxu0 %v2956
        %3726 = vmatpush1.bf16.msra.mxu0 %v2955
        %3727 = vmatprep.subr.bf16.mxu0 %v2958
        %3728 = vmatpush1.bf16.msra.mxu0 %v2957
        %3729 = vmatprep.subr.bf16.mxu0 %v2960
        %3730 = vmatpush1.bf16.msra.mxu0 %v2959
        %3731 = vmatprep.subr.bf16.mxu0 %v2962
        %3732 = vmatpush1.bf16.msra.mxu0 %v2961
        %3733 = vmatprep.subr.bf16.mxu0 %v2964
        %3734 = vmatpush1.bf16.msra.mxu0 %v2963
        %3735 = vmatprep.subr.bf16.mxu0 %v2966
        %3736 = vmatpush1.bf16.msra.mxu0 %v2965
        %3737 = vmatprep.subr.bf16.mxu0 %v2968
        %3738 = vmatpush1.bf16.msra.mxu0 %v2967
        %3739 = vmatprep.subr.bf16.mxu0 %v2970
        %3740 = vmatpush1.bf16.msra.mxu0 %v2969
        %3741 = vmatprep.subr.bf16.mxu0 %v2972
        %3742 = vmatpush1.bf16.msra.mxu0 %v2971
        %3743 = vmatprep.subr.bf16.mxu0 %v2974
        %3744 = vmatpush1.bf16.msra.mxu0 %v2973
        %3745 = vmatprep.subr.bf16.mxu0 %v2976
        %3746 = vmatpush1.bf16.msra.mxu0 %v2975
        %3747 = vmatprep.subr.bf16.mxu0 %v2978
        %3748 = vmatpush1.bf16.msra.mxu0 %v2977
        %3749 = vmatprep.subr.bf16.mxu0 %v2980
        %3750 = vmatpush1.bf16.msra.mxu0 %v2979
        %3751 = vmatprep.mubr.bf16.mxu0 %v1646
        %3752 = vmatmul.mubr.bf16.gmra.mrb[0].mxu0 %v1645
        %v3753 = vpop.f32.mrb[0].mxu0
        %v3754 = vadd.f32 %v3593, %v3753
        %v3755 = vpop.f32.mrb[0].mxu0
        %v3756 = vadd.f32 %v3595, %v3755
        %v3757 = vpop.f32.mrb[0].mxu0
        %v3758 = vadd.f32 %v3597, %v3757
        %v3759 = vpop.f32.mrb[0].mxu0
        %v3760 = vadd.f32 %v3599, %v3759
        %3761 = vmatprep.mubr.bf16.mxu0 %v1662
        %3762 = vmatmul.mubr.bf16.gmra.mrb[0].mxu0 %v1661
        %v3763 = vpop.f32.mrb[0].mxu0
        %v3764 = vadd.f32 %v3603, %v3763
        %v3765 = vpop.f32.mrb[0].mxu0
        %v3766 = vadd.f32 %v3605, %v3765
        %v3767 = vpop.f32.mrb[0].mxu0
        %v3768 = vadd.f32 %v3607, %v3767
        %v3769 = vpop.f32.mrb[0].mxu0
        %v3770 = vadd.f32 %v3609, %v3769
        %3771 = vmatprep.mubr.bf16.mxu0 %v1678
        %3772 = vmatmul.mubr.bf16.gmra.mrb[0].mxu0 %v1677
        %v3773 = vpop.f32.mrb[0].mxu0
        %v3774 = vadd.f32 %v3613, %v3773
        %v3775 = vpop.f32.mrb[0].mxu0
        %v3776 = vadd.f32 %v3615, %v3775
        %v3777 = vpop.f32.mrb[0].mxu0
        %v3778 = vadd.f32 %v3617, %v3777
        %v3779 = vpop.f32.mrb[0].mxu0
        %v3780 = vadd.f32 %v3619, %v3779
        %3781 = vmatprep.mubr.bf16.mxu0 %v1694
        %3782 = vmatmul.mubr.bf16.gmra.mrb[0].mxu0 %v1693
        %v3783 = vpop.f32.mrb[0].mxu0
        %v3784 = vadd.f32 %v3623, %v3783
        %v3785 = vpop.f32.mrb[0].mxu0
        %v3786 = vadd.f32 %v3625, %v3785
        %v3787 = vpop.f32.mrb[0].mxu0
        %v3788 = vadd.f32 %v3627, %v3787
        %v3789 = vpop.f32.mrb[0].mxu0
        %v3790 = vadd.f32 %v3629, %v3789
        %3791 = vmatprep.mubr.bf16.mxu0 %v1710
        %3792 = vmatmul.mubr.bf16.gmra.mrb[0].mxu0 %v1709
        %v3793 = vpop.f32.mrb[0].mxu0
        %v3794 = vadd.f32 %v3633, %v3793
        %v3795 = vpop.f32.mrb[0].mxu0
        %v3796 = vadd.f32 %v3635, %v3795
        %v3797 = vpop.f32.mrb[0].mxu0
        %v3798 = vadd.f32 %v3637, %v3797
        %v3799 = vpop.f32.mrb[0].mxu0
        %v3800 = vadd.f32 %v3639, %v3799
        %3801 = vmatprep.mubr.bf16.mxu0 %v1726
        %3802 = vmatmul.mubr.bf16.gmra.mrb[0].mxu0 %v1725
        %v3803 = vpop.f32.mrb[0].mxu0
        %v3804 = vadd.f32 %v3643, %v3803
        %v3805 = vpop.f32.mrb[0].mxu0
        %v3806 = vadd.f32 %v3645, %v3805
        %v3807 = vpop.f32.mrb[0].mxu0
        %v3808 = vadd.f32 %v3647, %v3807
        %v3809 = vpop.f32.mrb[0].mxu0
        %v3810 = vadd.f32 %v3649, %v3809
        %3811 = vmatprep.mubr.bf16.mxu0 %v1742
        %3812 = vmatmul.mubr.bf16.gmra.mrb[0].mxu0 %v1741
        %v3813 = vpop.f32.mrb[0].mxu0
        %v3814 = vadd.f32 %v3653, %v3813
        %v3815 = vpop.f32.mrb[0].mxu0
        %v3816 = vadd.f32 %v3655, %v3815
        %v3817 = vpop.f32.mrb[0].mxu0
        %v3818 = vadd.f32 %v3657, %v3817
        %v3819 = vpop.f32.mrb[0].mxu0
        %v3820 = vadd.f32 %v3659, %v3819
        %3821 = vmatprep.mubr.bf16.mxu0 %v1758
        %3822 = vmatmul.mubr.bf16.gmra.mrb[0].mxu0 %v1757
        %v3823 = vpop.f32.mrb[0].mxu0
        %v3824 = vadd.f32 %v3663, %v3823
        %v3825 = vpop.f32.mrb[0].mxu0
        %v3826 = vadd.f32 %v3665, %v3825
        %v3827 = vpop.f32.mrb[0].mxu0
        %v3828 = vadd.f32 %v3667, %v3827
        %v3829 = vpop.f32.mrb[0].mxu0
        %v3830 = vadd.f32 %v3669, %v3829
        %3831 = vmatprep.mubr.bf16.mxu0 %v1774
        %3832 = vmatmul.mubr.bf16.gmra.mrb[0].mxu0 %v1773
        %v3833 = vpop.f32.mrb[0].mxu0
        %v3834 = vadd.f32 %v3673, %v3833
        %v3835 = vpop.f32.mrb[0].mxu0
        %v3836 = vadd.f32 %v3675, %v3835
        %v3837 = vpop.f32.mrb[0].mxu0
        %v3838 = vadd.f32 %v3677, %v3837
        %v3839 = vpop.f32.mrb[0].mxu0
        %v3840 = vadd.f32 %v3679, %v3839
        %3841 = vmatprep.mubr.bf16.mxu0 %v1790
        %3842 = vmatmul.mubr.bf16.gmra.mrb[0].mxu0 %v1789
        %v3843 = vpop.f32.mrb[0].mxu0
        %v3844 = vadd.f32 %v3683, %v3843
        %v3845 = vpop.f32.mrb[0].mxu0
        %v3846 = vadd.f32 %v3685, %v3845
        %v3847 = vpop.f32.mrb[0].mxu0
        %v3848 = vadd.f32 %v3687, %v3847
        %v3849 = vpop.f32.mrb[0].mxu0
        %v3850 = vadd.f32 %v3689, %v3849
        %3851 = vmatprep.mubr.bf16.mxu0 %v1806
        %3852 = vmatmul.mubr.bf16.gmra.mrb[0].mxu0 %v1805
        %v3853 = vpop.f32.mrb[0].mxu0
        %v3854 = vadd.f32 %v3693, %v3853
        %v3855 = vpop.f32.mrb[0].mxu0
        %v3856 = vadd.f32 %v3695, %v3855
        %v3857 = vpop.f32.mrb[0].mxu0
        %v3858 = vadd.f32 %v3697, %v3857
        %v3859 = vpop.f32.mrb[0].mxu0
        %v3860 = vadd.f32 %v3699, %v3859
        %3861 = vmatprep.mubr.bf16.mxu0 %v1822
        %3862 = vmatmul.mubr.bf16.gmra.mrb[0].mxu0 %v1821
        %v3863 = vpop.f32.mrb[0].mxu0
        %v3864 = vadd.f32 %v3703, %v3863
        %v3865 = vpop.f32.mrb[0].mxu0
        %v3866 = vadd.f32 %v3705, %v3865
        %v3867 = vpop.f32.mrb[0].mxu0
        %v3868 = vadd.f32 %v3707, %v3867
        %v3869 = vpop.f32.mrb[0].mxu0
        %v3870 = vadd.f32 %v3709, %v3869
        %3871 = vmatprep.mubr.bf16.mxu0 %v1838
        %3872 = vmatmul.mubr.bf16.gmra.mrb[0].mxu0 %v1837
        %v3873 = vpop.f32.mrb[0].mxu0
        %v3874 = vadd.f32 %v3713, %v3873
        %v3875 = vpop.f32.mrb[0].mxu0
        %v3876 = vadd.f32 %v3715, %v3875
        %v3877 = vpop.f32.mrb[0].mxu0
        %v3878 = vpop.f32.mrb[0].mxu0
        %3879 = vdwg.mxu0
        %3880 = vmatprep.subr.bf16.mxu0 %v2982
        %3881 = vmatpush1.bf16.msra.mxu0 %v2981
        %3882 = vmatprep.subr.bf16.mxu0 %v2984
        %3883 = vmatpush1.bf16.msra.mxu0 %v2983
        %3884 = vmatprep.subr.bf16.mxu0 %v2986
        %3885 = vmatpush1.bf16.msra.mxu0 %v2985
        %3886 = vmatprep.subr.bf16.mxu0 %v2988
        %3887 = vmatpush1.bf16.msra.mxu0 %v2987
        %3888 = vmatprep.subr.bf16.mxu0 %v2990
        %3889 = vmatpush1.bf16.msra.mxu0 %v2989
        %3890 = vmatprep.subr.bf16.mxu0 %v2992
        %3891 = vmatpush1.bf16.msra.mxu0 %v2991
        %3892 = vmatprep.subr.bf16.mxu0 %v2994
        %3893 = vmatpush1.bf16.msra.mxu0 %v2993
        %3894 = vmatprep.subr.bf16.mxu0 %v2996
        %3895 = vmatpush1.bf16.msra.mxu0 %v2995
        %3896 = vmatprep.subr.bf16.mxu0 %v2998
        %3897 = vmatpush1.bf16.msra.mxu0 %v2997
        %3898 = vmatprep.subr.bf16.mxu0 %v3000
        %3899 = vmatpush1.bf16.msra.mxu0 %v2999
        %3900 = vmatprep.subr.bf16.mxu0 %v3002
        %3901 = vmatpush1.bf16.msra.mxu0 %v3001
        %3902 = vmatprep.subr.bf16.mxu0 %v3004
        %3903 = vmatpush1.bf16.msra.mxu0 %v3003
        %3904 = vmatprep.subr.bf16.mxu0 %v3006
        %3905 = vmatpush1.bf16.msra.mxu0 %v3005
        %3906 = vmatprep.subr.bf16.mxu0 %v3008
        %3907 = vmatpush1.bf16.msra.mxu0 %v3007
        %3908 = vmatprep.subr.bf16.mxu0 %v3010
        %3909 = vmatpush1.bf16.msra.mxu0 %v3009
        %3910 = vmatprep.subr.bf16.mxu0 %v3012
        %3911 = vmatpush1.bf16.msra.mxu0 %v3011
        %3912 = vmatprep.mubr.bf16.mxu0 %v1648
        %3913 = vmatmul.mubr.bf16.gmra.mrb[0].mxu0 %v1647
        %v3914 = vpop.f32.mrb[0].mxu0
        %v3915 = vadd.f32 %v3754, %v3914
        %v3916 = vpop.f32.mrb[0].mxu0
        %v3917 = vadd.f32 %v3756, %v3916
        %v3918 = vpop.f32.mrb[0].mxu0
        %v3919 = vadd.f32 %v3758, %v3918
        %v3920 = vpop.f32.mrb[0].mxu0
        %v3921 = vadd.f32 %v3760, %v3920
        %3922 = vmatprep.mubr.bf16.mxu0 %v1664
        %3923 = vmatmul.mubr.bf16.gmra.mrb[0].mxu0 %v1663
        %v3924 = vpop.f32.mrb[0].mxu0
        %v3925 = vadd.f32 %v3764, %v3924
        %v3926 = vpop.f32.mrb[0].mxu0
        %v3927 = vadd.f32 %v3766, %v3926
        %v3928 = vpop.f32.mrb[0].mxu0
        %v3929 = vadd.f32 %v3768, %v3928
        %v3930 = vpop.f32.mrb[0].mxu0
        %v3931 = vadd.f32 %v3770, %v3930
        %3932 = vmatprep.mubr.bf16.mxu0 %v1680
        %3933 = vmatmul.mubr.bf16.gmra.mrb[0].mxu0 %v1679
        %v3934 = vpop.f32.mrb[0].mxu0
        %v3935 = vadd.f32 %v3774, %v3934
        %v3936 = vpop.f32.mrb[0].mxu0
        %v3937 = vadd.f32 %v3776, %v3936
        %v3938 = vpop.f32.mrb[0].mxu0
        %v3939 = vadd.f32 %v3778, %v3938
        %v3940 = vpop.f32.mrb[0].mxu0
        %v3941 = vadd.f32 %v3780, %v3940
        %3942 = vmatprep.mubr.bf16.mxu0 %v1696
        %3943 = vmatmul.mubr.bf16.gmra.mrb[0].mxu0 %v1695
        %v3944 = vpop.f32.mrb[0].mxu0
        %v3945 = vadd.f32 %v3784, %v3944
        %v3946 = vpop.f32.mrb[0].mxu0
        %v3947 = vadd.f32 %v3786, %v3946
        %v3948 = vpop.f32.mrb[0].mxu0
        %v3949 = vadd.f32 %v3788, %v3948
        %v3950 = vpop.f32.mrb[0].mxu0
        %v3951 = vadd.f32 %v3790, %v3950
        %3952 = vmatprep.mubr.bf16.mxu0 %v1712
        %3953 = vmatmul.mubr.bf16.gmra.mrb[0].mxu0 %v1711
        %v3954 = vpop.f32.mrb[0].mxu0
        %v3955 = vadd.f32 %v3794, %v3954
        %v3956 = vpop.f32.mrb[0].mxu0
        %v3957 = vadd.f32 %v3796, %v3956
        %v3958 = vpop.f32.mrb[0].mxu0
        %v3959 = vadd.f32 %v3798, %v3958
        %v3960 = vpop.f32.mrb[0].mxu0
        %v3961 = vadd.f32 %v3800, %v3960
        %3962 = vmatprep.mubr.bf16.mxu0 %v1728
        %3963 = vmatmul.mubr.bf16.gmra.mrb[0].mxu0 %v1727
        %v3964 = vpop.f32.mrb[0].mxu0
        %v3965 = vadd.f32 %v3804, %v3964
        %v3966 = vpop.f32.mrb[0].mxu0
        %v3967 = vadd.f32 %v3806, %v3966
        %v3968 = vpop.f32.mrb[0].mxu0
        %v3969 = vadd.f32 %v3808, %v3968
        %v3970 = vpop.f32.mrb[0].mxu0
        %v3971 = vadd.f32 %v3810, %v3970
        %3972 = vmatprep.mubr.bf16.mxu0 %v1744
        %3973 = vmatmul.mubr.bf16.gmra.mrb[0].mxu0 %v1743
        %v3974 = vpop.f32.mrb[0].mxu0
        %v3975 = vadd.f32 %v3814, %v3974
        %v3976 = vpop.f32.mrb[0].mxu0
        %v3977 = vadd.f32 %v3816, %v3976
        %v3978 = vpop.f32.mrb[0].mxu0
        %v3979 = vadd.f32 %v3818, %v3978
        %v3980 = vpop.f32.mrb[0].mxu0
        %v3981 = vadd.f32 %v3820, %v3980
        %3982 = vmatprep.mubr.bf16.mxu0 %v1760
        %3983 = vmatmul.mubr.bf16.gmra.mrb[0].mxu0 %v1759
        %v3984 = vpop.f32.mrb[0].mxu0
        %v3985 = vadd.f32 %v3824, %v3984
        %v3986 = vpop.f32.mrb[0].mxu0
        %v3987 = vadd.f32 %v3826, %v3986
        %v3988 = vpop.f32.mrb[0].mxu0
        %v3989 = vadd.f32 %v3828, %v3988
        %v3990 = vpop.f32.mrb[0].mxu0
        %v3991 = vadd.f32 %v3830, %v3990
        %3992 = vmatprep.mubr.bf16.mxu0 %v1776
        %3993 = vmatmul.mubr.bf16.gmra.mrb[0].mxu0 %v1775
        %v3994 = vpop.f32.mrb[0].mxu0
        %v3995 = vadd.f32 %v3834, %v3994
        %v3996 = vpop.f32.mrb[0].mxu0
        %v3997 = vadd.f32 %v3836, %v3996
        %v3998 = vpop.f32.mrb[0].mxu0
        %v3999 = vadd.f32 %v3838, %v3998
        %v4000 = vpop.f32.mrb[0].mxu0
        %v4001 = vadd.f32 %v3840, %v4000
        %4002 = vmatprep.mubr.bf16.mxu0 %v1792
        %4003 = vmatmul.mubr.bf16.gmra.mrb[0].mxu0 %v1791
        %v4004 = vpop.f32.mrb[0].mxu0
        %v4005 = vadd.f32 %v3844, %v4004
        %v4006 = vpop.f32.mrb[0].mxu0
        %v4007 = vadd.f32 %v3846, %v4006
        %v4008 = vpop.f32.mrb[0].mxu0
        %v4009 = vadd.f32 %v3848, %v4008
        %v4010 = vpop.f32.mrb[0].mxu0
        %v4011 = vadd.f32 %v3850, %v4010
        %4012 = vmatprep.mubr.bf16.mxu0 %v1808
        %4013 = vmatmul.mubr.bf16.gmra.mrb[0].mxu0 %v1807
        %v4014 = vpop.f32.mrb[0].mxu0
        %v4015 = vadd.f32 %v3854, %v4014
        %v4016 = vpop.f32.mrb[0].mxu0
        %v4017 = vadd.f32 %v3856, %v4016
        %v4018 = vpop.f32.mrb[0].mxu0
        %v4019 = vadd.f32 %v3858, %v4018
        %v4020 = vpop.f32.mrb[0].mxu0
        %v4021 = vadd.f32 %v3860, %v4020
        %4022 = vmatprep.mubr.bf16.mxu0 %v1824
        %4023 = vmatmul.mubr.bf16.gmra.mrb[0].mxu0 %v1823
        %v4024 = vpop.f32.mrb[0].mxu0
        %v4025 = vadd.f32 %v3864, %v4024
        %v4026 = vpop.f32.mrb[0].mxu0
        %v4027 = vadd.f32 %v3866, %v4026
        %v4028 = vpop.f32.mrb[0].mxu0
        %v4029 = vadd.f32 %v3868, %v4028
        %v4030 = vpop.f32.mrb[0].mxu0
        %v4031 = vadd.f32 %v3870, %v4030
        %4032 = vmatprep.mubr.bf16.mxu0 %v1840
        %4033 = vmatmul.mubr.bf16.gmra.mrb[0].mxu0 %v1839
        %v4034 = vpop.f32.mrb[0].mxu0
        %v4035 = vadd.f32 %v3874, %v4034
        %v4036 = vpop.f32.mrb[0].mxu0
        %v4037 = vadd.f32 %v3876, %v4036
        %v4038 = vpop.f32.mrb[0].mxu0
        %v4039 = vpop.f32.mrb[0].mxu0
        %4040 = vdwg.mxu0
        %4041 = vmatprep.subr.bf16.mxu0 %v3014
        %4042 = vmatpush1.bf16.msra.mxu0 %v3013
        %4043 = vmatprep.subr.bf16.mxu0 %v3016
        %4044 = vmatpush1.bf16.msra.mxu0 %v3015
        %4045 = vmatprep.subr.bf16.mxu0 %v3018
        %4046 = vmatpush1.bf16.msra.mxu0 %v3017
        %4047 = vmatprep.subr.bf16.mxu0 %v3020
        %4048 = vmatpush1.bf16.msra.mxu0 %v3019
        %4049 = vmatprep.subr.bf16.mxu0 %v3022
        %4050 = vmatpush1.bf16.msra.mxu0 %v3021
        %4051 = vmatprep.subr.bf16.mxu0 %v3024
        %4052 = vmatpush1.bf16.msra.mxu0 %v3023
        %4053 = vmatprep.subr.bf16.mxu0 %v3026
        %4054 = vmatpush1.bf16.msra.mxu0 %v3025
        %4055 = vmatprep.subr.bf16.mxu0 %v3028
        %4056 = vmatpush1.bf16.msra.mxu0 %v3027
        %4057 = vmatprep.subr.bf16.mxu0 %v3030
        %4058 = vmatpush1.bf16.msra.mxu0 %v3029
        %4059 = vmatprep.subr.bf16.mxu0 %v3032
        %4060 = vmatpush1.bf16.msra.mxu0 %v3031
        %4061 = vmatprep.subr.bf16.mxu0 %v3034
        %4062 = vmatpush1.bf16.msra.mxu0 %v3033
        %4063 = vmatprep.subr.bf16.mxu0 %v3036
        %4064 = vmatpush1.bf16.msra.mxu0 %v3035
        %4065 = vmatprep.subr.bf16.mxu0 %v3038
        %4066 = vmatpush1.bf16.msra.mxu0 %v3037
        %4067 = vmatprep.subr.bf16.mxu0 %v3040
        %4068 = vmatpush1.bf16.msra.mxu0 %v3039
        %4069 = vmatprep.subr.bf16.mxu0 %v3042
        %4070 = vmatpush1.bf16.msra.mxu0 %v3041
        %4071 = vmatprep.subr.bf16.mxu0 %v3044
        %4072 = vmatpush1.bf16.msra.mxu0 %v3043
        %4073 = vmatprep.mubr.bf16.mxu0 %v1650
        %4074 = vmatmul.mubr.bf16.gmra.mrb[0].mxu0 %v1649
        %v4075 = vpop.f32.mrb[0].mxu0
        %v4076 = vadd.f32 %v3915, %v4075
        %v4077 = vpop.f32.mrb[0].mxu0
        %v4078 = vadd.f32 %v3917, %v4077
        %v4079 = vpop.f32.mrb[0].mxu0
        %v4080 = vadd.f32 %v3919, %v4079
        %v4081 = vpop.f32.mrb[0].mxu0
        %v4082 = vadd.f32 %v3921, %v4081
        %4083 = vmatprep.mubr.bf16.mxu0 %v1666
        %4084 = vmatmul.mubr.bf16.gmra.mrb[0].mxu0 %v1665
        %v4085 = vpop.f32.mrb[0].mxu0
        %v4086 = vadd.f32 %v3925, %v4085
        %v4087 = vpop.f32.mrb[0].mxu0
        %v4088 = vadd.f32 %v3927, %v4087
        %v4089 = vpop.f32.mrb[0].mxu0
        %v4090 = vadd.f32 %v3929, %v4089
        %v4091 = vpop.f32.mrb[0].mxu0
        %v4092 = vadd.f32 %v3931, %v4091
        %4093 = vmatprep.mubr.bf16.mxu0 %v1682
        %4094 = vmatmul.mubr.bf16.gmra.mrb[0].mxu0 %v1681
        %v4095 = vpop.f32.mrb[0].mxu0
        %v4096 = vadd.f32 %v3935, %v4095
        %v4097 = vpop.f32.mrb[0].mxu0
        %v4098 = vadd.f32 %v3937, %v4097
        %v4099 = vpop.f32.mrb[0].mxu0
        %v4100 = vadd.f32 %v3939, %v4099
        %v4101 = vpop.f32.mrb[0].mxu0
        %v4102 = vadd.f32 %v3941, %v4101
        %4103 = vmatprep.mubr.bf16.mxu0 %v1698
        %4104 = vmatmul.mubr.bf16.gmra.mrb[0].mxu0 %v1697
        %v4105 = vpop.f32.mrb[0].mxu0
        %v4106 = vadd.f32 %v3945, %v4105
        %v4107 = vpop.f32.mrb[0].mxu0
        %v4108 = vadd.f32 %v3947, %v4107
        %v4109 = vpop.f32.mrb[0].mxu0
        %v4110 = vadd.f32 %v3949, %v4109
        %v4111 = vpop.f32.mrb[0].mxu0
        %v4112 = vadd.f32 %v3951, %v4111
        %4113 = vmatprep.mubr.bf16.mxu0 %v1714
        %4114 = vmatmul.mubr.bf16.gmra.mrb[0].mxu0 %v1713
        %v4115 = vpop.f32.mrb[0].mxu0
        %v4116 = vadd.f32 %v3955, %v4115
        %v4117 = vpop.f32.mrb[0].mxu0
        %v4118 = vadd.f32 %v3957, %v4117
        %v4119 = vpop.f32.mrb[0].mxu0
        %v4120 = vadd.f32 %v3959, %v4119
        %v4121 = vpop.f32.mrb[0].mxu0
        %v4122 = vadd.f32 %v3961, %v4121
        %4123 = vmatprep.mubr.bf16.mxu0 %v1730
        %4124 = vmatmul.mubr.bf16.gmra.mrb[0].mxu0 %v1729
        %v4125 = vpop.f32.mrb[0].mxu0
        %v4126 = vadd.f32 %v3965, %v4125
        %v4127 = vpop.f32.mrb[0].mxu0
        %v4128 = vadd.f32 %v3967, %v4127
        %v4129 = vpop.f32.mrb[0].mxu0
        %v4130 = vadd.f32 %v3969, %v4129
        %v4131 = vpop.f32.mrb[0].mxu0
        %v4132 = vadd.f32 %v3971, %v4131
        %4133 = vmatprep.mubr.bf16.mxu0 %v1746
        %4134 = vmatmul.mubr.bf16.gmra.mrb[0].mxu0 %v1745
        %v4135 = vpop.f32.mrb[0].mxu0
        %v4136 = vadd.f32 %v3975, %v4135
        %v4137 = vpop.f32.mrb[0].mxu0
        %v4138 = vadd.f32 %v3977, %v4137
        %v4139 = vpop.f32.mrb[0].mxu0
        %v4140 = vadd.f32 %v3979, %v4139
        %v4141 = vpop.f32.mrb[0].mxu0
        %v4142 = vadd.f32 %v3981, %v4141
        %4143 = vmatprep.mubr.bf16.mxu0 %v1762
        %4144 = vmatmul.mubr.bf16.gmra.mrb[0].mxu0 %v1761
        %v4145 = vpop.f32.mrb[0].mxu0
        %v4146 = vadd.f32 %v3985, %v4145
        %v4147 = vpop.f32.mrb[0].mxu0
        %v4148 = vadd.f32 %v3987, %v4147
        %v4149 = vpop.f32.mrb[0].mxu0
        %v4150 = vadd.f32 %v3989, %v4149
        %v4151 = vpop.f32.mrb[0].mxu0
        %v4152 = vadd.f32 %v3991, %v4151
        %4153 = vmatprep.mubr.bf16.mxu0 %v1778
        %4154 = vmatmul.mubr.bf16.gmra.mrb[0].mxu0 %v1777
        %v4155 = vpop.f32.mrb[0].mxu0
        %v4156 = vadd.f32 %v3995, %v4155
        %v4157 = vpop.f32.mrb[0].mxu0
        %v4158 = vadd.f32 %v3997, %v4157
        %v4159 = vpop.f32.mrb[0].mxu0
        %v4160 = vadd.f32 %v3999, %v4159
        %v4161 = vpop.f32.mrb[0].mxu0
        %v4162 = vadd.f32 %v4001, %v4161
        %4163 = vmatprep.mubr.bf16.mxu0 %v1794
        %4164 = vmatmul.mubr.bf16.gmra.mrb[0].mxu0 %v1793
        %v4165 = vpop.f32.mrb[0].mxu0
        %v4166 = vadd.f32 %v4005, %v4165
        %v4167 = vpop.f32.mrb[0].mxu0
        %v4168 = vadd.f32 %v4007, %v4167
        %v4169 = vpop.f32.mrb[0].mxu0
        %v4170 = vadd.f32 %v4009, %v4169
        %v4171 = vpop.f32.mrb[0].mxu0
        %v4172 = vadd.f32 %v4011, %v4171
        %4173 = vmatprep.mubr.bf16.mxu0 %v1810
        %4174 = vmatmul.mubr.bf16.gmra.mrb[0].mxu0 %v1809
        %v4175 = vpop.f32.mrb[0].mxu0
        %v4176 = vadd.f32 %v4015, %v4175
        %v4177 = vpop.f32.mrb[0].mxu0
        %v4178 = vadd.f32 %v4017, %v4177
        %v4179 = vpop.f32.mrb[0].mxu0
        %v4180 = vadd.f32 %v4019, %v4179
        %v4181 = vpop.f32.mrb[0].mxu0
        %v4182 = vadd.f32 %v4021, %v4181
        %4183 = vmatprep.mubr.bf16.mxu0 %v1826
        %4184 = vmatmul.mubr.bf16.gmra.mrb[0].mxu0 %v1825
        %v4185 = vpop.f32.mrb[0].mxu0
        %v4186 = vadd.f32 %v4025, %v4185
        %v4187 = vpop.f32.mrb[0].mxu0
        %v4188 = vadd.f32 %v4027, %v4187
        %v4189 = vpop.f32.mrb[0].mxu0
        %v4190 = vadd.f32 %v4029, %v4189
        %v4191 = vpop.f32.mrb[0].mxu0
        %v4192 = vadd.f32 %v4031, %v4191
        %4193 = vmatprep.mubr.bf16.mxu0 %v1842
        %4194 = vmatmul.mubr.bf16.gmra.mrb[0].mxu0 %v1841
        %v4195 = vpop.f32.mrb[0].mxu0
        %v4196 = vadd.f32 %v4035, %v4195
        %v4197 = vpop.f32.mrb[0].mxu0
        %v4198 = vadd.f32 %v4037, %v4197
        %v4199 = vpop.f32.mrb[0].mxu0
        %v4200 = vpop.f32.mrb[0].mxu0
        %4201 = vdwg.mxu0
        %4202 = vmatprep.subr.bf16.mxu0 %v3046
        %4203 = vmatpush1.bf16.msra.mxu0 %v3045
        %4204 = vmatprep.subr.bf16.mxu0 %v3048
        %4205 = vmatpush1.bf16.msra.mxu0 %v3047
        %4206 = vmatprep.subr.bf16.mxu0 %v3050
        %4207 = vmatpush1.bf16.msra.mxu0 %v3049
        %4208 = vmatprep.subr.bf16.mxu0 %v3052
        %4209 = vmatpush1.bf16.msra.mxu0 %v3051
        %4210 = vmatprep.subr.bf16.mxu0 %v3054
        %4211 = vmatpush1.bf16.msra.mxu0 %v3053
        %4212 = vmatprep.subr.bf16.mxu0 %v3056
        %4213 = vmatpush1.bf16.msra.mxu0 %v3055
        %4214 = vmatprep.subr.bf16.mxu0 %v3058
        %4215 = vmatpush1.bf16.msra.mxu0 %v3057
        %4216 = vmatprep.subr.bf16.mxu0 %v3060
        %4217 = vmatpush1.bf16.msra.mxu0 %v3059
        %4218 = vmatprep.subr.bf16.mxu0 %v3062
        %4219 = vmatpush1.bf16.msra.mxu0 %v3061
        %4220 = vmatprep.subr.bf16.mxu0 %v3064
        %4221 = vmatpush1.bf16.msra.mxu0 %v3063
        %4222 = vmatprep.subr.bf16.mxu0 %v3066
        %4223 = vmatpush1.bf16.msra.mxu0 %v3065
        %4224 = vmatprep.subr.bf16.mxu0 %v3068
        %4225 = vmatpush1.bf16.msra.mxu0 %v3067
        %4226 = vmatprep.subr.bf16.mxu0 %v3070
        %4227 = vmatpush1.bf16.msra.mxu0 %v3069
        %4228 = vmatprep.subr.bf16.mxu0 %v3072
        %4229 = vmatpush1.bf16.msra.mxu0 %v3071
        %4230 = vmatprep.subr.bf16.mxu0 %v3074
        %4231 = vmatpush1.bf16.msra.mxu0 %v3073
        %4232 = vmatprep.subr.bf16.mxu0 %v3076
        %4233 = vmatpush1.bf16.msra.mxu0 %v3075
        %4234 = vmatprep.mubr.bf16.mxu0 %v1652
        %4235 = vmatmul.mubr.bf16.gmra.mrb[0].mxu0 %v1651
        %v4236 = vpop.f32.mrb[0].mxu0
        %v4237 = vadd.f32 %v4076, %v4236
        %v4238 = vpop.f32.mrb[0].mxu0
        %v4239 = vadd.f32 %v4078, %v4238
        %v4240 = vpop.f32.mrb[0].mxu0
        %v4241 = vadd.f32 %v4080, %v4240
        %v4242 = vpop.f32.mrb[0].mxu0
        %v4243 = vadd.f32 %v4082, %v4242
        %4244 = vmatprep.mubr.bf16.mxu0 %v1668
        %4245 = vmatmul.mubr.bf16.gmra.mrb[0].mxu0 %v1667
        %v4246 = vpop.f32.mrb[0].mxu0
        %v4247 = vadd.f32 %v4086, %v4246
        %v4248 = vpop.f32.mrb[0].mxu0
        %v4249 = vadd.f32 %v4088, %v4248
        %v4250 = vpop.f32.mrb[0].mxu0
        %v4251 = vadd.f32 %v4090, %v4250
        %v4252 = vpop.f32.mrb[0].mxu0
        %v4253 = vadd.f32 %v4092, %v4252
        %4254 = vmatprep.mubr.bf16.mxu0 %v1684
        %4255 = vmatmul.mubr.bf16.gmra.mrb[0].mxu0 %v1683
        %v4256 = vpop.f32.mrb[0].mxu0
        %v4257 = vadd.f32 %v4096, %v4256
        %v4258 = vpop.f32.mrb[0].mxu0
        %v4259 = vadd.f32 %v4098, %v4258
        %v4260 = vpop.f32.mrb[0].mxu0
        %v4261 = vadd.f32 %v4100, %v4260
        %v4262 = vpop.f32.mrb[0].mxu0
        %v4263 = vadd.f32 %v4102, %v4262
        %4264 = vmatprep.mubr.bf16.mxu0 %v1700
        %4265 = vmatmul.mubr.bf16.gmra.mrb[0].mxu0 %v1699
        %v4266 = vpop.f32.mrb[0].mxu0
        %v4267 = vadd.f32 %v4106, %v4266
        %v4268 = vpop.f32.mrb[0].mxu0
        %v4269 = vadd.f32 %v4108, %v4268
        %v4270 = vpop.f32.mrb[0].mxu0
        %v4271 = vadd.f32 %v4110, %v4270
        %v4272 = vpop.f32.mrb[0].mxu0
        %v4273 = vadd.f32 %v4112, %v4272
        %4274 = vmatprep.mubr.bf16.mxu0 %v1716
        %4275 = vmatmul.mubr.bf16.gmra.mrb[0].mxu0 %v1715
        %v4276 = vpop.f32.mrb[0].mxu0
        %v4277 = vadd.f32 %v4116, %v4276
        %v4278 = vpop.f32.mrb[0].mxu0
        %v4279 = vadd.f32 %v4118, %v4278
        %v4280 = vpop.f32.mrb[0].mxu0
        %v4281 = vadd.f32 %v4120, %v4280
        %v4282 = vpop.f32.mrb[0].mxu0
        %v4283 = vadd.f32 %v4122, %v4282
        %4284 = vmatprep.mubr.bf16.mxu0 %v1732
        %4285 = vmatmul.mubr.bf16.gmra.mrb[0].mxu0 %v1731
        %v4286 = vpop.f32.mrb[0].mxu0
        %v4287 = vadd.f32 %v4126, %v4286
        %v4288 = vpop.f32.mrb[0].mxu0
        %v4289 = vadd.f32 %v4128, %v4288
        %v4290 = vpop.f32.mrb[0].mxu0
        %v4291 = vadd.f32 %v4130, %v4290
        %v4292 = vpop.f32.mrb[0].mxu0
        %v4293 = vadd.f32 %v4132, %v4292
        %4294 = vmatprep.mubr.bf16.mxu0 %v1748
        %4295 = vmatmul.mubr.bf16.gmra.mrb[0].mxu0 %v1747
        %v4296 = vpop.f32.mrb[0].mxu0
        %v4297 = vadd.f32 %v4136, %v4296
        %v4298 = vpop.f32.mrb[0].mxu0
        %v4299 = vadd.f32 %v4138, %v4298
        %v4300 = vpop.f32.mrb[0].mxu0
        %v4301 = vadd.f32 %v4140, %v4300
        %v4302 = vpop.f32.mrb[0].mxu0
        %v4303 = vadd.f32 %v4142, %v4302
        %4304 = vmatprep.mubr.bf16.mxu0 %v1764
        %4305 = vmatmul.mubr.bf16.gmra.mrb[0].mxu0 %v1763
        %v4306 = vpop.f32.mrb[0].mxu0
        %v4307 = vadd.f32 %v4146, %v4306
        %v4308 = vpop.f32.mrb[0].mxu0
        %v4309 = vadd.f32 %v4148, %v4308
        %v4310 = vpop.f32.mrb[0].mxu0
        %v4311 = vadd.f32 %v4150, %v4310
        %v4312 = vpop.f32.mrb[0].mxu0
        %v4313 = vadd.f32 %v4152, %v4312
        %4314 = vmatprep.mubr.bf16.mxu0 %v1780
        %4315 = vmatmul.mubr.bf16.gmra.mrb[0].mxu0 %v1779
        %v4316 = vpop.f32.mrb[0].mxu0
        %v4317 = vadd.f32 %v4156, %v4316
        %v4318 = vpop.f32.mrb[0].mxu0
        %v4319 = vadd.f32 %v4158, %v4318
        %v4320 = vpop.f32.mrb[0].mxu0
        %v4321 = vadd.f32 %v4160, %v4320
        %v4322 = vpop.f32.mrb[0].mxu0
        %v4323 = vadd.f32 %v4162, %v4322
        %4324 = vmatprep.mubr.bf16.mxu0 %v1796
        %4325 = vmatmul.mubr.bf16.gmra.mrb[0].mxu0 %v1795
        %v4326 = vpop.f32.mrb[0].mxu0
        %v4327 = vadd.f32 %v4166, %v4326
        %v4328 = vpop.f32.mrb[0].mxu0
        %v4329 = vadd.f32 %v4168, %v4328
        %v4330 = vpop.f32.mrb[0].mxu0
        %v4331 = vadd.f32 %v4170, %v4330
        %v4332 = vpop.f32.mrb[0].mxu0
        %v4333 = vadd.f32 %v4172, %v4332
        %4334 = vmatprep.mubr.bf16.mxu0 %v1812
        %4335 = vmatmul.mubr.bf16.gmra.mrb[0].mxu0 %v1811
        %v4336 = vpop.f32.mrb[0].mxu0
        %v4337 = vadd.f32 %v4176, %v4336
        %v4338 = vpop.f32.mrb[0].mxu0
        %v4339 = vadd.f32 %v4178, %v4338
        %v4340 = vpop.f32.mrb[0].mxu0
        %v4341 = vadd.f32 %v4180, %v4340
        %v4342 = vpop.f32.mrb[0].mxu0
        %v4343 = vadd.f32 %v4182, %v4342
        %4344 = vmatprep.mubr.bf16.mxu0 %v1828
        %4345 = vmatmul.mubr.bf16.gmra.mrb[0].mxu0 %v1827
        %v4346 = vpop.f32.mrb[0].mxu0
        %v4347 = vadd.f32 %v4186, %v4346
        %v4348 = vpop.f32.mrb[0].mxu0
        %v4349 = vadd.f32 %v4188, %v4348
        %v4350 = vpop.f32.mrb[0].mxu0
        %v4351 = vadd.f32 %v4190, %v4350
        %v4352 = vpop.f32.mrb[0].mxu0
        %v4353 = vadd.f32 %v4192, %v4352
        %4354 = vmatprep.mubr.bf16.mxu0 %v1844
        %4355 = vmatmul.mubr.bf16.gmra.mrb[0].mxu0 %v1843
        %v4356 = vpop.f32.mrb[0].mxu0
        %v4357 = vadd.f32 %v4196, %v4356
        %v4358 = vpop.f32.mrb[0].mxu0
        %v4359 = vadd.f32 %v4198, %v4358
        %v4360 = vpop.f32.mrb[0].mxu0
        %v4361 = vpop.f32.mrb[0].mxu0
        %4362 = vdwg.mxu0
        %4363 = vmatprep.subr.bf16.mxu0 %v3078
        %4364 = vmatpush1.bf16.msra.mxu0 %v3077
        %4365 = vmatprep.subr.bf16.mxu0 %v3080
        %4366 = vmatpush1.bf16.msra.mxu0 %v3079
        %4367 = vmatprep.subr.bf16.mxu0 %v3082
        %4368 = vmatpush1.bf16.msra.mxu0 %v3081
        %4369 = vmatprep.subr.bf16.mxu0 %v3084
        %4370 = vmatpush1.bf16.msra.mxu0 %v3083
        %4371 = vmatprep.subr.bf16.mxu0 %v3086
        %4372 = vmatpush1.bf16.msra.mxu0 %v3085
        %4373 = vmatprep.subr.bf16.mxu0 %v3088
        %4374 = vmatpush1.bf16.msra.mxu0 %v3087
        %4375 = vmatprep.subr.bf16.mxu0 %v3090
        %4376 = vmatpush1.bf16.msra.mxu0 %v3089
        %4377 = vmatprep.subr.bf16.mxu0 %v3092
        %4378 = vmatpush1.bf16.msra.mxu0 %v3091
        %4379 = vmatprep.subr.bf16.mxu0 %v3094
        %4380 = vmatpush1.bf16.msra.mxu0 %v3093
        %4381 = vmatprep.subr.bf16.mxu0 %v3096
        %4382 = vmatpush1.bf16.msra.mxu0 %v3095
        %4383 = vmatprep.subr.bf16.mxu0 %v3098
        %4384 = vmatpush1.bf16.msra.mxu0 %v3097
        %4385 = vmatprep.subr.bf16.mxu0 %v3100
        %4386 = vmatpush1.bf16.msra.mxu0 %v3099
        %4387 = vmatprep.subr.bf16.mxu0 %v3102
        %4388 = vmatpush1.bf16.msra.mxu0 %v3101
        %4389 = vmatprep.subr.bf16.mxu0 %v3104
        %4390 = vmatpush1.bf16.msra.mxu0 %v3103
        %4391 = vmatprep.subr.bf16.mxu0 %v3106
        %4392 = vmatpush1.bf16.msra.mxu0 %v3105
        %4393 = vmatprep.subr.bf16.mxu0 %v3108
        %4394 = vmatpush1.bf16.msra.mxu0 %v3107
        %4395 = vmatprep.mubr.bf16.mxu0 %v1654
        %4396 = vmatmul.mubr.bf16.gmra.mrb[0].mxu0 %v1653
        %v4397 = vpop.f32.mrb[0].mxu0
        %v4398 = vadd.f32 %v4237, %v4397
        %v4399 = vpop.f32.mrb[0].mxu0
        %v4400 = vadd.f32 %v4239, %v4399
        %v4401 = vpop.f32.mrb[0].mxu0
        %v4402 = vadd.f32 %v4241, %v4401
        %v4403 = vpop.f32.mrb[0].mxu0
        %v4404 = vadd.f32 %v4243, %v4403
        %4405 = vmatprep.mubr.bf16.mxu0 %v1670
        %4406 = vmatmul.mubr.bf16.gmra.mrb[0].mxu0 %v1669
        %v4407 = vpop.f32.mrb[0].mxu0
        %v4408 = vadd.f32 %v4247, %v4407
        %v4409 = vpop.f32.mrb[0].mxu0
        %v4410 = vadd.f32 %v4249, %v4409
        %v4411 = vpop.f32.mrb[0].mxu0
        %v4412 = vadd.f32 %v4251, %v4411
        %v4413 = vpop.f32.mrb[0].mxu0
        %v4414 = vadd.f32 %v4253, %v4413
        %4415 = vmatprep.mubr.bf16.mxu0 %v1686
        %4416 = vmatmul.mubr.bf16.gmra.mrb[0].mxu0 %v1685
        %v4417 = vpop.f32.mrb[0].mxu0
        %v4418 = vadd.f32 %v4257, %v4417
        %v4419 = vpop.f32.mrb[0].mxu0
        %v4420 = vadd.f32 %v4259, %v4419
        %v4421 = vpop.f32.mrb[0].mxu0
        %v4422 = vadd.f32 %v4261, %v4421
        %v4423 = vpop.f32.mrb[0].mxu0
        %v4424 = vadd.f32 %v4263, %v4423
        %4425 = vmatprep.mubr.bf16.mxu0 %v1702
        %4426 = vmatmul.mubr.bf16.gmra.mrb[0].mxu0 %v1701
        %v4427 = vpop.f32.mrb[0].mxu0
        %v4428 = vadd.f32 %v4267, %v4427
        %v4429 = vpop.f32.mrb[0].mxu0
        %v4430 = vadd.f32 %v4269, %v4429
        %v4431 = vpop.f32.mrb[0].mxu0
        %v4432 = vadd.f32 %v4271, %v4431
        %v4433 = vpop.f32.mrb[0].mxu0
        %v4434 = vadd.f32 %v4273, %v4433
        %4435 = vmatprep.mubr.bf16.mxu0 %v1718
        %4436 = vmatmul.mubr.bf16.gmra.mrb[0].mxu0 %v1717
        %v4437 = vpop.f32.mrb[0].mxu0
        %v4438 = vadd.f32 %v4277, %v4437
        %v4439 = vpop.f32.mrb[0].mxu0
        %v4440 = vadd.f32 %v4279, %v4439
        %v4441 = vpop.f32.mrb[0].mxu0
        %v4442 = vadd.f32 %v4281, %v4441
        %v4443 = vpop.f32.mrb[0].mxu0
        %v4444 = vadd.f32 %v4283, %v4443
        %4445 = vmatprep.mubr.bf16.mxu0 %v1734
        %4446 = vmatmul.mubr.bf16.gmra.mrb[0].mxu0 %v1733
        %v4447 = vpop.f32.mrb[0].mxu0
        %v4448 = vadd.f32 %v4287, %v4447
        %v4449 = vpop.f32.mrb[0].mxu0
        %v4450 = vadd.f32 %v4289, %v4449
        %v4451 = vpop.f32.mrb[0].mxu0
        %v4452 = vadd.f32 %v4291, %v4451
        %v4453 = vpop.f32.mrb[0].mxu0
        %v4454 = vadd.f32 %v4293, %v4453
        %4455 = vmatprep.mubr.bf16.mxu0 %v1750
        %4456 = vmatmul.mubr.bf16.gmra.mrb[0].mxu0 %v1749
        %v4457 = vpop.f32.mrb[0].mxu0
        %v4458 = vadd.f32 %v4297, %v4457
        %v4459 = vpop.f32.mrb[0].mxu0
        %v4460 = vadd.f32 %v4299, %v4459
        %v4461 = vpop.f32.mrb[0].mxu0
        %v4462 = vadd.f32 %v4301, %v4461
        %v4463 = vpop.f32.mrb[0].mxu0
        %v4464 = vadd.f32 %v4303, %v4463
        %4465 = vmatprep.mubr.bf16.mxu0 %v1766
        %4466 = vmatmul.mubr.bf16.gmra.mrb[0].mxu0 %v1765
        %v4467 = vpop.f32.mrb[0].mxu0
        %v4468 = vadd.f32 %v4307, %v4467
        %v4469 = vpop.f32.mrb[0].mxu0
        %v4470 = vadd.f32 %v4309, %v4469
        %v4471 = vpop.f32.mrb[0].mxu0
        %v4472 = vadd.f32 %v4311, %v4471
        %v4473 = vpop.f32.mrb[0].mxu0
        %v4474 = vadd.f32 %v4313, %v4473
        %4475 = vmatprep.mubr.bf16.mxu0 %v1782
        %4476 = vmatmul.mubr.bf16.gmra.mrb[0].mxu0 %v1781
        %v4477 = vpop.f32.mrb[0].mxu0
        %v4478 = vadd.f32 %v4317, %v4477
        %v4479 = vpop.f32.mrb[0].mxu0
        %v4480 = vadd.f32 %v4319, %v4479
        %v4481 = vpop.f32.mrb[0].mxu0
        %v4482 = vadd.f32 %v4321, %v4481
        %v4483 = vpop.f32.mrb[0].mxu0
        %v4484 = vadd.f32 %v4323, %v4483
        %4485 = vmatprep.mubr.bf16.mxu0 %v1798
        %4486 = vmatmul.mubr.bf16.gmra.mrb[0].mxu0 %v1797
        %v4487 = vpop.f32.mrb[0].mxu0
        %v4488 = vadd.f32 %v4327, %v4487
        %v4489 = vpop.f32.mrb[0].mxu0
        %v4490 = vadd.f32 %v4329, %v4489
        %v4491 = vpop.f32.mrb[0].mxu0
        %v4492 = vadd.f32 %v4331, %v4491
        %v4493 = vpop.f32.mrb[0].mxu0
        %v4494 = vadd.f32 %v4333, %v4493
        %4495 = vmatprep.mubr.bf16.mxu0 %v1814
        %4496 = vmatmul.mubr.bf16.gmra.mrb[0].mxu0 %v1813
        %v4497 = vpop.f32.mrb[0].mxu0
        %v4498 = vadd.f32 %v4337, %v4497
        %v4499 = vpop.f32.mrb[0].mxu0
        %v4500 = vadd.f32 %v4339, %v4499
        %v4501 = vpop.f32.mrb[0].mxu0
        %v4502 = vadd.f32 %v4341, %v4501
        %v4503 = vpop.f32.mrb[0].mxu0
        %v4504 = vadd.f32 %v4343, %v4503
        %4505 = vmatprep.mubr.bf16.mxu0 %v1830
        %4506 = vmatmul.mubr.bf16.gmra.mrb[0].mxu0 %v1829
        %v4507 = vpop.f32.mrb[0].mxu0
        %v4508 = vadd.f32 %v4347, %v4507
        %v4509 = vpop.f32.mrb[0].mxu0
        %v4510 = vadd.f32 %v4349, %v4509
        %v4511 = vpop.f32.mrb[0].mxu0
        %v4512 = vadd.f32 %v4351, %v4511
        %v4513 = vpop.f32.mrb[0].mxu0
        %v4514 = vadd.f32 %v4353, %v4513
        %4515 = vmatprep.mubr.bf16.mxu0 %v1846
        %4516 = vmatmul.mubr.bf16.gmra.mrb[0].mxu0 %v1845
        %v4517 = vpop.f32.mrb[0].mxu0
        %v4518 = vadd.f32 %v4357, %v4517
        %v4519 = vpop.f32.mrb[0].mxu0
        %v4520 = vadd.f32 %v4359, %v4519
        %v4521 = vpop.f32.mrb[0].mxu0
        %v4522 = vpop.f32.mrb[0].mxu0
        %4523 = vdwg.mxu0
        %4524 = vmatprep.subr.bf16.mxu0 %v3110
        %4525 = vmatpush1.bf16.msra.mxu0 %v3109
        %4526 = vmatprep.subr.bf16.mxu0 %v3112
        %4527 = vmatpush1.bf16.msra.mxu0 %v3111
        %4528 = vmatprep.subr.bf16.mxu0 %v3114
        %4529 = vmatpush1.bf16.msra.mxu0 %v3113
        %4530 = vmatprep.subr.bf16.mxu0 %v3116
        %4531 = vmatpush1.bf16.msra.mxu0 %v3115
        %4532 = vmatprep.subr.bf16.mxu0 %v3118
        %4533 = vmatpush1.bf16.msra.mxu0 %v3117
        %4534 = vmatprep.subr.bf16.mxu0 %v3120
        %4535 = vmatpush1.bf16.msra.mxu0 %v3119
        %4536 = vmatprep.subr.bf16.mxu0 %v3122
        %4537 = vmatpush1.bf16.msra.mxu0 %v3121
        %4538 = vmatprep.subr.bf16.mxu0 %v3124
        %4539 = vmatpush1.bf16.msra.mxu0 %v3123
        %4540 = vmatprep.subr.bf16.mxu0 %v3126
        %4541 = vmatpush1.bf16.msra.mxu0 %v3125
        %4542 = vmatprep.subr.bf16.mxu0 %v3128
        %4543 = vmatpush1.bf16.msra.mxu0 %v3127
        %4544 = vmatprep.subr.bf16.mxu0 %v3130
        %4545 = vmatpush1.bf16.msra.mxu0 %v3129
        %4546 = vmatprep.subr.bf16.mxu0 %v3132
        %4547 = vmatpush1.bf16.msra.mxu0 %v3131
        %4548 = vmatprep.subr.bf16.mxu0 %v3134
        %4549 = vmatpush1.bf16.msra.mxu0 %v3133
        %4550 = vmatprep.subr.bf16.mxu0 %v3136
        %4551 = vmatpush1.bf16.msra.mxu0 %v3135
        %4552 = vmatprep.subr.bf16.mxu0 %v3138
        %4553 = vmatpush1.bf16.msra.mxu0 %v3137
        %4554 = vmatprep.subr.bf16.mxu0 %v3140
        %4555 = vmatpush1.bf16.msra.mxu0 %v3139
        %4556 = vmatprep.mubr.bf16.mxu0 %v1656
        %4557 = vmatmul.mubr.bf16.gmra.mrb[0].mxu0 %v1655
        %v4558 = vpop.f32.mrb[0].mxu0
        %v4559 = vadd.f32 %v4398, %v4558
        %v4560 = vpop.f32.mrb[0].mxu0
        %v4561 = vadd.f32 %v4400, %v4560
        %v4562 = vpop.f32.mrb[0].mxu0
        %v4563 = vadd.f32 %v4402, %v4562
        %v4564 = vpop.f32.mrb[0].mxu0
        %v4565 = vadd.f32 %v4404, %v4564
        %4566 = vmatprep.mubr.bf16.mxu0 %v1672
        %4567 = vmatmul.mubr.bf16.gmra.mrb[0].mxu0 %v1671
        %v4568 = vpop.f32.mrb[0].mxu0
        %v4569 = vadd.f32 %v4408, %v4568
        %v4570 = vpop.f32.mrb[0].mxu0
        %v4571 = vadd.f32 %v4410, %v4570
        %v4572 = vpop.f32.mrb[0].mxu0
        %v4573 = vadd.f32 %v4412, %v4572
        %v4574 = vpop.f32.mrb[0].mxu0
        %v4575 = vadd.f32 %v4414, %v4574
        %4576 = vmatprep.mubr.bf16.mxu0 %v1688
        %4577 = vmatmul.mubr.bf16.gmra.mrb[0].mxu0 %v1687
        %v4578 = vpop.f32.mrb[0].mxu0
        %v4579 = vadd.f32 %v4418, %v4578
        %v4580 = vpop.f32.mrb[0].mxu0
        %v4581 = vadd.f32 %v4420, %v4580
        %v4582 = vpop.f32.mrb[0].mxu0
        %v4583 = vadd.f32 %v4422, %v4582
        %v4584 = vpop.f32.mrb[0].mxu0
        %v4585 = vadd.f32 %v4424, %v4584
        %4586 = vmatprep.mubr.bf16.mxu0 %v1704
        %4587 = vmatmul.mubr.bf16.gmra.mrb[0].mxu0 %v1703
        %v4588 = vpop.f32.mrb[0].mxu0
        %v4589 = vadd.f32 %v4428, %v4588
        %v4590 = vpop.f32.mrb[0].mxu0
        %v4591 = vadd.f32 %v4430, %v4590
        %v4592 = vpop.f32.mrb[0].mxu0
        %v4593 = vadd.f32 %v4432, %v4592
        %v4594 = vpop.f32.mrb[0].mxu0
        %v4595 = vadd.f32 %v4434, %v4594
        %4596 = vmatprep.mubr.bf16.mxu0 %v1720
        %4597 = vmatmul.mubr.bf16.gmra.mrb[0].mxu0 %v1719
        %v4598 = vpop.f32.mrb[0].mxu0
        %v4599 = vadd.f32 %v4438, %v4598
        %v4600 = vpop.f32.mrb[0].mxu0
        %v4601 = vadd.f32 %v4440, %v4600
        %v4602 = vpop.f32.mrb[0].mxu0
        %v4603 = vadd.f32 %v4442, %v4602
        %v4604 = vpop.f32.mrb[0].mxu0
        %v4605 = vadd.f32 %v4444, %v4604
        %4606 = vmatprep.mubr.bf16.mxu0 %v1736
        %4607 = vmatmul.mubr.bf16.gmra.mrb[0].mxu0 %v1735
        %v4608 = vpop.f32.mrb[0].mxu0
        %v4609 = vadd.f32 %v4448, %v4608
        %v4610 = vpop.f32.mrb[0].mxu0
        %v4611 = vadd.f32 %v4450, %v4610
        %v4612 = vpop.f32.mrb[0].mxu0
        %v4613 = vadd.f32 %v4452, %v4612
        %v4614 = vpop.f32.mrb[0].mxu0
        %v4615 = vadd.f32 %v4454, %v4614
        %4616 = vmatprep.mubr.bf16.mxu0 %v1752
        %4617 = vmatmul.mubr.bf16.gmra.mrb[0].mxu0 %v1751
        %v4618 = vpop.f32.mrb[0].mxu0
        %v4619 = vadd.f32 %v4458, %v4618
        %v4620 = vpop.f32.mrb[0].mxu0
        %v4621 = vadd.f32 %v4460, %v4620
        %v4622 = vpop.f32.mrb[0].mxu0
        %v4623 = vadd.f32 %v4462, %v4622
        %v4624 = vpop.f32.mrb[0].mxu0
        %v4625 = vadd.f32 %v4464, %v4624
        %4626 = vmatprep.mubr.bf16.mxu0 %v1768
        %4627 = vmatmul.mubr.bf16.gmra.mrb[0].mxu0 %v1767
        %v4628 = vpop.f32.mrb[0].mxu0
        %v4629 = vadd.f32 %v4468, %v4628
        %v4630 = vpop.f32.mrb[0].mxu0
        %v4631 = vadd.f32 %v4470, %v4630
        %v4632 = vpop.f32.mrb[0].mxu0
        %v4633 = vadd.f32 %v4472, %v4632
        %v4634 = vpop.f32.mrb[0].mxu0
        %v4635 = vadd.f32 %v4474, %v4634
        %4636 = vmatprep.mubr.bf16.mxu0 %v1784
        %4637 = vmatmul.mubr.bf16.gmra.mrb[0].mxu0 %v1783
        %v4638 = vpop.f32.mrb[0].mxu0
        %v4639 = vadd.f32 %v4478, %v4638
        %v4640 = vpop.f32.mrb[0].mxu0
        %v4641 = vadd.f32 %v4480, %v4640
        %v4642 = vpop.f32.mrb[0].mxu0
        %v4643 = vadd.f32 %v4482, %v4642
        %v4644 = vpop.f32.mrb[0].mxu0
        %v4645 = vadd.f32 %v4484, %v4644
        %4646 = vmatprep.mubr.bf16.mxu0 %v1800
        %4647 = vmatmul.mubr.bf16.gmra.mrb[0].mxu0 %v1799
        %v4648 = vpop.f32.mrb[0].mxu0
        %v4649 = vadd.f32 %v4488, %v4648
        %v4650 = vpop.f32.mrb[0].mxu0
        %v4651 = vadd.f32 %v4490, %v4650
        %v4652 = vpop.f32.mrb[0].mxu0
        %v4653 = vadd.f32 %v4492, %v4652
        %v4654 = vpop.f32.mrb[0].mxu0
        %v4655 = vadd.f32 %v4494, %v4654
        %4656 = vmatprep.mubr.bf16.mxu0 %v1816
        %4657 = vmatmul.mubr.bf16.gmra.mrb[0].mxu0 %v1815
        %v4658 = vpop.f32.mrb[0].mxu0
        %v4659 = vadd.f32 %v4498, %v4658
        %v4660 = vpop.f32.mrb[0].mxu0
        %v4661 = vadd.f32 %v4500, %v4660
        %v4662 = vpop.f32.mrb[0].mxu0
        %v4663 = vadd.f32 %v4502, %v4662
        %v4664 = vpop.f32.mrb[0].mxu0
        %v4665 = vadd.f32 %v4504, %v4664
        %4666 = vmatprep.mubr.bf16.mxu0 %v1832
        %4667 = vmatmul.mubr.bf16.gmra.mrb[0].mxu0 %v1831
        %v4668 = vpop.f32.mrb[0].mxu0
        %v4669 = vadd.f32 %v4508, %v4668
        %v4670 = vpop.f32.mrb[0].mxu0
        %v4671 = vadd.f32 %v4510, %v4670
        %v4672 = vpop.f32.mrb[0].mxu0
        %v4673 = vadd.f32 %v4512, %v4672
        %v4674 = vpop.f32.mrb[0].mxu0
        %v4675 = vadd.f32 %v4514, %v4674
        %4676 = vmatprep.mubr.bf16.mxu0 %v1848
        %4677 = vmatmul.mubr.bf16.gmra.mrb[0].mxu0 %v1847
        %v4678 = vpop.f32.mrb[0].mxu0
        %v4679 = vadd.f32 %v4518, %v4678
        %v4680 = vpop.f32.mrb[0].mxu0
        %v4681 = vadd.f32 %v4520, %v4680
        %v4682 = vpop.f32.mrb[0].mxu0
        %v4683 = vpop.f32.mrb[0].mxu0
        %4684 = vdwg.mxu0
        %4685 = vst [vmem:[%s1233] sm:$0xff] %v4559
        %4686 = vst [vmem:[%s1233 + $0x8] sm:$0xff] %v4561
        %4687 = vst [vmem:[%s1233 + $0x10] sm:$0xff] %v4563
        %4688 = vst [vmem:[%s1233 + $0x18] sm:$0xff] %v4565
        %4689 = vst [vmem:[%s1233 + $0x20] sm:$0xff] %v4569
        %4690 = vst [vmem:[%s1233 + $0x28] sm:$0xff] %v4571
        %4691 = vst [vmem:[%s1233 + $0x30] sm:$0xff] %v4573
        %4692 = vst [vmem:[%s1233 + $0x38] sm:$0xff] %v4575
        %4693 = vst [vmem:[%s1233 + $0x40] sm:$0xff] %v4579
        %4694 = vst [vmem:[%s1233 + $0x48] sm:$0xff] %v4581
        %4695 = vst [vmem:[%s1233 + $0x50] sm:$0xff] %v4583
        %4696 = vst [vmem:[%s1233 + $0x58] sm:$0xff] %v4585
        %4697 = vst [vmem:[%s1233 + $0x60] sm:$0xff] %v4589
        %4698 = vst [vmem:[%s1233 + $0x68] sm:$0xff] %v4591
        %4699 = vst [vmem:[%s1233 + $0x70] sm:$0xff] %v4593
        %4700 = vst [vmem:[%s1233 + $0x78] sm:$0xff] %v4595
        %4701 = vst [vmem:[%s1233 + $0x80] sm:$0xff] %v4599
        %4702 = vst [vmem:[%s1233 + $0x88] sm:$0xff] %v4601
        %4703 = vst [vmem:[%s1233 + $0x90] sm:$0xff] %v4603
        %4704 = vst [vmem:[%s1233 + $0x98] sm:$0xff] %v4605
        %4705 = vst [vmem:[%s1233 + $0xa0] sm:$0xff] %v4609
        %4706 = vst [vmem:[%s1233 + $0xa8] sm:$0xff] %v4611
        %4707 = vst [vmem:[%s1233 + $0xb0] sm:$0xff] %v4613
        %4708 = vst [vmem:[%s1233 + $0xb8] sm:$0xff] %v4615
        %4709 = vst [vmem:[%s1233 + $0xc0] sm:$0xff] %v4619
        %4710 = vst [vmem:[%s1233 + $0xc8] sm:$0xff] %v4621
        %4711 = vst [vmem:[%s1233 + $0xd0] sm:$0xff] %v4623
        %4712 = vst [vmem:[%s1233 + $0xd8] sm:$0xff] %v4625
        %4713 = vst [vmem:[%s1233 + $0xe0] sm:$0xff] %v4629
        %4714 = vst [vmem:[%s1233 + $0xe8] sm:$0xff] %v4631
        %4715 = vst [vmem:[%s1233 + $0xf0] sm:$0xff] %v4633
        %4716 = vst [vmem:[%s1233 + $0xf8] sm:$0xff] %v4635
        %4717 = vst [vmem:[%s1233 + $0x100] sm:$0xff] %v4639
        %4718 = vst [vmem:[%s1233 + $0x108] sm:$0xff] %v4641
        %4719 = vst [vmem:[%s1233 + $0x110] sm:$0xff] %v4643
        %4720 = vst [vmem:[%s1233 + $0x118] sm:$0xff] %v4645
        %4721 = vst [vmem:[%s1233 + $0x120] sm:$0xff] %v4649
        %4722 = vst [vmem:[%s1233 + $0x128] sm:$0xff] %v4651
        %4723 = vst [vmem:[%s1233 + $0x130] sm:$0xff] %v4653
        %4724 = vst [vmem:[%s1233 + $0x138] sm:$0xff] %v4655
        %4725 = vst [vmem:[%s1233 + $0x140] sm:$0xff] %v4659
        %4726 = vst [vmem:[%s1233 + $0x148] sm:$0xff] %v4661
        %4727 = vst [vmem:[%s1233 + $0x150] sm:$0xff] %v4663
        %4728 = vst [vmem:[%s1233 + $0x158] sm:$0xff] %v4665
        %4729 = vst [vmem:[%s1233 + $0x160] sm:$0xff] %v4669
        %4730 = vst [vmem:[%s1233 + $0x168] sm:$0xff] %v4671
        %4731 = vst [vmem:[%s1233 + $0x170] sm:$0xff] %v4673
        %4732 = vst [vmem:[%s1233 + $0x178] sm:$0xff] %v4675
        %4733 = vst [vmem:[%s1233 + $0x180] sm:$0xf] %v4679
        %4734 = vst [vmem:[%s1233 + $0x188] sm:$0xf] %v4681
        %s4735 = sand.u32 %s95, 1
        %s4736 = sand.u32 %s95, 1
        %s4737 = smul.addr %s4736, 400
        %s4738 = scalar_lea.vmem [#allocation3], %s4737
        // Predicated region
        $region71: #{pallas_linear.1} parent=65 // pred_check
          %p4739 = pneg %p105
        $region72: #{pallas_linear.1} parent=65 // pred_check_branch
          %4741 = sbr.rel (%p4739) target = $region74
        $region73: #{pallas_linear.1} parent=65 // pred_region
          %s4742 = smul.u32 2, %s14
          %s4743 = smul.addr %s4742, 8
          %s4744 = scalar_lea.vmem %s3, %s4743
          // Predicated region
          $region75: #{pallas_linear.1} parent=73 // pred_check
            _
          $region76: #{pallas_linear.1} parent=73 // pred_check_branch
            %4746 = sbr.rel (0) target = $region78
          $region77: #{pallas_linear.1} parent=73 // pred_region
            // Predicated region
            $region79: #{pallas_linear.1} parent=77 // pred_check
              _
            $region80: #{pallas_linear.1} parent=77 // pred_check_branch
              %4748 = sbr.rel (0) target = $region82
            $region81: #{pallas_linear.1} parent=77 // pred_region
              loop: start=0, step=1, limit=1
              $region83: #{pallas_linear.1} parent=81 // loop_pre_header
                _
              $region84: #{pallas_linear.1} parent=81 // loop_header
                %s4750 = sphi 0, %s4754
                %p4751 = scmp.ge.s32.totalorder %s4750, 1
                %s4755 = sphi %s4738, %s4738
                %s4756 = sphi %s4744, %s4744
              $region85: #{pallas_linear.1} parent=81 // loop_header_branch
                %4753 = sbr.rel (%p4751) target = $region89
              $region86: #{pallas_linear.1} parent=81 // loop_body
                %v4757 = vld [vmem:[%s4755] sm:$0xff]
                %4758 = vst [vmem:[%s4756] sm:$0xff] %v4757
                %v4759 = vld [vmem:[%s4755 + $0x8] sm:$0xff]
                %4760 = vst [vmem:[%s4756 + $0x8] sm:$0xff] %v4759
                %v4761 = vld [vmem:[%s4755 + $0x10] sm:$0xff]
                %4762 = vst [vmem:[%s4756 + $0x20] sm:$0xff] %v4761
                %v4763 = vld [vmem:[%s4755 + $0x18] sm:$0xff]
                %4764 = vst [vmem:[%s4756 + $0x28] sm:$0xff] %v4763
                %v4765 = vld [vmem:[%s4755 + $0x20] sm:$0xff]
                %4766 = vst [vmem:[%s4756 + $0x40] sm:$0xff] %v4765
                %v4767 = vld [vmem:[%s4755 + $0x28] sm:$0xff]
                %4768 = vst [vmem:[%s4756 + $0x48] sm:$0xff] %v4767
                %v4769 = vld [vmem:[%s4755 + $0x30] sm:$0xff]
                %4770 = vst [vmem:[%s4756 + $0x60] sm:$0xff] %v4769
                %v4771 = vld [vmem:[%s4755 + $0x38] sm:$0xff]
                %4772 = vst [vmem:[%s4756 + $0x68] sm:$0xff] %v4771
                %v4773 = vld [vmem:[%s4755 + $0x40] sm:$0xff]
                %4774 = vst [vmem:[%s4756 + $0x80] sm:$0xff] %v4773
                %v4775 = vld [vmem:[%s4755 + $0x48] sm:$0xff]
                %4776 = vst [vmem:[%s4756 + $0x88] sm:$0xff] %v4775
                %v4777 = vld [vmem:[%s4755 + $0x50] sm:$0xff]
                %4778 = vst [vmem:[%s4756 + $0xa0] sm:$0xff] %v4777
                %v4779 = vld [vmem:[%s4755 + $0x58] sm:$0xff]
                %4780 = vst [vmem:[%s4756 + $0xa8] sm:$0xff] %v4779
                %v4781 = vld [vmem:[%s4755 + $0x60] sm:$0xff]
                %4782 = vst [vmem:[%s4756 + $0xc0] sm:$0xff] %v4781
                %v4783 = vld [vmem:[%s4755 + $0x68] sm:$0xff]
                %4784 = vst [vmem:[%s4756 + $0xc8] sm:$0xff] %v4783
                %v4785 = vld [vmem:[%s4755 + $0x70] sm:$0xff]
                %4786 = vst [vmem:[%s4756 + $0xe0] sm:$0xff] %v4785
                %v4787 = vld [vmem:[%s4755 + $0x78] sm:$0xff]
                %4788 = vst [vmem:[%s4756 + $0xe8] sm:$0xff] %v4787
                %v4789 = vld [vmem:[%s4755 + $0x80] sm:$0xff]
                %4790 = vst [vmem:[%s4756 + $0x100] sm:$0xff] %v4789
                %v4791 = vld [vmem:[%s4755 + $0x88] sm:$0xff]
                %4792 = vst [vmem:[%s4756 + $0x108] sm:$0xff] %v4791
                %v4793 = vld [vmem:[%s4755 + $0x90] sm:$0xff]
                %4794 = vst [vmem:[%s4756 + $0x120] sm:$0xff] %v4793
                %v4795 = vld [vmem:[%s4755 + $0x98] sm:$0xff]
                %4796 = vst [vmem:[%s4756 + $0x128] sm:$0xff] %v4795
                %v4797 = vld [vmem:[%s4755 + $0xa0] sm:$0xff]
                %4798 = vst [vmem:[%s4756 + $0x140] sm:$0xff] %v4797
                %v4799 = vld [vmem:[%s4755 + $0xa8] sm:$0xff]
                %4800 = vst [vmem:[%s4756 + $0x148] sm:$0xff] %v4799
                %v4801 = vld [vmem:[%s4755 + $0xb0] sm:$0xff]
                %4802 = vst [vmem:[%s4756 + $0x160] sm:$0xff] %v4801
                %v4803 = vld [vmem:[%s4755 + $0xb8] sm:$0xff]
                %4804 = vst [vmem:[%s4756 + $0x168] sm:$0xff] %v4803
                %v4805 = vld [vmem:[%s4755 + $0xc0] sm:$0xff]
                %4806 = vst [vmem:[%s4756 + $0x180] sm:$0xff] %v4805
                %v4807 = vld [vmem:[%s4755 + $0xc8] sm:$0xff]
                %4808 = vst [vmem:[%s4756 + $0x188] sm:$0xff] %v4807
                %v4809 = vld [vmem:[%s4755 + $0xd0] sm:$0xff]
                %4810 = vst [vmem:[%s4756 + $0x1a0] sm:$0xff] %v4809
                %v4811 = vld [vmem:[%s4755 + $0xd8] sm:$0xff]
                %4812 = vst [vmem:[%s4756 + $0x1a8] sm:$0xff] %v4811
                %v4813 = vld [vmem:[%s4755 + $0xe0] sm:$0xff]
                %4814 = vst [vmem:[%s4756 + $0x1c0] sm:$0xff] %v4813
                %v4815 = vld [vmem:[%s4755 + $0xe8] sm:$0xff]
                %4816 = vst [vmem:[%s4756 + $0x1c8] sm:$0xff] %v4815
                %v4817 = vld [vmem:[%s4755 + $0xf0] sm:$0xff]
                %4818 = vst [vmem:[%s4756 + $0x1e0] sm:$0xff] %v4817
                %v4819 = vld [vmem:[%s4755 + $0xf8] sm:$0xff]
                %4820 = vst [vmem:[%s4756 + $0x1e8] sm:$0xff] %v4819
                %v4821 = vld [vmem:[%s4755 + $0x100] sm:$0xff]
                %4822 = vst [vmem:[%s4756 + $0x200] sm:$0xff] %v4821
                %v4823 = vld [vmem:[%s4755 + $0x108] sm:$0xff]
                %4824 = vst [vmem:[%s4756 + $0x208] sm:$0xff] %v4823
                %v4825 = vld [vmem:[%s4755 + $0x110] sm:$0xff]
                %4826 = vst [vmem:[%s4756 + $0x220] sm:$0xff] %v4825
                %v4827 = vld [vmem:[%s4755 + $0x118] sm:$0xff]
                %4828 = vst [vmem:[%s4756 + $0x228] sm:$0xff] %v4827
                %v4829 = vld [vmem:[%s4755 + $0x120] sm:$0xff]
                %4830 = vst [vmem:[%s4756 + $0x240] sm:$0xff] %v4829
                %v4831 = vld [vmem:[%s4755 + $0x128] sm:$0xff]
                %4832 = vst [vmem:[%s4756 + $0x248] sm:$0xff] %v4831
                %v4833 = vld [vmem:[%s4755 + $0x130] sm:$0xff]
                %4834 = vst [vmem:[%s4756 + $0x260] sm:$0xff] %v4833
                %v4835 = vld [vmem:[%s4755 + $0x138] sm:$0xff]
                %4836 = vst [vmem:[%s4756 + $0x268] sm:$0xff] %v4835
                %v4837 = vld [vmem:[%s4755 + $0x140] sm:$0xff]
                %4838 = vst [vmem:[%s4756 + $0x280] sm:$0xff] %v4837
                %v4839 = vld [vmem:[%s4755 + $0x148] sm:$0xff]
                %4840 = vst [vmem:[%s4756 + $0x288] sm:$0xff] %v4839
                %v4841 = vld [vmem:[%s4755 + $0x150] sm:$0xff]
                %4842 = vst [vmem:[%s4756 + $0x2a0] sm:$0xff] %v4841
                %v4843 = vld [vmem:[%s4755 + $0x158] sm:$0xff]
                %4844 = vst [vmem:[%s4756 + $0x2a8] sm:$0xff] %v4843
                %v4845 = vld [vmem:[%s4755 + $0x160] sm:$0xff]
                %4846 = vst [vmem:[%s4756 + $0x2c0] sm:$0xff] %v4845
                %v4847 = vld [vmem:[%s4755 + $0x168] sm:$0xff]
                %4848 = vst [vmem:[%s4756 + $0x2c8] sm:$0xff] %v4847
                %v4849 = vld [vmem:[%s4755 + $0x170] sm:$0xff]
                %4850 = vst [vmem:[%s4756 + $0x2e0] sm:$0xff] %v4849
                %v4851 = vld [vmem:[%s4755 + $0x178] sm:$0xff]
                %4852 = vst [vmem:[%s4756 + $0x2e8] sm:$0xff] %v4851
                %v4853 = vld [vmem:[%s4755 + $0x180] sm:$0xff]
                %4854 = vst [vmem:[%s4756 + $0x300] sm:$0xff] %v4853
                %v4855 = vld [vmem:[%s4755 + $0x188] sm:$0xff]
                %4856 = vst [vmem:[%s4756 + $0x308] sm:$0xff] %v4855
              $region87: #{pallas_linear.1} parent=81 // loop_footer
                %s4754 = sadd.s32 1, %s4750
              $region88: #{pallas_linear.1} parent=81 // loop_footer_branch
                %4749 = sbr.rel target = $region84
              $region89: #{pallas_linear.1} parent=81 // loop_exit
                _
            $region82: #{pallas_linear.1} parent=77 // pred_fallthru
              _
            // Predicated region
            $region90: #{pallas_linear.1} parent=77 // pred_check
              _
            $region91: #{pallas_linear.1} parent=77 // pred_check_branch
              %4858 = sbr.rel target = $region93
            $region92: #{pallas_linear.1} parent=77 // pred_region
              _
            $region93: #{pallas_linear.1} parent=77 // pred_fallthru
              _
          $region78: #{pallas_linear.1} parent=73 // pred_fallthru
            _
          %4859 = vnop
        $region74: #{pallas_linear.1} parent=65 // pred_fallthru
          _
      $region66: #{pallas_linear.1} parent=5 // pred_fallthru
        _
      %p4860 = scmp.le.s32.totalorder 2, %s9
      // Predicated region
      $region94: #{pallas_linear.1} parent=5 // pred_check
        %p4861 = pneg %p4860
      $region95: #{pallas_linear.1} parent=5 // pred_check_branch
        %4863 = sbr.rel (%p4861) target = $region97
      $region96: #{pallas_linear.1} parent=5 // pred_region
        %s4864 = ssub.s32 %s9, 2
        // Predicated region
        $region98: #{pallas_linear.1} parent=96 // pred_check
          %p4865 = pneg %p111
        $region99: #{pallas_linear.1} parent=96 // pred_check_branch
          %4867 = sbr.rel (%p4865) target = $region101
        $region100: #{pallas_linear.1} parent=96 // pred_region
          %s4868 = sand.u32 %s96, 1
          %s4869 = sand.u32 %s96, 1
          %s4870 = smul.addr %s4869, 400
          %s4871 = scalar_lea.vmem [#allocation3], %s4870
        $region101: #{pallas_linear.1} parent=96 // pred_fallthru
          _
      $region97: #{pallas_linear.1} parent=5 // pred_fallthru
        _
    $region6: #{pallas_linear.1} parent=1 // loop_footer
      %s13 = sadd.s32 1, %s9
    $region7: #{pallas_linear.1} parent=1 // loop_footer_branch
      %8 = sbr.rel target = $region3
    $region8: #{pallas_linear.1} parent=1 // loop_exit
      _

</llo_original>
